<compile_context>
chip_gen: v7x
topology: tpu7x:2x2x1
jax: 0.10.0
libtpu: 0.0.40
codegen_flags: <defaults>
</compile_context>

<pallas_src>
import jax
import jax.numpy as jnp
from jax.experimental import pallas as pl
from jax.experimental.pallas import tpu as pltpu


# ----------------------------------------------------------------------------
# Fused LeNet kernel (one grid step == TB images)
# ----------------------------------------------------------------------------
def _lenet_kernel(x_ref, k1_ref, b1_ref, sr1_ref, sc1_ref,
                  k2_ref, b2_ref, sr2_ref, sc2_ref,
                  w1c_ref, bf1_ref, w2_ref, bf2_ref, w3_ref, bf3_ref,
                  o_ref):
    f32 = jnp.float32
    tb = o_ref.shape[1]                                    # images per grid step

    def mm(a, b):
        return jnp.dot(a, b, preferred_element_type=f32)

    for bi in range(tb):                                   # static unroll over TB images
        x = x_ref[bi, 0]                                   # (28, 28)

        # conv1 (5x5, 1->6) + bias + ReLU  ->  (24, 144), lane = oc*24 + x
        a1 = mm(x[0:24, :], k1_ref[0])
        for dy in range(1, 5):
            a1 = a1 + mm(x[dy:dy + 24, :], k1_ref[dy])
        a1 = jnp.maximum(a1 + b1_ref[...], 0.0)

        # 2x2 max-pool: (24,144) -> (12,72), lane = ic*12 + x
        # (selection matmuls are pure gathers, so max commutes with them)
        rmax = jnp.maximum(mm(sr1_ref[0], a1), mm(sr1_ref[1], a1))
        p1 = jnp.maximum(mm(rmax, sc1_ref[0]), mm(rmax, sc1_ref[1]))

        # conv2 (5x5, 6->16) + bias + ReLU  ->  (8, 128), lane = oc*8 + x
        a2 = mm(p1[0:8, :], k2_ref[0])
        for dy in range(1, 5):
            a2 = a2 + mm(p1[dy:dy + 8, :], k2_ref[dy])
        a2 = jnp.maximum(a2 + b2_ref[...], 0.0)

        # 2x2 max-pool: (8,128) -> (4,64), lane = oc*4 + x
        rmax2 = jnp.maximum(mm(sr2_ref[0], a2), mm(sr2_ref[1], a2))
        p2 = jnp.maximum(mm(rmax2, sc2_ref[0]), mm(rmax2, sc2_ref[1]))

        # fc1 (256->120) + ReLU, consuming the (4,64) pooled tile row-by-row
        h = mm(p2[0:1, :], w1c_ref[0])
        for y in range(1, 4):
            h = h + mm(p2[y:y + 1, :], w1c_ref[y])
        h = jnp.maximum(h + bf1_ref[...], 0.0)             # (1,120)

        # fc2 (120->84) + ReLU
        h = jnp.maximum(mm(h, w2_ref[...]) + bf2_ref[...], 0.0)

        # fc3 (84->10)
        logits = mm(h, w3_ref[...]) + bf3_ref[...]         # (1, 10)
        o_ref[:, pl.ds(bi, 1), :] = logits[None].astype(o_ref.dtype)


# ----------------------------------------------------------------------------
# One-time parameter restructuring (host side, weights only)
# ----------------------------------------------------------------------------
def prepare_params(params):
    f32 = jnp.float32
    w1 = params["c1_w"].astype(f32)          # (6,1,5,5)
    w2 = params["c3_w"].astype(f32)          # (16,6,5,5)

    dx = jnp.arange(5)

    # conv1 shifted-matmul weights: K1[dy, j, oc*24+k] = sum_dx w1[oc,0,dy,dx]*(j == k+dx)
    j1, k1 = jnp.arange(28), jnp.arange(24)
    m1 = (j1[None, :, None] == (k1[None, None, :] + dx[:, None, None])).astype(f32)
    K1 = jnp.einsum("oyd,djk->yjok", w1[:, 0], m1).reshape(5, 28, 6 * 24)

    # conv2 shifted-matmul weights: K2[dy, ic*12+x, oc*8+k] = sum_dx w2[oc,ic,dy,dx]*(x == k+dx)
    x2, k2 = jnp.arange(12), jnp.arange(8)
    m2 = (x2[None, :, None] == (k2[None, None, :] + dx[:, None, None])).astype(f32)
    K2 = jnp.einsum("oiyd,dxk->yixok", w2, m2).reshape(5, 6 * 12, 16 * 8)

    # 2x2 pooling selectors (0/1 matrices)
    def row_sel(n_out, n_in):
        i = jnp.arange(n_out)[:, None]
        r = jnp.arange(n_in)[None, :]
        return jnp.stack([(r == 2 * i).astype(f32),
                          (r == 2 * i + 1).astype(f32)])          # (2, n_out, n_in)

    def col_sel(n_ch, w_in, w_out):
        a = jnp.arange(n_ch * w_in)[:, None]
        b = jnp.arange(n_ch * w_out)[None, :]
        same = (a // w_in) == (b // w_out)
        return jnp.stack([(same & ((a % w_in) == 2 * (b % w_out))).astype(f32),
                          (same & ((a % w_in) == 2 * (b % w_out) + 1)).astype(f32)])

    # fc1 weight re-grouped so pooled rows [y, c*4+x] can be consumed directly
    # (torch flatten order of (16,4,4) is c*16 + y*4 + x).
    w_fc1 = params["fc1_w"].astype(f32).reshape(120, 16, 4, 4)     # (o,c,y,x)
    W1c = jnp.transpose(w_fc1, (2, 1, 3, 0)).reshape(4, 64, 120)   # [y][c*4+x, o]

    return {
        "k1": K1, "b1": jnp.repeat(params["c1_b"].astype(f32), 24)[None, :],
        "sr1": row_sel(12, 24), "sc1": col_sel(6, 24, 12),
        "k2": K2, "b2": jnp.repeat(params["c3_b"].astype(f32), 8)[None, :],
        "sr2": row_sel(4, 8), "sc2": col_sel(16, 8, 4),
        "w1c": W1c, "bf1": params["fc1_b"].astype(f32)[None, :],
        "w2": params["fc2_w"].astype(f32).T, "bf2": params["fc2_b"].astype(f32)[None, :],
        "w3": params["fc3_w"].astype(f32).T, "bf3": params["fc3_b"].astype(f32)[None, :],
    }


# ----------------------------------------------------------------------------
# Forward: one pallas_call, grid over image-blocks of TB images
# ----------------------------------------------------------------------------
def lenet_forward(prep, x):
    """x: (N, 1, 28, 28) float32 -> logits (N, 10) float32."""
    n = x.shape[0]
    tb = next(t for t in (8, 4, 2, 1) if n % t == 0)       # images per grid step
    nblk = n // tb

    names = ("k1", "b1", "sr1", "sc1", "k2", "b2", "sr2", "sc2",
             "w1c", "bf1", "w2", "bf2", "w3", "bf3")
    weights = [prep[k] for k in names]

    def const_spec(a):
        return pl.BlockSpec(a.shape, lambda i, _nd=a.ndim: (0,) * _nd)

    in_specs = [pl.BlockSpec((tb, 1, 28, 28), lambda i: (i, 0, 0, 0))]
    in_specs += [const_spec(a) for a in weights]

    flops_per_image = 2 * (5 * 24 * 28 * 144 + 2 * 12 * 24 * 144 + 2 * 12 * 144 * 72
                           + 5 * 8 * 72 * 128 + 2 * 4 * 8 * 128 + 2 * 4 * 128 * 64
                           + 4 * 64 * 120 + 120 * 84 + 84 * 10)
    weight_bytes = sum(int(a.size) * a.dtype.itemsize for a in weights)
    cost = pl.CostEstimate(flops=n * flops_per_image, transcendentals=0,
                           bytes_accessed=int(x.size) * 4 + weight_bytes + n * 10 * 4)

    out = pl.pallas_call(
        _lenet_kernel,
        out_shape=jax.ShapeDtypeStruct((nblk, tb, 10), jnp.float32),
        grid=(nblk,),
        in_specs=in_specs,
        out_specs=pl.BlockSpec((1, tb, 10), lambda i: (i, 0, 0)),
        compiler_params=pltpu.CompilerParams(
            dimension_semantics=("parallel",),
            vmem_limit_bytes=32 * 1024 * 1024),
        cost_estimate=cost,
    )(x, *weights)
    return out.reshape(n, 10)


# ----------------------------------------------------------------------------
# Deterministic synthetic parameters + plain-JAX reference
# ----------------------------------------------------------------------------
def init_lenet_params(key):
    ks = jax.random.split(key, 10)

    def w(k, shape, fan_in):
        return jax.random.normal(k, shape, jnp.float32) / jnp.sqrt(fan_in)

    return {
        "c1_w": w(ks[0], (6, 1, 5, 5), 1 * 5 * 5),
        "c1_b": 0.01 * jax.random.normal(ks[1], (6,), jnp.float32),
        "c3_w": w(ks[2], (16, 6, 5, 5), 6 * 5 * 5),
        "c3_b": 0.01 * jax.random.normal(ks[3], (16,), jnp.float32),
        "fc1_w": w(ks[4], (120, 16 * 4 * 4), 16 * 4 * 4),
        "fc1_b": 0.01 * jax.random.normal(ks[5], (120,), jnp.float32),
        "fc2_w": w(ks[6], (84, 120), 120),
        "fc2_b": 0.01 * jax.random.normal(ks[7], (84,), jnp.float32),
        "fc3_w": w(ks[8], (10, 84), 84),
        "fc3_b": 0.01 * jax.random.normal(ks[9], (10,), jnp.float32),
    }


def lenet_reference(params, x):
    def conv(x, w, b):
        y = jax.lax.conv_general_dilated(
            x, w, (1, 1), "VALID", dimension_numbers=("NCHW", "OIHW", "NCHW"))
        return jax.nn.relu(y + b[None, :, None, None])

    def pool(x):
        return jax.lax.reduce_window(x, -jnp.inf, jax.lax.max,
                                     (1, 1, 2, 2), (1, 1, 2, 2), "VALID")

    x = pool(conv(x, params["c1_w"], params["c1_b"]))
    x = pool(conv(x, params["c3_w"], params["c3_b"]))
    x = x.reshape(x.shape[0], -1)
    x = jax.nn.relu(x @ params["fc1_w"].T + params["fc1_b"])
    x = jax.nn.relu(x @ params["fc2_w"].T + params["fc2_b"])
    return x @ params["fc3_w"].T + params["fc3_b"]


if __name__ == "__main__":
    key = jax.random.PRNGKey(0)
    k_x, k_p = jax.random.split(key)
    x = jax.random.normal(k_x, (2, 1, 28, 28), jnp.float32)   # NCHW, like torch
    params = init_lenet_params(k_p)

    prep = prepare_params(params)                 # one-time weight restructuring
    out = jax.block_until_ready(jax.jit(lenet_forward)(prep, x))
    assert out.shape == (2, 10) and out.dtype == jnp.float32
    assert bool(jnp.all(jnp.isfinite(out)))

    ref = jax.block_until_ready(jax.jit(lenet_reference)(params, x))
    assert bool(jnp.allclose(out, ref, rtol=2e-2, atol=2e-2)), \
        "Pallas LeNet output mismatch vs plain-JAX reference"
    print("KERNEL_OK")
</pallas_src>

<mosaic_0001>
module attributes {stable_mosaic.version = 11 : i64} {
  func.func @_lenet_kernel(%arg0: i32, %arg1: memref<2x1x28x28xf32, #tpu.memory_space<vmem>>, %arg2: memref<5x28x144xf32, #tpu.memory_space<vmem>>, %arg3: memref<1x144xf32, #tpu.memory_space<vmem>>, %arg4: memref<2x12x24xf32, #tpu.memory_space<vmem>>, %arg5: memref<2x144x72xf32, #tpu.memory_space<vmem>>, %arg6: memref<5x72x128xf32, #tpu.memory_space<vmem>>, %arg7: memref<1x128xf32, #tpu.memory_space<vmem>>, %arg8: memref<2x4x8xf32, #tpu.memory_space<vmem>>, %arg9: memref<2x128x64xf32, #tpu.memory_space<vmem>>, %arg10: memref<4x64x120xf32, #tpu.memory_space<vmem>>, %arg11: memref<1x120xf32, #tpu.memory_space<vmem>>, %arg12: memref<120x84xf32, #tpu.memory_space<vmem>>, %arg13: memref<1x84xf32, #tpu.memory_space<vmem>>, %arg14: memref<84x10xf32, #tpu.memory_space<vmem>>, %arg15: memref<1x10xf32, #tpu.memory_space<vmem>>, %arg16: memref<1x2x10xf32, #tpu.memory_space<vmem>>) attributes {dimension_semantics = [#tpu.dimension_semantics<parallel>], iteration_bounds = array<i64: 1>, scalar_prefetch = 0 : i64, scratch_operands = 0 : i64, tpu.core_type = #tpu.core_type<tc>, window_params = [{transform_indices = @transform_0, window_bounds = array<i64: 2, 1, 28, 28>}, {pipeline_mode = #tpu.pipeline_mode<synchronous>, transform_indices = @transform_1, window_bounds = array<i64: 5, 28, 144>}, {pipeline_mode = #tpu.pipeline_mode<synchronous>, transform_indices = @transform_2, window_bounds = array<i64: 1, 144>}, {pipeline_mode = #tpu.pipeline_mode<synchronous>, transform_indices = @transform_3, window_bounds = array<i64: 2, 12, 24>}, {pipeline_mode = #tpu.pipeline_mode<synchronous>, transform_indices = @transform_4, window_bounds = array<i64: 2, 144, 72>}, {pipeline_mode = #tpu.pipeline_mode<synchronous>, transform_indices = @transform_5, window_bounds = array<i64: 5, 72, 128>}, {pipeline_mode = #tpu.pipeline_mode<synchronous>, transform_indices = @transform_6, window_bounds = array<i64: 1, 128>}, {pipeline_mode = #tpu.pipeline_mode<synchronous>, transform_indices = @transform_7, window_bounds = array<i64: 2, 4, 8>}, {pipeline_mode = #tpu.pipeline_mode<synchronous>, transform_indices = @transform_8, window_bounds = array<i64: 2, 128, 64>}, {pipeline_mode = #tpu.pipeline_mode<synchronous>, transform_indices = @transform_9, window_bounds = array<i64: 4, 64, 120>}, {pipeline_mode = #tpu.pipeline_mode<synchronous>, transform_indices = @transform_10, window_bounds = array<i64: 1, 120>}, {pipeline_mode = #tpu.pipeline_mode<synchronous>, transform_indices = @transform_11, window_bounds = array<i64: 120, 84>}, {pipeline_mode = #tpu.pipeline_mode<synchronous>, transform_indices = @transform_12, window_bounds = array<i64: 1, 84>}, {pipeline_mode = #tpu.pipeline_mode<synchronous>, transform_indices = @transform_13, window_bounds = array<i64: 84, 10>}, {pipeline_mode = #tpu.pipeline_mode<synchronous>, transform_indices = @transform_14, window_bounds = array<i64: 1, 10>}, {transform_indices = @transform_15, window_bounds = array<i64: 1, 2, 10>}]} {
    %c0 = arith.constant 0 : index
    %c0_0 = arith.constant 0 : index
    %c0_1 = arith.constant 0 : index
    %c0_2 = arith.constant 0 : index
    %0 = vector.load %arg1[%c0, %c0_0, %c0_1, %c0_2] : memref<2x1x28x28xf32, #tpu.memory_space<vmem>>, vector<1x1x28x28xf32>
    %1 = vector.shape_cast %0 : vector<1x1x28x28xf32> to vector<28x28xf32>
    %2 = vector.extract_strided_slice %1 {offsets = [0, 0], sizes = [24, 28], strides = [1, 1]} : vector<28x28xf32> to vector<24x28xf32>
    %c0_3 = arith.constant 0 : index
    %c0_4 = arith.constant 0 : index
    %c0_5 = arith.constant 0 : index
    %3 = vector.load %arg2[%c0_3, %c0_4, %c0_5] : memref<5x28x144xf32, #tpu.memory_space<vmem>>, vector<1x28x144xf32>
    %4 = vector.shape_cast %3 : vector<1x28x144xf32> to vector<28x144xf32>
    %cst = arith.constant dense<0.000000e+00> : vector<24x144xf32>
    %5 = tpu.matmul %2, %4, %cst {dimension_numbers = #tpu.dot_dimension_numbers<[1], [0], [0], [1], [0, 0, 1, 1], [], []>} : vector<24x28xf32>, vector<28x144xf32>, vector<24x144xf32> -> vector<24x144xf32>
    %6 = vector.extract_strided_slice %1 {offsets = [1, 0], sizes = [24, 28], strides = [1, 1]} : vector<28x28xf32> to vector<24x28xf32>
    %c1 = arith.constant 1 : index
    %c0_6 = arith.constant 0 : index
    %c0_7 = arith.constant 0 : index
    %7 = vector.load %arg2[%c1, %c0_6, %c0_7] : memref<5x28x144xf32, #tpu.memory_space<vmem>>, vector<1x28x144xf32>
    %8 = vector.shape_cast %7 : vector<1x28x144xf32> to vector<28x144xf32>
    %cst_8 = arith.constant dense<0.000000e+00> : vector<24x144xf32>
    %9 = tpu.matmul %6, %8, %cst_8 {dimension_numbers = #tpu.dot_dimension_numbers<[1], [0], [0], [1], [0, 0, 1, 1], [], []>} : vector<24x28xf32>, vector<28x144xf32>, vector<24x144xf32> -> vector<24x144xf32>
    %10 = arith.addf %5, %9 : vector<24x144xf32>
    %11 = vector.extract_strided_slice %1 {offsets = [2, 0], sizes = [24, 28], strides = [1, 1]} : vector<28x28xf32> to vector<24x28xf32>
    %c2 = arith.constant 2 : index
    %c0_9 = arith.constant 0 : index
    %c0_10 = arith.constant 0 : index
    %12 = vector.load %arg2[%c2, %c0_9, %c0_10] : memref<5x28x144xf32, #tpu.memory_space<vmem>>, vector<1x28x144xf32>
    %13 = vector.shape_cast %12 : vector<1x28x144xf32> to vector<28x144xf32>
    %cst_11 = arith.constant dense<0.000000e+00> : vector<24x144xf32>
    %14 = tpu.matmul %11, %13, %cst_11 {dimension_numbers = #tpu.dot_dimension_numbers<[1], [0], [0], [1], [0, 0, 1, 1], [], []>} : vector<24x28xf32>, vector<28x144xf32>, vector<24x144xf32> -> vector<24x144xf32>
    %15 = arith.addf %10, %14 : vector<24x144xf32>
    %16 = vector.extract_strided_slice %1 {offsets = [3, 0], sizes = [24, 28], strides = [1, 1]} : vector<28x28xf32> to vector<24x28xf32>
    %c3 = arith.constant 3 : index
    %c0_12 = arith.constant 0 : index
    %c0_13 = arith.constant 0 : index
    %17 = vector.load %arg2[%c3, %c0_12, %c0_13] : memref<5x28x144xf32, #tpu.memory_space<vmem>>, vector<1x28x144xf32>
    %18 = vector.shape_cast %17 : vector<1x28x144xf32> to vector<28x144xf32>
    %cst_14 = arith.constant dense<0.000000e+00> : vector<24x144xf32>
    %19 = tpu.matmul %16, %18, %cst_14 {dimension_numbers = #tpu.dot_dimension_numbers<[1], [0], [0], [1], [0, 0, 1, 1], [], []>} : vector<24x28xf32>, vector<28x144xf32>, vector<24x144xf32> -> vector<24x144xf32>
    %20 = arith.addf %15, %19 : vector<24x144xf32>
    %21 = vector.extract_strided_slice %1 {offsets = [4, 0], sizes = [24, 28], strides = [1, 1]} : vector<28x28xf32> to vector<24x28xf32>
    %c4 = arith.constant 4 : index
    %c0_15 = arith.constant 0 : index
    %c0_16 = arith.constant 0 : index
    %22 = vector.load %arg2[%c4, %c0_15, %c0_16] : memref<5x28x144xf32, #tpu.memory_space<vmem>>, vector<1x28x144xf32>
    %23 = vector.shape_cast %22 : vector<1x28x144xf32> to vector<28x144xf32>
    %cst_17 = arith.constant dense<0.000000e+00> : vector<24x144xf32>
    %24 = tpu.matmul %21, %23, %cst_17 {dimension_numbers = #tpu.dot_dimension_numbers<[1], [0], [0], [1], [0, 0, 1, 1], [], []>} : vector<24x28xf32>, vector<28x144xf32>, vector<24x144xf32> -> vector<24x144xf32>
    %25 = arith.addf %20, %24 : vector<24x144xf32>
    %c0_18 = arith.constant 0 : index
    %c0_19 = arith.constant 0 : index
    %26 = vector.load %arg3[%c0_18, %c0_19] : memref<1x144xf32, #tpu.memory_space<vmem>>, vector<1x144xf32>
    %27 = vector.broadcast %26 : vector<1x144xf32> to vector<24x144xf32>
    %28 = arith.addf %25, %27 : vector<24x144xf32>
    %cst_20 = arith.constant 0.000000e+00 : f32
    %29 = vector.broadcast %cst_20 : f32 to vector<24x144xf32>
    %30 = arith.maximumf %28, %29 : vector<24x144xf32>
    %c0_21 = arith.constant 0 : index
    %c0_22 = arith.constant 0 : index
    %c0_23 = arith.constant 0 : index
    %31 = vector.load %arg4[%c0_21, %c0_22, %c0_23] : memref<2x12x24xf32, #tpu.memory_space<vmem>>, vector<1x12x24xf32>
    %32 = vector.shape_cast %31 : vector<1x12x24xf32> to vector<12x24xf32>
    %cst_24 = arith.constant dense<0.000000e+00> : vector<12x144xf32>
    %33 = tpu.matmul %32, %30, %cst_24 {dimension_numbers = #tpu.dot_dimension_numbers<[1], [0], [0], [1], [0, 0, 1, 1], [], []>} : vector<12x24xf32>, vector<24x144xf32>, vector<12x144xf32> -> vector<12x144xf32>
    %c1_25 = arith.constant 1 : index
    %c0_26 = arith.constant 0 : index
    %c0_27 = arith.constant 0 : index
    %34 = vector.load %arg4[%c1_25, %c0_26, %c0_27] : memref<2x12x24xf32, #tpu.memory_space<vmem>>, vector<1x12x24xf32>
    %35 = vector.shape_cast %34 : vector<1x12x24xf32> to vector<12x24xf32>
    %cst_28 = arith.constant dense<0.000000e+00> : vector<12x144xf32>
    %36 = tpu.matmul %35, %30, %cst_28 {dimension_numbers = #tpu.dot_dimension_numbers<[1], [0], [0], [1], [0, 0, 1, 1], [], []>} : vector<12x24xf32>, vector<24x144xf32>, vector<12x144xf32> -> vector<12x144xf32>
    %37 = arith.maximumf %33, %36 : vector<12x144xf32>
    %c0_29 = arith.constant 0 : index
    %c0_30 = arith.constant 0 : index
    %c0_31 = arith.constant 0 : index
    %38 = vector.load %arg5[%c0_29, %c0_30, %c0_31] : memref<2x144x72xf32, #tpu.memory_space<vmem>>, vector<1x144x72xf32>
    %39 = vector.shape_cast %38 : vector<1x144x72xf32> to vector<144x72xf32>
    %cst_32 = arith.constant dense<0.000000e+00> : vector<12x72xf32>
    %40 = tpu.matmul %37, %39, %cst_32 {dimension_numbers = #tpu.dot_dimension_numbers<[1], [0], [0], [1], [0, 0, 1, 1], [], []>} : vector<12x144xf32>, vector<144x72xf32>, vector<12x72xf32> -> vector<12x72xf32>
    %c1_33 = arith.constant 1 : index
    %c0_34 = arith.constant 0 : index
    %c0_35 = arith.constant 0 : index
    %41 = vector.load %arg5[%c1_33, %c0_34, %c0_35] : memref<2x144x72xf32, #tpu.memory_space<vmem>>, vector<1x144x72xf32>
    %42 = vector.shape_cast %41 : vector<1x144x72xf32> to vector<144x72xf32>
    %cst_36 = arith.constant dense<0.000000e+00> : vector<12x72xf32>
    %43 = tpu.matmul %37, %42, %cst_36 {dimension_numbers = #tpu.dot_dimension_numbers<[1], [0], [0], [1], [0, 0, 1, 1], [], []>} : vector<12x144xf32>, vector<144x72xf32>, vector<12x72xf32> -> vector<12x72xf32>
    %44 = arith.maximumf %40, %43 : vector<12x72xf32>
    %45 = vector.extract_strided_slice %44 {offsets = [0, 0], sizes = [8, 72], strides = [1, 1]} : vector<12x72xf32> to vector<8x72xf32>
    %c0_37 = arith.constant 0 : index
    %c0_38 = arith.constant 0 : index
    %c0_39 = arith.constant 0 : index
    %46 = vector.load %arg6[%c0_37, %c0_38, %c0_39] : memref<5x72x128xf32, #tpu.memory_space<vmem>>, vector<1x72x128xf32>
    %47 = vector.shape_cast %46 : vector<1x72x128xf32> to vector<72x128xf32>
    %cst_40 = arith.constant dense<0.000000e+00> : vector<8x128xf32>
    %48 = tpu.matmul %45, %47, %cst_40 {dimension_numbers = #tpu.dot_dimension_numbers<[1], [0], [0], [1], [0, 0, 1, 1], [], []>} : vector<8x72xf32>, vector<72x128xf32>, vector<8x128xf32> -> vector<8x128xf32>
    %49 = vector.extract_strided_slice %44 {offsets = [1, 0], sizes = [8, 72], strides = [1, 1]} : vector<12x72xf32> to vector<8x72xf32>
    %c1_41 = arith.constant 1 : index
    %c0_42 = arith.constant 0 : index
    %c0_43 = arith.constant 0 : index
    %50 = vector.load %arg6[%c1_41, %c0_42, %c0_43] : memref<5x72x128xf32, #tpu.memory_space<vmem>>, vector<1x72x128xf32>
    %51 = vector.shape_cast %50 : vector<1x72x128xf32> to vector<72x128xf32>
    %cst_44 = arith.constant dense<0.000000e+00> : vector<8x128xf32>
    %52 = tpu.matmul %49, %51, %cst_44 {dimension_numbers = #tpu.dot_dimension_numbers<[1], [0], [0], [1], [0, 0, 1, 1], [], []>} : vector<8x72xf32>, vector<72x128xf32>, vector<8x128xf32> -> vector<8x128xf32>
    %53 = arith.addf %48, %52 : vector<8x128xf32>
    %54 = vector.extract_strided_slice %44 {offsets = [2, 0], sizes = [8, 72], strides = [1, 1]} : vector<12x72xf32> to vector<8x72xf32>
    %c2_45 = arith.constant 2 : index
    %c0_46 = arith.constant 0 : index
    %c0_47 = arith.constant 0 : index
    %55 = vector.load %arg6[%c2_45, %c0_46, %c0_47] : memref<5x72x128xf32, #tpu.memory_space<vmem>>, vector<1x72x128xf32>
    %56 = vector.shape_cast %55 : vector<1x72x128xf32> to vector<72x128xf32>
    %cst_48 = arith.constant dense<0.000000e+00> : vector<8x128xf32>
    %57 = tpu.matmul %54, %56, %cst_48 {dimension_numbers = #tpu.dot_dimension_numbers<[1], [0], [0], [1], [0, 0, 1, 1], [], []>} : vector<8x72xf32>, vector<72x128xf32>, vector<8x128xf32> -> vector<8x128xf32>
    %58 = arith.addf %53, %57 : vector<8x128xf32>
    %59 = vector.extract_strided_slice %44 {offsets = [3, 0], sizes = [8, 72], strides = [1, 1]} : vector<12x72xf32> to vector<8x72xf32>
    %c3_49 = arith.constant 3 : index
    %c0_50 = arith.constant 0 : index
    %c0_51 = arith.constant 0 : index
    %60 = vector.load %arg6[%c3_49, %c0_50, %c0_51] : memref<5x72x128xf32, #tpu.memory_space<vmem>>, vector<1x72x128xf32>
    %61 = vector.shape_cast %60 : vector<1x72x128xf32> to vector<72x128xf32>
    %cst_52 = arith.constant dense<0.000000e+00> : vector<8x128xf32>
    %62 = tpu.matmul %59, %61, %cst_52 {dimension_numbers = #tpu.dot_dimension_numbers<[1], [0], [0], [1], [0, 0, 1, 1], [], []>} : vector<8x72xf32>, vector<72x128xf32>, vector<8x128xf32> -> vector<8x128xf32>
    %63 = arith.addf %58, %62 : vector<8x128xf32>
    %64 = vector.extract_strided_slice %44 {offsets = [4, 0], sizes = [8, 72], strides = [1, 1]} : vector<12x72xf32> to vector<8x72xf32>
    %c4_53 = arith.constant 4 : index
    %c0_54 = arith.constant 0 : index
    %c0_55 = arith.constant 0 : index
    %65 = vector.load %arg6[%c4_53, %c0_54, %c0_55] : memref<5x72x128xf32, #tpu.memory_space<vmem>>, vector<1x72x128xf32>
    %66 = vector.shape_cast %65 : vector<1x72x128xf32> to vector<72x128xf32>
    %cst_56 = arith.constant dense<0.000000e+00> : vector<8x128xf32>
    %67 = tpu.matmul %64, %66, %cst_56 {dimension_numbers = #tpu.dot_dimension_numbers<[1], [0], [0], [1], [0, 0, 1, 1], [], []>} : vector<8x72xf32>, vector<72x128xf32>, vector<8x128xf32> -> vector<8x128xf32>
    %68 = arith.addf %63, %67 : vector<8x128xf32>
    %c0_57 = arith.constant 0 : index
    %c0_58 = arith.constant 0 : index
    %69 = vector.load %arg7[%c0_57, %c0_58] : memref<1x128xf32, #tpu.memory_space<vmem>>, vector<1x128xf32>
    %70 = vector.broadcast %69 : vector<1x128xf32> to vector<8x128xf32>
    %71 = arith.addf %68, %70 : vector<8x128xf32>
    %cst_59 = arith.constant 0.000000e+00 : f32
    %72 = vector.broadcast %cst_59 : f32 to vector<8x128xf32>
    %73 = arith.maximumf %71, %72 : vector<8x128xf32>
    %c0_60 = arith.constant 0 : index
    %c0_61 = arith.constant 0 : index
    %c0_62 = arith.constant 0 : index
    %74 = vector.load %arg8[%c0_60, %c0_61, %c0_62] : memref<2x4x8xf32, #tpu.memory_space<vmem>>, vector<1x4x8xf32>
    %75 = vector.shape_cast %74 : vector<1x4x8xf32> to vector<4x8xf32>
    %cst_63 = arith.constant dense<0.000000e+00> : vector<4x128xf32>
    %76 = tpu.matmul %75, %73, %cst_63 {dimension_numbers = #tpu.dot_dimension_numbers<[1], [0], [0], [1], [0, 0, 1, 1], [], []>} : vector<4x8xf32>, vector<8x128xf32>, vector<4x128xf32> -> vector<4x128xf32>
    %c1_64 = arith.constant 1 : index
    %c0_65 = arith.constant 0 : index
    %c0_66 = arith.constant 0 : index
    %77 = vector.load %arg8[%c1_64, %c0_65, %c0_66] : memref<2x4x8xf32, #tpu.memory_space<vmem>>, vector<1x4x8xf32>
    %78 = vector.shape_cast %77 : vector<1x4x8xf32> to vector<4x8xf32>
    %cst_67 = arith.constant dense<0.000000e+00> : vector<4x128xf32>
    %79 = tpu.matmul %78, %73, %cst_67 {dimension_numbers = #tpu.dot_dimension_numbers<[1], [0], [0], [1], [0, 0, 1, 1], [], []>} : vector<4x8xf32>, vector<8x128xf32>, vector<4x128xf32> -> vector<4x128xf32>
    %80 = arith.maximumf %76, %79 : vector<4x128xf32>
    %c0_68 = arith.constant 0 : index
    %c0_69 = arith.constant 0 : index
    %c0_70 = arith.constant 0 : index
    %81 = vector.load %arg9[%c0_68, %c0_69, %c0_70] : memref<2x128x64xf32, #tpu.memory_space<vmem>>, vector<1x128x64xf32>
    %82 = vector.shape_cast %81 : vector<1x128x64xf32> to vector<128x64xf32>
    %cst_71 = arith.constant dense<0.000000e+00> : vector<4x64xf32>
    %83 = tpu.matmul %80, %82, %cst_71 {dimension_numbers = #tpu.dot_dimension_numbers<[1], [0], [0], [1], [0, 0, 1, 1], [], []>} : vector<4x128xf32>, vector<128x64xf32>, vector<4x64xf32> -> vector<4x64xf32>
    %c1_72 = arith.constant 1 : index
    %c0_73 = arith.constant 0 : index
    %c0_74 = arith.constant 0 : index
    %84 = vector.load %arg9[%c1_72, %c0_73, %c0_74] : memref<2x128x64xf32, #tpu.memory_space<vmem>>, vector<1x128x64xf32>
    %85 = vector.shape_cast %84 : vector<1x128x64xf32> to vector<128x64xf32>
    %cst_75 = arith.constant dense<0.000000e+00> : vector<4x64xf32>
    %86 = tpu.matmul %80, %85, %cst_75 {dimension_numbers = #tpu.dot_dimension_numbers<[1], [0], [0], [1], [0, 0, 1, 1], [], []>} : vector<4x128xf32>, vector<128x64xf32>, vector<4x64xf32> -> vector<4x64xf32>
    %87 = arith.maximumf %83, %86 : vector<4x64xf32>
    %88 = vector.extract_strided_slice %87 {offsets = [0, 0], sizes = [1, 64], strides = [1, 1]} : vector<4x64xf32> to vector<1x64xf32>
    %c0_76 = arith.constant 0 : index
    %c0_77 = arith.constant 0 : index
    %c0_78 = arith.constant 0 : index
    %89 = vector.load %arg10[%c0_76, %c0_77, %c0_78] : memref<4x64x120xf32, #tpu.memory_space<vmem>>, vector<1x64x120xf32>
    %90 = vector.shape_cast %89 : vector<1x64x120xf32> to vector<64x120xf32>
    %cst_79 = arith.constant dense<0.000000e+00> : vector<1x120xf32>
    %91 = tpu.matmul %88, %90, %cst_79 {dimension_numbers = #tpu.dot_dimension_numbers<[1], [0], [0], [1], [0, 0, 1, 1], [], []>} : vector<1x64xf32>, vector<64x120xf32>, vector<1x120xf32> -> vector<1x120xf32>
    %92 = vector.extract_strided_slice %87 {offsets = [1, 0], sizes = [1, 64], strides = [1, 1]} : vector<4x64xf32> to vector<1x64xf32>
    %c1_80 = arith.constant 1 : index
    %c0_81 = arith.constant 0 : index
    %c0_82 = arith.constant 0 : index
    %93 = vector.load %arg10[%c1_80, %c0_81, %c0_82] : memref<4x64x120xf32, #tpu.memory_space<vmem>>, vector<1x64x120xf32>
    %94 = vector.shape_cast %93 : vector<1x64x120xf32> to vector<64x120xf32>
    %cst_83 = arith.constant dense<0.000000e+00> : vector<1x120xf32>
    %95 = tpu.matmul %92, %94, %cst_83 {dimension_numbers = #tpu.dot_dimension_numbers<[1], [0], [0], [1], [0, 0, 1, 1], [], []>} : vector<1x64xf32>, vector<64x120xf32>, vector<1x120xf32> -> vector<1x120xf32>
    %96 = arith.addf %91, %95 : vector<1x120xf32>
    %97 = vector.extract_strided_slice %87 {offsets = [2, 0], sizes = [1, 64], strides = [1, 1]} : vector<4x64xf32> to vector<1x64xf32>
    %c2_84 = arith.constant 2 : index
    %c0_85 = arith.constant 0 : index
    %c0_86 = arith.constant 0 : index
    %98 = vector.load %arg10[%c2_84, %c0_85, %c0_86] : memref<4x64x120xf32, #tpu.memory_space<vmem>>, vector<1x64x120xf32>
    %99 = vector.shape_cast %98 : vector<1x64x120xf32> to vector<64x120xf32>
    %cst_87 = arith.constant dense<0.000000e+00> : vector<1x120xf32>
    %100 = tpu.matmul %97, %99, %cst_87 {dimension_numbers = #tpu.dot_dimension_numbers<[1], [0], [0], [1], [0, 0, 1, 1], [], []>} : vector<1x64xf32>, vector<64x120xf32>, vector<1x120xf32> -> vector<1x120xf32>
    %101 = arith.addf %96, %100 : vector<1x120xf32>
    %102 = vector.extract_strided_slice %87 {offsets = [3, 0], sizes = [1, 64], strides = [1, 1]} : vector<4x64xf32> to vector<1x64xf32>
    %c3_88 = arith.constant 3 : index
    %c0_89 = arith.constant 0 : index
    %c0_90 = arith.constant 0 : index
    %103 = vector.load %arg10[%c3_88, %c0_89, %c0_90] : memref<4x64x120xf32, #tpu.memory_space<vmem>>, vector<1x64x120xf32>
    %104 = vector.shape_cast %103 : vector<1x64x120xf32> to vector<64x120xf32>
    %cst_91 = arith.constant dense<0.000000e+00> : vector<1x120xf32>
    %105 = tpu.matmul %102, %104, %cst_91 {dimension_numbers = #tpu.dot_dimension_numbers<[1], [0], [0], [1], [0, 0, 1, 1], [], []>} : vector<1x64xf32>, vector<64x120xf32>, vector<1x120xf32> -> vector<1x120xf32>
    %106 = arith.addf %101, %105 : vector<1x120xf32>
    %c0_92 = arith.constant 0 : index
    %c0_93 = arith.constant 0 : index
    %107 = vector.load %arg11[%c0_92, %c0_93] : memref<1x120xf32, #tpu.memory_space<vmem>>, vector<1x120xf32>
    %108 = arith.addf %106, %107 : vector<1x120xf32>
    %cst_94 = arith.constant 0.000000e+00 : f32
    %109 = vector.broadcast %cst_94 : f32 to vector<1x120xf32>
    %110 = arith.maximumf %108, %109 : vector<1x120xf32>
    %c0_95 = arith.constant 0 : index
    %c0_96 = arith.constant 0 : index
    %111 = vector.load %arg12[%c0_95, %c0_96] : memref<120x84xf32, #tpu.memory_space<vmem>>, vector<120x84xf32>
    %cst_97 = arith.constant dense<0.000000e+00> : vector<1x84xf32>
    %112 = tpu.matmul %110, %111, %cst_97 {dimension_numbers = #tpu.dot_dimension_numbers<[1], [0], [0], [1], [0, 0, 1, 1], [], []>} : vector<1x120xf32>, vector<120x84xf32>, vector<1x84xf32> -> vector<1x84xf32>
    %c0_98 = arith.constant 0 : index
    %c0_99 = arith.constant 0 : index
    %113 = vector.load %arg13[%c0_98, %c0_99] : memref<1x84xf32, #tpu.memory_space<vmem>>, vector<1x84xf32>
    %114 = arith.addf %112, %113 : vector<1x84xf32>
    %cst_100 = arith.constant 0.000000e+00 : f32
    %115 = vector.broadcast %cst_100 : f32 to vector<1x84xf32>
    %116 = arith.maximumf %114, %115 : vector<1x84xf32>
    %c0_101 = arith.constant 0 : index
    %c0_102 = arith.constant 0 : index
    %117 = vector.load %arg14[%c0_101, %c0_102] : memref<84x10xf32, #tpu.memory_space<vmem>>, vector<84x10xf32>
    %cst_103 = arith.constant dense<0.000000e+00> : vector<1x10xf32>
    %118 = tpu.matmul %116, %117, %cst_103 {dimension_numbers = #tpu.dot_dimension_numbers<[1], [0], [0], [1], [0, 0, 1, 1], [], []>} : vector<1x84xf32>, vector<84x10xf32>, vector<1x10xf32> -> vector<1x10xf32>
    %c0_104 = arith.constant 0 : index
    %c0_105 = arith.constant 0 : index
    %119 = vector.load %arg15[%c0_104, %c0_105] : memref<1x10xf32, #tpu.memory_space<vmem>>, vector<1x10xf32>
    %120 = arith.addf %118, %119 : vector<1x10xf32>
    %121 = vector.shape_cast %120 : vector<1x10xf32> to vector<1x1x10xf32>
    %c0_106 = arith.constant 0 : index
    %c0_107 = arith.constant 0 : index
    %c0_108 = arith.constant 0 : index
    %122 = vector.load %arg16[%c0_106, %c0_107, %c0_108] : memref<1x2x10xf32, #tpu.memory_space<vmem>>, vector<1x1x10xf32>
    tpu.vector_store %arg16[%c0_106, %c0_107, %c0_108], %121 {strides = array<i32>} : memref<1x2x10xf32, #tpu.memory_space<vmem>>, vector<1x1x10xf32>,
    %c1_109 = arith.constant 1 : index
    %c0_110 = arith.constant 0 : index
    %c0_111 = arith.constant 0 : index
    %c0_112 = arith.constant 0 : index
    %123 = vector.load %arg1[%c1_109, %c0_110, %c0_111, %c0_112] : memref<2x1x28x28xf32, #tpu.memory_space<vmem>>, vector<1x1x28x28xf32>
    %124 = vector.shape_cast %123 : vector<1x1x28x28xf32> to vector<28x28xf32>
    %125 = vector.extract_strided_slice %124 {offsets = [0, 0], sizes = [24, 28], strides = [1, 1]} : vector<28x28xf32> to vector<24x28xf32>
    %c0_113 = arith.constant 0 : index
    %c0_114 = arith.constant 0 : index
    %c0_115 = arith.constant 0 : index
    %126 = vector.load %arg2[%c0_113, %c0_114, %c0_115] : memref<5x28x144xf32, #tpu.memory_space<vmem>>, vector<1x28x144xf32>
    %127 = vector.shape_cast %126 : vector<1x28x144xf32> to vector<28x144xf32>
    %cst_116 = arith.constant dense<0.000000e+00> : vector<24x144xf32>
    %128 = tpu.matmul %125, %127, %cst_116 {dimension_numbers = #tpu.dot_dimension_numbers<[1], [0], [0], [1], [0, 0, 1, 1], [], []>} : vector<24x28xf32>, vector<28x144xf32>, vector<24x144xf32> -> vector<24x144xf32>
    %129 = vector.extract_strided_slice %124 {offsets = [1, 0], sizes = [24, 28], strides = [1, 1]} : vector<28x28xf32> to vector<24x28xf32>
    %c1_117 = arith.constant 1 : index
    %c0_118 = arith.constant 0 : index
    %c0_119 = arith.constant 0 : index
    %130 = vector.load %arg2[%c1_117, %c0_118, %c0_119] : memref<5x28x144xf32, #tpu.memory_space<vmem>>, vector<1x28x144xf32>
    %131 = vector.shape_cast %130 : vector<1x28x144xf32> to vector<28x144xf32>
    %cst_120 = arith.constant dense<0.000000e+00> : vector<24x144xf32>
    %132 = tpu.matmul %129, %131, %cst_120 {dimension_numbers = #tpu.dot_dimension_numbers<[1], [0], [0], [1], [0, 0, 1, 1], [], []>} : vector<24x28xf32>, vector<28x144xf32>, vector<24x144xf32> -> vector<24x144xf32>
    %133 = arith.addf %128, %132 : vector<24x144xf32>
    %134 = vector.extract_strided_slice %124 {offsets = [2, 0], sizes = [24, 28], strides = [1, 1]} : vector<28x28xf32> to vector<24x28xf32>
    %c2_121 = arith.constant 2 : index
    %c0_122 = arith.constant 0 : index
    %c0_123 = arith.constant 0 : index
    %135 = vector.load %arg2[%c2_121, %c0_122, %c0_123] : memref<5x28x144xf32, #tpu.memory_space<vmem>>, vector<1x28x144xf32>
    %136 = vector.shape_cast %135 : vector<1x28x144xf32> to vector<28x144xf32>
    %cst_124 = arith.constant dense<0.000000e+00> : vector<24x144xf32>
    %137 = tpu.matmul %134, %136, %cst_124 {dimension_numbers = #tpu.dot_dimension_numbers<[1], [0], [0], [1], [0, 0, 1, 1], [], []>} : vector<24x28xf32>, vector<28x144xf32>, vector<24x144xf32> -> vector<24x144xf32>
    %138 = arith.addf %133, %137 : vector<24x144xf32>
    %139 = vector.extract_strided_slice %124 {offsets = [3, 0], sizes = [24, 28], strides = [1, 1]} : vector<28x28xf32> to vector<24x28xf32>
    %c3_125 = arith.constant 3 : index
    %c0_126 = arith.constant 0 : index
    %c0_127 = arith.constant 0 : index
    %140 = vector.load %arg2[%c3_125, %c0_126, %c0_127] : memref<5x28x144xf32, #tpu.memory_space<vmem>>, vector<1x28x144xf32>
    %141 = vector.shape_cast %140 : vector<1x28x144xf32> to vector<28x144xf32>
    %cst_128 = arith.constant dense<0.000000e+00> : vector<24x144xf32>
    %142 = tpu.matmul %139, %141, %cst_128 {dimension_numbers = #tpu.dot_dimension_numbers<[1], [0], [0], [1], [0, 0, 1, 1], [], []>} : vector<24x28xf32>, vector<28x144xf32>, vector<24x144xf32> -> vector<24x144xf32>
    %143 = arith.addf %138, %142 : vector<24x144xf32>
    %144 = vector.extract_strided_slice %124 {offsets = [4, 0], sizes = [24, 28], strides = [1, 1]} : vector<28x28xf32> to vector<24x28xf32>
    %c4_129 = arith.constant 4 : index
    %c0_130 = arith.constant 0 : index
    %c0_131 = arith.constant 0 : index
    %145 = vector.load %arg2[%c4_129, %c0_130, %c0_131] : memref<5x28x144xf32, #tpu.memory_space<vmem>>, vector<1x28x144xf32>
    %146 = vector.shape_cast %145 : vector<1x28x144xf32> to vector<28x144xf32>
    %cst_132 = arith.constant dense<0.000000e+00> : vector<24x144xf32>
    %147 = tpu.matmul %144, %146, %cst_132 {dimension_numbers = #tpu.dot_dimension_numbers<[1], [0], [0], [1], [0, 0, 1, 1], [], []>} : vector<24x28xf32>, vector<28x144xf32>, vector<24x144xf32> -> vector<24x144xf32>
    %148 = arith.addf %143, %147 : vector<24x144xf32>
    %c0_133 = arith.constant 0 : index
    %c0_134 = arith.constant 0 : index
    %149 = vector.load %arg3[%c0_133, %c0_134] : memref<1x144xf32, #tpu.memory_space<vmem>>, vector<1x144xf32>
    %150 = vector.broadcast %149 : vector<1x144xf32> to vector<24x144xf32>
    %151 = arith.addf %148, %150 : vector<24x144xf32>
    %cst_135 = arith.constant 0.000000e+00 : f32
    %152 = vector.broadcast %cst_135 : f32 to vector<24x144xf32>
    %153 = arith.maximumf %151, %152 : vector<24x144xf32>
    %c0_136 = arith.constant 0 : index
    %c0_137 = arith.constant 0 : index
    %c0_138 = arith.constant 0 : index
    %154 = vector.load %arg4[%c0_136, %c0_137, %c0_138] : memref<2x12x24xf32, #tpu.memory_space<vmem>>, vector<1x12x24xf32>
    %155 = vector.shape_cast %154 : vector<1x12x24xf32> to vector<12x24xf32>
    %cst_139 = arith.constant dense<0.000000e+00> : vector<12x144xf32>
    %156 = tpu.matmul %155, %153, %cst_139 {dimension_numbers = #tpu.dot_dimension_numbers<[1], [0], [0], [1], [0, 0, 1, 1], [], []>} : vector<12x24xf32>, vector<24x144xf32>, vector<12x144xf32> -> vector<12x144xf32>
    %c1_140 = arith.constant 1 : index
    %c0_141 = arith.constant 0 : index
    %c0_142 = arith.constant 0 : index
    %157 = vector.load %arg4[%c1_140, %c0_141, %c0_142] : memref<2x12x24xf32, #tpu.memory_space<vmem>>, vector<1x12x24xf32>
    %158 = vector.shape_cast %157 : vector<1x12x24xf32> to vector<12x24xf32>
    %cst_143 = arith.constant dense<0.000000e+00> : vector<12x144xf32>
    %159 = tpu.matmul %158, %153, %cst_143 {dimension_numbers = #tpu.dot_dimension_numbers<[1], [0], [0], [1], [0, 0, 1, 1], [], []>} : vector<12x24xf32>, vector<24x144xf32>, vector<12x144xf32> -> vector<12x144xf32>
    %160 = arith.maximumf %156, %159 : vector<12x144xf32>
    %c0_144 = arith.constant 0 : index
    %c0_145 = arith.constant 0 : index
    %c0_146 = arith.constant 0 : index
    %161 = vector.load %arg5[%c0_144, %c0_145, %c0_146] : memref<2x144x72xf32, #tpu.memory_space<vmem>>, vector<1x144x72xf32>
    %162 = vector.shape_cast %161 : vector<1x144x72xf32> to vector<144x72xf32>
    %cst_147 = arith.constant dense<0.000000e+00> : vector<12x72xf32>
    %163 = tpu.matmul %160, %162, %cst_147 {dimension_numbers = #tpu.dot_dimension_numbers<[1], [0], [0], [1], [0, 0, 1, 1], [], []>} : vector<12x144xf32>, vector<144x72xf32>, vector<12x72xf32> -> vector<12x72xf32>
    %c1_148 = arith.constant 1 : index
    %c0_149 = arith.constant 0 : index
    %c0_150 = arith.constant 0 : index
    %164 = vector.load %arg5[%c1_148, %c0_149, %c0_150] : memref<2x144x72xf32, #tpu.memory_space<vmem>>, vector<1x144x72xf32>
    %165 = vector.shape_cast %164 : vector<1x144x72xf32> to vector<144x72xf32>
    %cst_151 = arith.constant dense<0.000000e+00> : vector<12x72xf32>
    %166 = tpu.matmul %160, %165, %cst_151 {dimension_numbers = #tpu.dot_dimension_numbers<[1], [0], [0], [1], [0, 0, 1, 1], [], []>} : vector<12x144xf32>, vector<144x72xf32>, vector<12x72xf32> -> vector<12x72xf32>
    %167 = arith.maximumf %163, %166 : vector<12x72xf32>
    %168 = vector.extract_strided_slice %167 {offsets = [0, 0], sizes = [8, 72], strides = [1, 1]} : vector<12x72xf32> to vector<8x72xf32>
    %c0_152 = arith.constant 0 : index
    %c0_153 = arith.constant 0 : index
    %c0_154 = arith.constant 0 : index
    %169 = vector.load %arg6[%c0_152, %c0_153, %c0_154] : memref<5x72x128xf32, #tpu.memory_space<vmem>>, vector<1x72x128xf32>
    %170 = vector.shape_cast %169 : vector<1x72x128xf32> to vector<72x128xf32>
    %cst_155 = arith.constant dense<0.000000e+00> : vector<8x128xf32>
    %171 = tpu.matmul %168, %170, %cst_155 {dimension_numbers = #tpu.dot_dimension_numbers<[1], [0], [0], [1], [0, 0, 1, 1], [], []>} : vector<8x72xf32>, vector<72x128xf32>, vector<8x128xf32> -> vector<8x128xf32>
    %172 = vector.extract_strided_slice %167 {offsets = [1, 0], sizes = [8, 72], strides = [1, 1]} : vector<12x72xf32> to vector<8x72xf32>
    %c1_156 = arith.constant 1 : index
    %c0_157 = arith.constant 0 : index
    %c0_158 = arith.constant 0 : index
    %173 = vector.load %arg6[%c1_156, %c0_157, %c0_158] : memref<5x72x128xf32, #tpu.memory_space<vmem>>, vector<1x72x128xf32>
    %174 = vector.shape_cast %173 : vector<1x72x128xf32> to vector<72x128xf32>
    %cst_159 = arith.constant dense<0.000000e+00> : vector<8x128xf32>
    %175 = tpu.matmul %172, %174, %cst_159 {dimension_numbers = #tpu.dot_dimension_numbers<[1], [0], [0], [1], [0, 0, 1, 1], [], []>} : vector<8x72xf32>, vector<72x128xf32>, vector<8x128xf32> -> vector<8x128xf32>
    %176 = arith.addf %171, %175 : vector<8x128xf32>
    %177 = vector.extract_strided_slice %167 {offsets = [2, 0], sizes = [8, 72], strides = [1, 1]} : vector<12x72xf32> to vector<8x72xf32>
    %c2_160 = arith.constant 2 : index
    %c0_161 = arith.constant 0 : index
    %c0_162 = arith.constant 0 : index
    %178 = vector.load %arg6[%c2_160, %c0_161, %c0_162] : memref<5x72x128xf32, #tpu.memory_space<vmem>>, vector<1x72x128xf32>
    %179 = vector.shape_cast %178 : vector<1x72x128xf32> to vector<72x128xf32>
    %cst_163 = arith.constant dense<0.000000e+00> : vector<8x128xf32>
    %180 = tpu.matmul %177, %179, %cst_163 {dimension_numbers = #tpu.dot_dimension_numbers<[1], [0], [0], [1], [0, 0, 1, 1], [], []>} : vector<8x72xf32>, vector<72x128xf32>, vector<8x128xf32> -> vector<8x128xf32>
    %181 = arith.addf %176, %180 : vector<8x128xf32>
    %182 = vector.extract_strided_slice %167 {offsets = [3, 0], sizes = [8, 72], strides = [1, 1]} : vector<12x72xf32> to vector<8x72xf32>
    %c3_164 = arith.constant 3 : index
    %c0_165 = arith.constant 0 : index
    %c0_166 = arith.constant 0 : index
    %183 = vector.load %arg6[%c3_164, %c0_165, %c0_166] : memref<5x72x128xf32, #tpu.memory_space<vmem>>, vector<1x72x128xf32>
    %184 = vector.shape_cast %183 : vector<1x72x128xf32> to vector<72x128xf32>
    %cst_167 = arith.constant dense<0.000000e+00> : vector<8x128xf32>
    %185 = tpu.matmul %182, %184, %cst_167 {dimension_numbers = #tpu.dot_dimension_numbers<[1], [0], [0], [1], [0, 0, 1, 1], [], []>} : vector<8x72xf32>, vector<72x128xf32>, vector<8x128xf32> -> vector<8x128xf32>
    %186 = arith.addf %181, %185 : vector<8x128xf32>
    %187 = vector.extract_strided_slice %167 {offsets = [4, 0], sizes = [8, 72], strides = [1, 1]} : vector<12x72xf32> to vector<8x72xf32>
    %c4_168 = arith.constant 4 : index
    %c0_169 = arith.constant 0 : index
    %c0_170 = arith.constant 0 : index
    %188 = vector.load %arg6[%c4_168, %c0_169, %c0_170] : memref<5x72x128xf32, #tpu.memory_space<vmem>>, vector<1x72x128xf32>
    %189 = vector.shape_cast %188 : vector<1x72x128xf32> to vector<72x128xf32>
    %cst_171 = arith.constant dense<0.000000e+00> : vector<8x128xf32>
    %190 = tpu.matmul %187, %189, %cst_171 {dimension_numbers = #tpu.dot_dimension_numbers<[1], [0], [0], [1], [0, 0, 1, 1], [], []>} : vector<8x72xf32>, vector<72x128xf32>, vector<8x128xf32> -> vector<8x128xf32>
    %191 = arith.addf %186, %190 : vector<8x128xf32>
    %c0_172 = arith.constant 0 : index
    %c0_173 = arith.constant 0 : index
    %192 = vector.load %arg7[%c0_172, %c0_173] : memref<1x128xf32, #tpu.memory_space<vmem>>, vector<1x128xf32>
    %193 = vector.broadcast %192 : vector<1x128xf32> to vector<8x128xf32>
    %194 = arith.addf %191, %193 : vector<8x128xf32>
    %cst_174 = arith.constant 0.000000e+00 : f32
    %195 = vector.broadcast %cst_174 : f32 to vector<8x128xf32>
    %196 = arith.maximumf %194, %195 : vector<8x128xf32>
    %c0_175 = arith.constant 0 : index
    %c0_176 = arith.constant 0 : index
    %c0_177 = arith.constant 0 : index
    %197 = vector.load %arg8[%c0_175, %c0_176, %c0_177] : memref<2x4x8xf32, #tpu.memory_space<vmem>>, vector<1x4x8xf32>
    %198 = vector.shape_cast %197 : vector<1x4x8xf32> to vector<4x8xf32>
    %cst_178 = arith.constant dense<0.000000e+00> : vector<4x128xf32>
    %199 = tpu.matmul %198, %196, %cst_178 {dimension_numbers = #tpu.dot_dimension_numbers<[1], [0], [0], [1], [0, 0, 1, 1], [], []>} : vector<4x8xf32>, vector<8x128xf32>, vector<4x128xf32> -> vector<4x128xf32>
    %c1_179 = arith.constant 1 : index
    %c0_180 = arith.constant 0 : index
    %c0_181 = arith.constant 0 : index
    %200 = vector.load %arg8[%c1_179, %c0_180, %c0_181] : memref<2x4x8xf32, #tpu.memory_space<vmem>>, vector<1x4x8xf32>
    %201 = vector.shape_cast %200 : vector<1x4x8xf32> to vector<4x8xf32>
    %cst_182 = arith.constant dense<0.000000e+00> : vector<4x128xf32>
    %202 = tpu.matmul %201, %196, %cst_182 {dimension_numbers = #tpu.dot_dimension_numbers<[1], [0], [0], [1], [0, 0, 1, 1], [], []>} : vector<4x8xf32>, vector<8x128xf32>, vector<4x128xf32> -> vector<4x128xf32>
    %203 = arith.maximumf %199, %202 : vector<4x128xf32>
    %c0_183 = arith.constant 0 : index
    %c0_184 = arith.constant 0 : index
    %c0_185 = arith.constant 0 : index
    %204 = vector.load %arg9[%c0_183, %c0_184, %c0_185] : memref<2x128x64xf32, #tpu.memory_space<vmem>>, vector<1x128x64xf32>
    %205 = vector.shape_cast %204 : vector<1x128x64xf32> to vector<128x64xf32>
    %cst_186 = arith.constant dense<0.000000e+00> : vector<4x64xf32>
    %206 = tpu.matmul %203, %205, %cst_186 {dimension_numbers = #tpu.dot_dimension_numbers<[1], [0], [0], [1], [0, 0, 1, 1], [], []>} : vector<4x128xf32>, vector<128x64xf32>, vector<4x64xf32> -> vector<4x64xf32>
    %c1_187 = arith.constant 1 : index
    %c0_188 = arith.constant 0 : index
    %c0_189 = arith.constant 0 : index
    %207 = vector.load %arg9[%c1_187, %c0_188, %c0_189] : memref<2x128x64xf32, #tpu.memory_space<vmem>>, vector<1x128x64xf32>
    %208 = vector.shape_cast %207 : vector<1x128x64xf32> to vector<128x64xf32>
    %cst_190 = arith.constant dense<0.000000e+00> : vector<4x64xf32>
    %209 = tpu.matmul %203, %208, %cst_190 {dimension_numbers = #tpu.dot_dimension_numbers<[1], [0], [0], [1], [0, 0, 1, 1], [], []>} : vector<4x128xf32>, vector<128x64xf32>, vector<4x64xf32> -> vector<4x64xf32>
    %210 = arith.maximumf %206, %209 : vector<4x64xf32>
    %211 = vector.extract_strided_slice %210 {offsets = [0, 0], sizes = [1, 64], strides = [1, 1]} : vector<4x64xf32> to vector<1x64xf32>
    %c0_191 = arith.constant 0 : index
    %c0_192 = arith.constant 0 : index
    %c0_193 = arith.constant 0 : index
    %212 = vector.load %arg10[%c0_191, %c0_192, %c0_193] : memref<4x64x120xf32, #tpu.memory_space<vmem>>, vector<1x64x120xf32>
    %213 = vector.shape_cast %212 : vector<1x64x120xf32> to vector<64x120xf32>
    %cst_194 = arith.constant dense<0.000000e+00> : vector<1x120xf32>
    %214 = tpu.matmul %211, %213, %cst_194 {dimension_numbers = #tpu.dot_dimension_numbers<[1], [0], [0], [1], [0, 0, 1, 1], [], []>} : vector<1x64xf32>, vector<64x120xf32>, vector<1x120xf32> -> vector<1x120xf32>
    %215 = vector.extract_strided_slice %210 {offsets = [1, 0], sizes = [1, 64], strides = [1, 1]} : vector<4x64xf32> to vector<1x64xf32>
    %c1_195 = arith.constant 1 : index
    %c0_196 = arith.constant 0 : index
    %c0_197 = arith.constant 0 : index
    %216 = vector.load %arg10[%c1_195, %c0_196, %c0_197] : memref<4x64x120xf32, #tpu.memory_space<vmem>>, vector<1x64x120xf32>
    %217 = vector.shape_cast %216 : vector<1x64x120xf32> to vector<64x120xf32>
    %cst_198 = arith.constant dense<0.000000e+00> : vector<1x120xf32>
    %218 = tpu.matmul %215, %217, %cst_198 {dimension_numbers = #tpu.dot_dimension_numbers<[1], [0], [0], [1], [0, 0, 1, 1], [], []>} : vector<1x64xf32>, vector<64x120xf32>, vector<1x120xf32> -> vector<1x120xf32>
    %219 = arith.addf %214, %218 : vector<1x120xf32>
    %220 = vector.extract_strided_slice %210 {offsets = [2, 0], sizes = [1, 64], strides = [1, 1]} : vector<4x64xf32> to vector<1x64xf32>
    %c2_199 = arith.constant 2 : index
    %c0_200 = arith.constant 0 : index
    %c0_201 = arith.constant 0 : index
    %221 = vector.load %arg10[%c2_199, %c0_200, %c0_201] : memref<4x64x120xf32, #tpu.memory_space<vmem>>, vector<1x64x120xf32>
    %222 = vector.shape_cast %221 : vector<1x64x120xf32> to vector<64x120xf32>
    %cst_202 = arith.constant dense<0.000000e+00> : vector<1x120xf32>
    %223 = tpu.matmul %220, %222, %cst_202 {dimension_numbers = #tpu.dot_dimension_numbers<[1], [0], [0], [1], [0, 0, 1, 1], [], []>} : vector<1x64xf32>, vector<64x120xf32>, vector<1x120xf32> -> vector<1x120xf32>
    %224 = arith.addf %219, %223 : vector<1x120xf32>
    %225 = vector.extract_strided_slice %210 {offsets = [3, 0], sizes = [1, 64], strides = [1, 1]} : vector<4x64xf32> to vector<1x64xf32>
    %c3_203 = arith.constant 3 : index
    %c0_204 = arith.constant 0 : index
    %c0_205 = arith.constant 0 : index
    %226 = vector.load %arg10[%c3_203, %c0_204, %c0_205] : memref<4x64x120xf32, #tpu.memory_space<vmem>>, vector<1x64x120xf32>
    %227 = vector.shape_cast %226 : vector<1x64x120xf32> to vector<64x120xf32>
    %cst_206 = arith.constant dense<0.000000e+00> : vector<1x120xf32>
    %228 = tpu.matmul %225, %227, %cst_206 {dimension_numbers = #tpu.dot_dimension_numbers<[1], [0], [0], [1], [0, 0, 1, 1], [], []>} : vector<1x64xf32>, vector<64x120xf32>, vector<1x120xf32> -> vector<1x120xf32>
    %229 = arith.addf %224, %228 : vector<1x120xf32>
    %c0_207 = arith.constant 0 : index
    %c0_208 = arith.constant 0 : index
    %230 = vector.load %arg11[%c0_207, %c0_208] : memref<1x120xf32, #tpu.memory_space<vmem>>, vector<1x120xf32>
    %231 = arith.addf %229, %230 : vector<1x120xf32>
    %cst_209 = arith.constant 0.000000e+00 : f32
    %232 = vector.broadcast %cst_209 : f32 to vector<1x120xf32>
    %233 = arith.maximumf %231, %232 : vector<1x120xf32>
    %c0_210 = arith.constant 0 : index
    %c0_211 = arith.constant 0 : index
    %234 = vector.load %arg12[%c0_210, %c0_211] : memref<120x84xf32, #tpu.memory_space<vmem>>, vector<120x84xf32>
    %cst_212 = arith.constant dense<0.000000e+00> : vector<1x84xf32>
    %235 = tpu.matmul %233, %234, %cst_212 {dimension_numbers = #tpu.dot_dimension_numbers<[1], [0], [0], [1], [0, 0, 1, 1], [], []>} : vector<1x120xf32>, vector<120x84xf32>, vector<1x84xf32> -> vector<1x84xf32>
    %c0_213 = arith.constant 0 : index
    %c0_214 = arith.constant 0 : index
    %236 = vector.load %arg13[%c0_213, %c0_214] : memref<1x84xf32, #tpu.memory_space<vmem>>, vector<1x84xf32>
    %237 = arith.addf %235, %236 : vector<1x84xf32>
    %cst_215 = arith.constant 0.000000e+00 : f32
    %238 = vector.broadcast %cst_215 : f32 to vector<1x84xf32>
    %239 = arith.maximumf %237, %238 : vector<1x84xf32>
    %c0_216 = arith.constant 0 : index
    %c0_217 = arith.constant 0 : index
    %240 = vector.load %arg14[%c0_216, %c0_217] : memref<84x10xf32, #tpu.memory_space<vmem>>, vector<84x10xf32>
    %cst_218 = arith.constant dense<0.000000e+00> : vector<1x10xf32>
    %241 = tpu.matmul %239, %240, %cst_218 {dimension_numbers = #tpu.dot_dimension_numbers<[1], [0], [0], [1], [0, 0, 1, 1], [], []>} : vector<1x84xf32>, vector<84x10xf32>, vector<1x10xf32> -> vector<1x10xf32>
    %c0_219 = arith.constant 0 : index
    %c0_220 = arith.constant 0 : index
    %242 = vector.load %arg15[%c0_219, %c0_220] : memref<1x10xf32, #tpu.memory_space<vmem>>, vector<1x10xf32>
    %243 = arith.addf %241, %242 : vector<1x10xf32>
    %244 = vector.shape_cast %243 : vector<1x10xf32> to vector<1x1x10xf32>
    %c0_221 = arith.constant 0 : index
    %c1_222 = arith.constant 1 : index
    %c0_223 = arith.constant 0 : index
    %245 = vector.load %arg16[%c0_221, %c1_222, %c0_223] : memref<1x2x10xf32, #tpu.memory_space<vmem>>, vector<1x1x10xf32>
    tpu.vector_store %arg16[%c0_221, %c1_222, %c0_223], %244 {strides = array<i32>} : memref<1x2x10xf32, #tpu.memory_space<vmem>>, vector<1x1x10xf32>,
    return
  }
  func.func @transform_0(%arg0: i32) -> (i32, i32, i32, i32) {
    %c0_i32 = arith.constant 0 : i32
    %c0_i32_0 = arith.constant 0 : i32
    %c0_i32_1 = arith.constant 0 : i32
    %c0_i32_2 = arith.constant 0 : i32
    return %arg0, %c0_i32, %c0_i32_0, %c0_i32_1 : i32, i32, i32, i32
  }
  func.func @transform_1(%arg0: i32) -> (i32, i32, i32) {
    %c0_i32 = arith.constant 0 : i32
    %c0_i32_0 = arith.constant 0 : i32
    %c0_i32_1 = arith.constant 0 : i32
    %c0_i32_2 = arith.constant 0 : i32
    return %c0_i32, %c0_i32_0, %c0_i32_1 : i32, i32, i32
  }
  func.func @transform_2(%arg0: i32) -> (i32, i32) {
    %c0_i32 = arith.constant 0 : i32
    %c0_i32_0 = arith.constant 0 : i32
    %c0_i32_1 = arith.constant 0 : i32
    return %c0_i32, %c0_i32_0 : i32, i32
  }
  func.func @transform_3(%arg0: i32) -> (i32, i32, i32) {
    %c0_i32 = arith.constant 0 : i32
    %c0_i32_0 = arith.constant 0 : i32
    %c0_i32_1 = arith.constant 0 : i32
    %c0_i32_2 = arith.constant 0 : i32
    return %c0_i32, %c0_i32_0, %c0_i32_1 : i32, i32, i32
  }
  func.func @transform_4(%arg0: i32) -> (i32, i32, i32) {
    %c0_i32 = arith.constant 0 : i32
    %c0_i32_0 = arith.constant 0 : i32
    %c0_i32_1 = arith.constant 0 : i32
    %c0_i32_2 = arith.constant 0 : i32
    return %c0_i32, %c0_i32_0, %c0_i32_1 : i32, i32, i32
  }
  func.func @transform_5(%arg0: i32) -> (i32, i32, i32) {
    %c0_i32 = arith.constant 0 : i32
    %c0_i32_0 = arith.constant 0 : i32
    %c0_i32_1 = arith.constant 0 : i32
    %c0_i32_2 = arith.constant 0 : i32
    return %c0_i32, %c0_i32_0, %c0_i32_1 : i32, i32, i32
  }
  func.func @transform_6(%arg0: i32) -> (i32, i32) {
    %c0_i32 = arith.constant 0 : i32
    %c0_i32_0 = arith.constant 0 : i32
    %c0_i32_1 = arith.constant 0 : i32
    return %c0_i32, %c0_i32_0 : i32, i32
  }
  func.func @transform_7(%arg0: i32) -> (i32, i32, i32) {
    %c0_i32 = arith.constant 0 : i32
    %c0_i32_0 = arith.constant 0 : i32
    %c0_i32_1 = arith.constant 0 : i32
    %c0_i32_2 = arith.constant 0 : i32
    return %c0_i32, %c0_i32_0, %c0_i32_1 : i32, i32, i32
  }
  func.func @transform_8(%arg0: i32) -> (i32, i32, i32) {
    %c0_i32 = arith.constant 0 : i32
    %c0_i32_0 = arith.constant 0 : i32
    %c0_i32_1 = arith.constant 0 : i32
    %c0_i32_2 = arith.constant 0 : i32
    return %c0_i32, %c0_i32_0, %c0_i32_1 : i32, i32, i32
  }
  func.func @transform_9(%arg0: i32) -> (i32, i32, i32) {
    %c0_i32 = arith.constant 0 : i32
    %c0_i32_0 = arith.constant 0 : i32
    %c0_i32_1 = arith.constant 0 : i32
    %c0_i32_2 = arith.constant 0 : i32
    return %c0_i32, %c0_i32_0, %c0_i32_1 : i32, i32, i32
  }
  func.func @transform_10(%arg0: i32) -> (i32, i32) {
    %c0_i32 = arith.constant 0 : i32
    %c0_i32_0 = arith.constant 0 : i32
    %c0_i32_1 = arith.constant 0 : i32
    return %c0_i32, %c0_i32_0 : i32, i32
  }
  func.func @transform_11(%arg0: i32) -> (i32, i32) {
    %c0_i32 = arith.constant 0 : i32
    %c0_i32_0 = arith.constant 0 : i32
    %c0_i32_1 = arith.constant 0 : i32
    return %c0_i32, %c0_i32_0 : i32, i32
  }
  func.func @transform_12(%arg0: i32) -> (i32, i32) {
    %c0_i32 = arith.constant 0 : i32
    %c0_i32_0 = arith.constant 0 : i32
    %c0_i32_1 = arith.constant 0 : i32
    return %c0_i32, %c0_i32_0 : i32, i32
  }
  func.func @transform_13(%arg0: i32) -> (i32, i32) {
    %c0_i32 = arith.constant 0 : i32
    %c0_i32_0 = arith.constant 0 : i32
    %c0_i32_1 = arith.constant 0 : i32
    return %c0_i32, %c0_i32_0 : i32, i32
  }
  func.func @transform_14(%arg0: i32) -> (i32, i32) {
    %c0_i32 = arith.constant 0 : i32
    %c0_i32_0 = arith.constant 0 : i32
    %c0_i32_1 = arith.constant 0 : i32
    return %c0_i32, %c0_i32_0 : i32, i32
  }
  func.func @transform_15(%arg0: i32) -> (i32, i32, i32) {
    %c0_i32 = arith.constant 0 : i32
    %c0_i32_0 = arith.constant 0 : i32
    %c0_i32_1 = arith.constant 0 : i32
    return %arg0, %c0_i32, %c0_i32_0 : i32, i32, i32
  }
}

</mosaic_0001>

<llo_original>
// kernel: lenet_forward.1
$region0: #{lenet_forward.1}
  #allocation0 [shape = 'u32[]', space=smem, size = 0x4, offset = 0x4, fixed_abs, tag = 'smem constant byte address 0x4 - core index']
  #allocation1 [shape = 'u32[144,128]{1,0:T(1,128)}', space=vmem, size = 0x12000, scoped, tag = 'internal scratch']
  %s0 = inlined_call_operand.vmem [shape: f32[2,1,28,28], index: 0, kind: input, shape index: {}]
  %s1 = inlined_call_operand.vmem [shape: f32[5,28,144], index: 1, kind: input, shape index: {}]
  %s2 = inlined_call_operand.hbm [shape: f32[1,144], index: 2, kind: input, shape index: {}]
  %s3 = inlined_call_operand.vmem [shape: f32[2,12,24], index: 3, kind: input, shape index: {}]
  %s4 = inlined_call_operand.hbm [shape: f32[2,144,72], index: 4, kind: input, shape index: {}]
  %s5 = inlined_call_operand.vmem [shape: f32[5,72,128], index: 5, kind: input, shape index: {}]
  %s6 = inlined_call_operand.vmem [shape: f32[1,128], index: 6, kind: input, shape index: {}]
  %s7 = inlined_call_operand.hbm [shape: f32[2,4,8], index: 7, kind: input, shape index: {}]
  %s8 = inlined_call_operand.vmem [shape: f32[2,128,64], index: 8, kind: input, shape index: {}]
  %s9 = inlined_call_operand.hbm [shape: f32[4,64,120], index: 9, kind: input, shape index: {}]
  %s10 = inlined_call_operand.hbm [shape: f32[1,120], index: 10, kind: input, shape index: {}]
  %s11 = inlined_call_operand.vmem [shape: f32[120,84], index: 11, kind: input, shape index: {}]
  %s12 = inlined_call_operand.hbm [shape: f32[1,84], index: 12, kind: input, shape index: {}]
  %s13 = inlined_call_operand.vmem [shape: f32[84,10], index: 13, kind: input, shape index: {}]
  %s14 = inlined_call_operand.hbm [shape: f32[1,10], index: 14, kind: input, shape index: {}]
  %s15 = inlined_call_operand.hbm [shape: f32[1,2,10], index: 15, kind: output, shape index: {}]
  %s16 = sld [smem:[#allocation0]]
  $region98: #{lenet_forward.1} parent=0
    _
  %s18 = ssub.s32 1, %s16
  %s19 = scalar_select 0, %s18, %s16
  $region1: #{lenet_forward.1} parent=0
    #allocation2 [shape = 'u8[1024]{0}', space=vmem, size = 0x400, scoped, tag = 'input window, operand 2, single buffered']
    #allocation3 [shape = 's32[1]{0}', space=sflag, size = 0x4, scoped, tag = 'scoped memory for lenet_forward.1']
    #allocation4 [shape = 's32[1]{0}', space=sflag, size = 0x4, scoped, tag = 'scoped memory for lenet_forward.1']
    #allocation5 [shape = 'u8[147456]{0}', space=vmem, size = 0x24000, scoped, tag = 'input window, operand 4, single buffered']
    #allocation6 [shape = 's32[1]{0}', space=sflag, size = 0x4, scoped, tag = 'scoped memory for lenet_forward.1']
    #allocation7 [shape = 'u8[4096]{0}', space=vmem, size = 0x1000, scoped, tag = 'input window, operand 7, single buffered']
    #allocation8 [shape = 'u8[131072]{0}', space=vmem, size = 0x20000, scoped, tag = 'input window, operand 9, single buffered']
    #allocation9 [shape = 's32[1]{0}', space=sflag, size = 0x4, scoped, tag = 'scoped memory for lenet_forward.1']
    #allocation10 [shape = 'u8[512]{0}', space=vmem, size = 0x400, scoped, tag = 'input window, operand 10, single buffered']
    #allocation11 [shape = 'u8[512]{0}', space=vmem, size = 0x400, scoped, tag = 'input window, operand 12, single buffered']
    #allocation12 [shape = 's32[1]{0}', space=sflag, size = 0x4, scoped, tag = 'scoped memory for lenet_forward.1']
    #allocation13 [shape = 'u8[512]{0}', space=vmem, size = 0x400, scoped, tag = 'input window, operand 14, single buffered']
    #allocation14 [shape = 'u8[1024]{0}', space=vmem, size = 0x400, scoped, tag = 'output window, operand 0, single buffered']
    %20 = vsyncpa [#allocation3], 0
    %21 = vsyncpa [#allocation6], 0
    %22 = vsyncpa [#allocation9], 0
    %23 = vsyncpa [#allocation12], 0
    %24 = vsyncpa [#allocation4], 0
    // Predicated region
    $region2: #{lenet_forward.1} parent=1 // pred_check
      _
    $region3: #{lenet_forward.1} parent=1 // pred_check_branch
      %26 = sbr.rel (0) target = $region5
    $region4: #{lenet_forward.1} parent=1 // pred_region
      _
    $region5: #{lenet_forward.1} parent=1 // pred_fallthru
      _
    // Predicated region
    $region6: #{lenet_forward.1} parent=1 // pred_check
      _
    $region7: #{lenet_forward.1} parent=1 // pred_check_branch
      %28 = sbr.rel (0) target = $region9
    $region8: #{lenet_forward.1} parent=1 // pred_region
      _
    $region9: #{lenet_forward.1} parent=1 // pred_fallthru
      _
    // Predicated region
    $region10: #{lenet_forward.1} parent=1 // pred_check
      _
    $region11: #{lenet_forward.1} parent=1 // pred_check_branch
      %30 = sbr.rel (0) target = $region13
    $region12: #{lenet_forward.1} parent=1 // pred_region
      %s32 = ssub.s32 32, 32
      %33 = vsyncadd [#allocation3], %s32
      %s35 = sshll.u32 [#allocation2], 4
      %s36 = int_to_ptr.vmem [resolvable:$true] %s35
      %38 = dma.hbm_to_vmem [thread:$0]  %s2, 32, %s36, [#allocation3]
    $region13: #{lenet_forward.1} parent=1 // pred_fallthru
      _
    // Predicated region
    $region14: #{lenet_forward.1} parent=1 // pred_check
      _
    $region15: #{lenet_forward.1} parent=1 // pred_check_branch
      %40 = sbr.rel (0) target = $region17
    $region16: #{lenet_forward.1} parent=1 // pred_region
      _
    $region17: #{lenet_forward.1} parent=1 // pred_fallthru
      _
    // Predicated region
    $region18: #{lenet_forward.1} parent=1 // pred_check
      _
    $region19: #{lenet_forward.1} parent=1 // pred_check_branch
      %42 = sbr.rel (0) target = $region21
    $region20: #{lenet_forward.1} parent=1 // pred_region
      %s44 = ssub.s32 4608, 4608
      %45 = vsyncadd [#allocation6], %s44
      %s46 = sshll.u32 [#allocation5], 4
      %s47 = int_to_ptr.vmem [resolvable:$true] %s46
      %52 = dma.hbm_to_vmem [thread:$0]  %s4, 4608, %s47, [#allocation6], 128, 128, 8
    $region21: #{lenet_forward.1} parent=1 // pred_fallthru
      _
    // Predicated region
    $region22: #{lenet_forward.1} parent=1 // pred_check
      _
    $region23: #{lenet_forward.1} parent=1 // pred_check_branch
      %54 = sbr.rel (0) target = $region25
    $region24: #{lenet_forward.1} parent=1 // pred_region
      _
    $region25: #{lenet_forward.1} parent=1 // pred_fallthru
      _
    // Predicated region
    $region26: #{lenet_forward.1} parent=1 // pred_check
      _
    $region27: #{lenet_forward.1} parent=1 // pred_check_branch
      %56 = sbr.rel (0) target = $region29
    $region28: #{lenet_forward.1} parent=1 // pred_region
      _
    $region29: #{lenet_forward.1} parent=1 // pred_fallthru
      _
    // Predicated region
    $region30: #{lenet_forward.1} parent=1 // pred_check
      _
    $region31: #{lenet_forward.1} parent=1 // pred_check_branch
      %58 = sbr.rel (0) target = $region33
    $region32: #{lenet_forward.1} parent=1 // pred_region
      %s60 = ssub.s32 128, 128
      %61 = vsyncadd [#allocation6], %s60
      %s62 = sshll.u32 [#allocation7], 4
      %s63 = int_to_ptr.vmem [resolvable:$true] %s62
      %68 = dma.hbm_to_vmem [thread:$0]  %s7, 128, %s63, [#allocation6], 64, 64, 4
    $region33: #{lenet_forward.1} parent=1 // pred_fallthru
      _
    // Predicated region
    $region34: #{lenet_forward.1} parent=1 // pred_check
      _
    $region35: #{lenet_forward.1} parent=1 // pred_check_branch
      %70 = sbr.rel (0) target = $region37
    $region36: #{lenet_forward.1} parent=1 // pred_region
      _
    $region37: #{lenet_forward.1} parent=1 // pred_fallthru
      _
    // Predicated region
    $region38: #{lenet_forward.1} parent=1 // pred_check
      _
    $region39: #{lenet_forward.1} parent=1 // pred_check_branch
      %72 = sbr.rel (0) target = $region41
    $region40: #{lenet_forward.1} parent=1 // pred_region
      %s74 = ssub.s32 4096, 4096
      %75 = vsyncadd [#allocation9], %s74
      %s76 = sshll.u32 [#allocation8], 4
      %s77 = int_to_ptr.vmem [resolvable:$true] %s76
      %82 = dma.hbm_to_vmem [thread:$0]  %s9, 4096, %s77, [#allocation9], 128, 128, 8
    $region41: #{lenet_forward.1} parent=1 // pred_fallthru
      _
    // Predicated region
    $region42: #{lenet_forward.1} parent=1 // pred_check
      _
    $region43: #{lenet_forward.1} parent=1 // pred_check_branch
      %84 = sbr.rel (0) target = $region45
    $region44: #{lenet_forward.1} parent=1 // pred_region
      %s86 = ssub.s32 16, 16
      %87 = vsyncadd [#allocation9], %s86
      %s89 = sshll.u32 [#allocation10], 4
      %s90 = int_to_ptr.vmem [resolvable:$true] %s89
      %92 = dma.hbm_to_vmem [thread:$0]  %s10, 16, %s90, [#allocation9]
    $region45: #{lenet_forward.1} parent=1 // pred_fallthru
      _
    // Predicated region
    $region46: #{lenet_forward.1} parent=1 // pred_check
      _
    $region47: #{lenet_forward.1} parent=1 // pred_check_branch
      %94 = sbr.rel (0) target = $region49
    $region48: #{lenet_forward.1} parent=1 // pred_region
      _
    $region49: #{lenet_forward.1} parent=1 // pred_fallthru
      _
    // Predicated region
    $region50: #{lenet_forward.1} parent=1 // pred_check
      _
    $region51: #{lenet_forward.1} parent=1 // pred_check_branch
      %96 = sbr.rel (0) target = $region53
    $region52: #{lenet_forward.1} parent=1 // pred_region
      %s98 = ssub.s32 16, 16
      %99 = vsyncadd [#allocation12], %s98
      %s101 = sshll.u32 [#allocation11], 4
      %s102 = int_to_ptr.vmem [resolvable:$true] %s101
      %104 = dma.hbm_to_vmem [thread:$0]  %s12, 16, %s102, [#allocation12]
    $region53: #{lenet_forward.1} parent=1 // pred_fallthru
      _
    // Predicated region
    $region54: #{lenet_forward.1} parent=1 // pred_check
      _
    $region55: #{lenet_forward.1} parent=1 // pred_check_branch
      %106 = sbr.rel (0) target = $region57
    $region56: #{lenet_forward.1} parent=1 // pred_region
      _
    $region57: #{lenet_forward.1} parent=1 // pred_fallthru
      _
    // Predicated region
    $region58: #{lenet_forward.1} parent=1 // pred_check
      _
    $region59: #{lenet_forward.1} parent=1 // pred_check_branch
      %108 = sbr.rel (0) target = $region61
    $region60: #{lenet_forward.1} parent=1 // pred_region
      %s110 = ssub.s32 16, 16
      %111 = vsyncadd [#allocation12], %s110
      %s113 = sshll.u32 [#allocation13], 4
      %s114 = int_to_ptr.vmem [resolvable:$true] %s113
      %116 = dma.hbm_to_vmem [thread:$0]  %s14, 16, %s114, [#allocation12]
    $region61: #{lenet_forward.1} parent=1 // pred_fallthru
      _
    // Predicated region
    $region62: #{lenet_forward.1} parent=1 // pred_check
      _
    $region63: #{lenet_forward.1} parent=1 // pred_check_branch
      %118 = sbr.rel (0) target = $region65
    $region64: #{lenet_forward.1} parent=1 // pred_region
      %119 = dma.done [#allocation3], 32
    $region65: #{lenet_forward.1} parent=1 // pred_fallthru
      _
    // Predicated region
    $region66: #{lenet_forward.1} parent=1 // pred_check
      _
    $region67: #{lenet_forward.1} parent=1 // pred_check_branch
      %121 = sbr.rel (0) target = $region69
    $region68: #{lenet_forward.1} parent=1 // pred_region
      %122 = dma.done [#allocation6], 4608
    $region69: #{lenet_forward.1} parent=1 // pred_fallthru
      _
    // Predicated region
    $region70: #{lenet_forward.1} parent=1 // pred_check
      _
    $region71: #{lenet_forward.1} parent=1 // pred_check_branch
      %124 = sbr.rel (0) target = $region73
    $region72: #{lenet_forward.1} parent=1 // pred_region
      %125 = dma.done [#allocation6], 128
    $region73: #{lenet_forward.1} parent=1 // pred_fallthru
      _
    // Predicated region
    $region74: #{lenet_forward.1} parent=1 // pred_check
      _
    $region75: #{lenet_forward.1} parent=1 // pred_check_branch
      %127 = sbr.rel (0) target = $region77
    $region76: #{lenet_forward.1} parent=1 // pred_region
      %128 = dma.done [#allocation9], 4096
    $region77: #{lenet_forward.1} parent=1 // pred_fallthru
      _
    // Predicated region
    $region78: #{lenet_forward.1} parent=1 // pred_check
      _
    $region79: #{lenet_forward.1} parent=1 // pred_check_branch
      %130 = sbr.rel (0) target = $region81
    $region80: #{lenet_forward.1} parent=1 // pred_region
      %131 = dma.done [#allocation9], 16
    $region81: #{lenet_forward.1} parent=1 // pred_fallthru
      _
    // Predicated region
    $region82: #{lenet_forward.1} parent=1 // pred_check
      _
    $region83: #{lenet_forward.1} parent=1 // pred_check_branch
      %133 = sbr.rel (0) target = $region85
    $region84: #{lenet_forward.1} parent=1 // pred_region
      %134 = dma.done [#allocation12], 16
    $region85: #{lenet_forward.1} parent=1 // pred_fallthru
      _
    // Predicated region
    $region86: #{lenet_forward.1} parent=1 // pred_check
      _
    $region87: #{lenet_forward.1} parent=1 // pred_check_branch
      %136 = sbr.rel (0) target = $region89
    $region88: #{lenet_forward.1} parent=1 // pred_region
      %137 = dma.done [#allocation12], 16
    $region89: #{lenet_forward.1} parent=1 // pred_fallthru
      _
    %v138 = vld [vmem:[%s0] sm:$0xff]
    %v139 = vld [vmem:[%s0 + $0x8] sm:$0xff]
    %v140 = vld [vmem:[%s0 + $0x10] sm:$0xff]
    %v141 = vld [vmem:[%s0 + $0x18] sm:$0xf]
    %v142 = vld [vmem:[%s1] sm:$0xff]
    %v143 = vld [vmem:[%s1 + $0x8] sm:$0xff]
    %v144 = vld [vmem:[%s1 + $0x10] sm:$0xff]
    %v145 = vld [vmem:[%s1 + $0x18] sm:$0xff]
    %v146 = vld [vmem:[%s1 + $0x20] sm:$0xff]
    %v147 = vld [vmem:[%s1 + $0x28] sm:$0xff]
    %v148 = vld [vmem:[%s1 + $0x30] sm:$0xf]
    %v149 = vld [vmem:[%s1 + $0x38] sm:$0xf]
    %s150 = scalar_lea.vmem %s1, 64
    %v151 = vld [vmem:[%s150] sm:$0xff]
    %v152 = vld [vmem:[%s150 + $0x8] sm:$0xff]
    %v153 = vld [vmem:[%s150 + $0x10] sm:$0xff]
    %v154 = vld [vmem:[%s150 + $0x18] sm:$0xff]
    %v155 = vld [vmem:[%s150 + $0x20] sm:$0xff]
    %v156 = vld [vmem:[%s150 + $0x28] sm:$0xff]
    %v157 = vld [vmem:[%s150 + $0x30] sm:$0xf]
    %v158 = vld [vmem:[%s150 + $0x38] sm:$0xf]
    %vm163 = vcmask 1046528
    %v164 = vrot.slane %v138, 1
    %v165 = vrot.slane %v139, 1
    %v166 = vsel %vm163, %v164, %v165
    %v167 = vrot.slane %v140, 1
    %v168 = vsel %vm163, %v165, %v167
    %v169 = vrot.slane %v141, 1
    %v170 = vsel %vm163, %v167, %v169
    %vm171 = vcmask 228352
    %v172 = vsel %vm171, %v166, 0
    %v174 = vsel %vm171, %v168, 0
    %v176 = vsel %vm171, %v170, 0
    %vm178 = vcmask 1043456
    %v180 = vsel %vm178, %v157, 0
    %v183 = vsel %vm178, %v158, 0
    %185 = vmatprep.subr.mxu0 %v152
    %186 = vmatpush1.msra.mxu0 %v151
    %187 = vmatprep.subr.mxu0 %v154
    %188 = vmatpush1.msra.mxu0 %v153
    %189 = vmatprep.subr.mxu0 %v156
    %190 = vmatpush1.msra.mxu0 %v155
    %191 = vmatprep.subr.mxu0 %v183
    %192 = vmatpush1.msra.mxu0 %v180
    %193 = vmatprep.subr.mxu0 0.0
    %194 = vmatpush1.msra.mxu0 0.0
    %195 = vmatprep.subr.mxu0 0.0
    %196 = vmatpush1.msra.mxu0 0.0
    %197 = vmatprep.subr.mxu0 0.0
    %198 = vmatpush1.msra.mxu0 0.0
    %199 = vmatprep.subr.mxu0 0.0
    %200 = vmatpush1.msra.mxu0 0.0
    %201 = vmatprep.subr.mxu0 0.0
    %202 = vmatpush1.msra.mxu0 0.0
    %203 = vmatprep.subr.mxu0 0.0
    %204 = vmatpush1.msra.mxu0 0.0
    %205 = vmatprep.subr.mxu0 0.0
    %206 = vmatpush1.msra.mxu0 0.0
    %207 = vmatprep.subr.mxu0 0.0
    %208 = vmatpush1.msra.mxu0 0.0
    %209 = vmatprep.subr.mxu0 0.0
    %210 = vmatpush1.msra.mxu0 0.0
    %211 = vmatprep.subr.mxu0 0.0
    %212 = vmatpush1.msra.mxu0 0.0
    %213 = vmatprep.subr.mxu0 0.0
    %214 = vmatpush1.msra.mxu0 0.0
    %215 = vmatprep.subr.mxu0 0.0
    %216 = vmatpush1.msra.mxu0 0.0
    %217 = vmatprep.subr.mxu0 0.0
    %218 = vmatpush1.msra.mxu0 0.0
    %219 = vmatprep.subr.mxu0 0.0
    %220 = vmatpush1.msra.mxu0 0.0
    %221 = vmatprep.subr.mxu0 0.0
    %222 = vmatpush1.msra.mxu0 0.0
    %223 = vmatprep.subr.mxu0 0.0
    %224 = vmatpush1.msra.mxu0 0.0
    %225 = vmatprep.subr.mxu0 0.0
    %226 = vmatpush1.msra.mxu0 0.0
    %227 = vmatprep.subr.mxu0 0.0
    %228 = vmatpush1.msra.mxu0 0.0
    %229 = vmatprep.subr.mxu0 0.0
    %230 = vmatpush1.msra.mxu0 0.0
    %231 = vmatprep.subr.mxu0 0.0
    %232 = vmatpush1.msra.mxu0 0.0
    %233 = vmatprep.subr.mxu0 0.0
    %234 = vmatpush1.msra.mxu0 0.0
    %235 = vmatprep.subr.mxu0 0.0
    %236 = vmatpush1.msra.mxu0 0.0
    %237 = vmatprep.subr.mxu0 0.0
    %238 = vmatpush1.msra.mxu0 0.0
    %239 = vmatprep.subr.mxu0 0.0
    %240 = vmatpush1.msra.mxu0 0.0
    %241 = vmatprep.subr.mxu0 0.0
    %242 = vmatpush1.msra.mxu0 0.0
    %243 = vmatprep.subr.mxu0 0.0
    %244 = vmatpush1.msra.mxu0 0.0
    %245 = vmatprep.subr.mxu0 0.0
    %246 = vmatpush1.msra.mxu0 0.0
    %247 = vmatprep.subr.mxu0 0.0
    %248 = vmatpush1.msra.mxu0 0.0
    %249 = vmatprep.mubr.f32.mxu0 0.0
    %250 = vmatmul.mubr.f32.gmra.mrb[0].mxu0 %v172
    %v251 = vpop.f32.mrb[0].mxu0
    %v252 = vadd.f32 0.0, %v251
    %v253 = vpop.f32.mrb[0].mxu0
    %v254 = vadd.f32 0.0, %v253
    %255 = vmatprep.mubr.f32.mxu0 0.0
    %256 = vmatmul.mubr.f32.gmra.mrb[0].mxu0 %v174
    %v257 = vpop.f32.mrb[0].mxu0
    %v258 = vadd.f32 0.0, %v257
    %v259 = vpop.f32.mrb[0].mxu0
    %v260 = vadd.f32 0.0, %v259
    %261 = vmatprep.mubr.f32.mxu0 0.0
    %262 = vmatmul.mubr.f32.gmra.mrb[0].mxu0 %v176
    %v263 = vpop.f32.mrb[0].mxu0
    %v264 = vadd.f32 0.0, %v263
    %v265 = vpop.f32.mrb[0].mxu0
    %v266 = vadd.f32 0.0, %v265
    %267 = vdwg.mxu0
    %v268 = vsel %vm171, %v138, 0
    %v270 = vsel %vm171, %v139, 0
    %v272 = vsel %vm171, %v140, 0
    %v275 = vsel %vm178, %v148, 0
    %v278 = vsel %vm178, %v149, 0
    %280 = vmatprep.subr.mxu0 %v143
    %281 = vmatpush1.msra.mxu0 %v142
    %282 = vmatprep.subr.mxu0 %v145
    %283 = vmatpush1.msra.mxu0 %v144
    %284 = vmatprep.subr.mxu0 %v147
    %285 = vmatpush1.msra.mxu0 %v146
    %286 = vmatprep.subr.mxu0 %v278
    %287 = vmatpush1.msra.mxu0 %v275
    %288 = vmatprep.subr.mxu0 0.0
    %289 = vmatpush1.msra.mxu0 0.0
    %290 = vmatprep.subr.mxu0 0.0
    %291 = vmatpush1.msra.mxu0 0.0
    %292 = vmatprep.subr.mxu0 0.0
    %293 = vmatpush1.msra.mxu0 0.0
    %294 = vmatprep.subr.mxu0 0.0
    %295 = vmatpush1.msra.mxu0 0.0
    %296 = vmatprep.subr.mxu0 0.0
    %297 = vmatpush1.msra.mxu0 0.0
    %298 = vmatprep.subr.mxu0 0.0
    %299 = vmatpush1.msra.mxu0 0.0
    %300 = vmatprep.subr.mxu0 0.0
    %301 = vmatpush1.msra.mxu0 0.0
    %302 = vmatprep.subr.mxu0 0.0
    %303 = vmatpush1.msra.mxu0 0.0
    %304 = vmatprep.subr.mxu0 0.0
    %305 = vmatpush1.msra.mxu0 0.0
    %306 = vmatprep.subr.mxu0 0.0
    %307 = vmatpush1.msra.mxu0 0.0
    %308 = vmatprep.subr.mxu0 0.0
    %309 = vmatpush1.msra.mxu0 0.0
    %310 = vmatprep.subr.mxu0 0.0
    %311 = vmatpush1.msra.mxu0 0.0
    %312 = vmatprep.subr.mxu0 0.0
    %313 = vmatpush1.msra.mxu0 0.0
    %314 = vmatprep.subr.mxu0 0.0
    %315 = vmatpush1.msra.mxu0 0.0
    %316 = vmatprep.subr.mxu0 0.0
    %317 = vmatpush1.msra.mxu0 0.0
    %318 = vmatprep.subr.mxu0 0.0
    %319 = vmatpush1.msra.mxu0 0.0
    %320 = vmatprep.subr.mxu0 0.0
    %321 = vmatpush1.msra.mxu0 0.0
    %322 = vmatprep.subr.mxu0 0.0
    %323 = vmatpush1.msra.mxu0 0.0
    %324 = vmatprep.subr.mxu0 0.0
    %325 = vmatpush1.msra.mxu0 0.0
    %326 = vmatprep.subr.mxu0 0.0
    %327 = vmatpush1.msra.mxu0 0.0
    %328 = vmatprep.subr.mxu0 0.0
    %329 = vmatpush1.msra.mxu0 0.0
    %330 = vmatprep.subr.mxu0 0.0
    %331 = vmatpush1.msra.mxu0 0.0
    %332 = vmatprep.subr.mxu0 0.0
    %333 = vmatpush1.msra.mxu0 0.0
    %334 = vmatprep.subr.mxu0 0.0
    %335 = vmatpush1.msra.mxu0 0.0
    %336 = vmatprep.subr.mxu0 0.0
    %337 = vmatpush1.msra.mxu0 0.0
    %338 = vmatprep.subr.mxu0 0.0
    %339 = vmatpush1.msra.mxu0 0.0
    %340 = vmatprep.subr.mxu0 0.0
    %341 = vmatpush1.msra.mxu0 0.0
    %342 = vmatprep.subr.mxu0 0.0
    %343 = vmatpush1.msra.mxu0 0.0
    %344 = vmatprep.mubr.f32.mxu0 0.0
    %345 = vmatmul.mubr.f32.gmra.mrb[0].mxu0 %v268
    %v346 = vpop.f32.mrb[0].mxu0
    %v347 = vadd.f32 %v252, %v346
    %v348 = vpop.f32.mrb[0].mxu0
    %v349 = vadd.f32 %v254, %v348
    %350 = vmatprep.mubr.f32.mxu0 0.0
    %351 = vmatmul.mubr.f32.gmra.mrb[0].mxu0 %v270
    %v352 = vpop.f32.mrb[0].mxu0
    %v353 = vadd.f32 %v258, %v352
    %v354 = vpop.f32.mrb[0].mxu0
    %v355 = vadd.f32 %v260, %v354
    %356 = vmatprep.mubr.f32.mxu0 0.0
    %357 = vmatmul.mubr.f32.gmra.mrb[0].mxu0 %v272
    %v358 = vpop.f32.mrb[0].mxu0
    %v359 = vadd.f32 %v264, %v358
    %v360 = vpop.f32.mrb[0].mxu0
    %v361 = vadd.f32 %v266, %v360
    %362 = vdwg.mxu0
    %s363 = scalar_lea.vmem %s1, 128
    %v364 = vld [vmem:[%s363] sm:$0xff]
    %v365 = vld [vmem:[%s363 + $0x8] sm:$0xff]
    %v366 = vld [vmem:[%s363 + $0x10] sm:$0xff]
    %v367 = vld [vmem:[%s363 + $0x18] sm:$0xff]
    %v368 = vld [vmem:[%s363 + $0x20] sm:$0xff]
    %v369 = vld [vmem:[%s363 + $0x28] sm:$0xff]
    %v370 = vld [vmem:[%s363 + $0x30] sm:$0xf]
    %v371 = vld [vmem:[%s363 + $0x38] sm:$0xf]
    %vm372 = vcmask 1045504
    %v373 = vrot.slane %v138, 2
    %v374 = vrot.slane %v139, 2
    %v375 = vsel %vm372, %v373, %v374
    %v376 = vrot.slane %v140, 2
    %v377 = vsel %vm372, %v374, %v376
    %v378 = vrot.slane %v141, 2
    %v379 = vsel %vm372, %v376, %v378
    %v380 = vsel %vm171, %v375, 0
    %v382 = vsel %vm171, %v377, 0
    %v384 = vsel %vm171, %v379, 0
    %v387 = vsel %vm178, %v370, 0
    %v390 = vsel %vm178, %v371, 0
    %392 = vmatprep.subr.mxu0 %v365
    %393 = vmatpush1.msra.mxu0 %v364
    %394 = vmatprep.subr.mxu0 %v367
    %395 = vmatpush1.msra.mxu0 %v366
    %396 = vmatprep.subr.mxu0 %v369
    %397 = vmatpush1.msra.mxu0 %v368
    %398 = vmatprep.subr.mxu0 %v390
    %399 = vmatpush1.msra.mxu0 %v387
    %400 = vmatprep.subr.mxu0 0.0
    %401 = vmatpush1.msra.mxu0 0.0
    %402 = vmatprep.subr.mxu0 0.0
    %403 = vmatpush1.msra.mxu0 0.0
    %404 = vmatprep.subr.mxu0 0.0
    %405 = vmatpush1.msra.mxu0 0.0
    %406 = vmatprep.subr.mxu0 0.0
    %407 = vmatpush1.msra.mxu0 0.0
    %408 = vmatprep.subr.mxu0 0.0
    %409 = vmatpush1.msra.mxu0 0.0
    %410 = vmatprep.subr.mxu0 0.0
    %411 = vmatpush1.msra.mxu0 0.0
    %412 = vmatprep.subr.mxu0 0.0
    %413 = vmatpush1.msra.mxu0 0.0
    %414 = vmatprep.subr.mxu0 0.0
    %415 = vmatpush1.msra.mxu0 0.0
    %416 = vmatprep.subr.mxu0 0.0
    %417 = vmatpush1.msra.mxu0 0.0
    %418 = vmatprep.subr.mxu0 0.0
    %419 = vmatpush1.msra.mxu0 0.0
    %420 = vmatprep.subr.mxu0 0.0
    %421 = vmatpush1.msra.mxu0 0.0
    %422 = vmatprep.subr.mxu0 0.0
    %423 = vmatpush1.msra.mxu0 0.0
    %424 = vmatprep.subr.mxu0 0.0
    %425 = vmatpush1.msra.mxu0 0.0
    %426 = vmatprep.subr.mxu0 0.0
    %427 = vmatpush1.msra.mxu0 0.0
    %428 = vmatprep.subr.mxu0 0.0
    %429 = vmatpush1.msra.mxu0 0.0
    %430 = vmatprep.subr.mxu0 0.0
    %431 = vmatpush1.msra.mxu0 0.0
    %432 = vmatprep.subr.mxu0 0.0
    %433 = vmatpush1.msra.mxu0 0.0
    %434 = vmatprep.subr.mxu0 0.0
    %435 = vmatpush1.msra.mxu0 0.0
    %436 = vmatprep.subr.mxu0 0.0
    %437 = vmatpush1.msra.mxu0 0.0
    %438 = vmatprep.subr.mxu0 0.0
    %439 = vmatpush1.msra.mxu0 0.0
    %440 = vmatprep.subr.mxu0 0.0
    %441 = vmatpush1.msra.mxu0 0.0
    %442 = vmatprep.subr.mxu0 0.0
    %443 = vmatpush1.msra.mxu0 0.0
    %444 = vmatprep.subr.mxu0 0.0
    %445 = vmatpush1.msra.mxu0 0.0
    %446 = vmatprep.subr.mxu0 0.0
    %447 = vmatpush1.msra.mxu0 0.0
    %448 = vmatprep.subr.mxu0 0.0
    %449 = vmatpush1.msra.mxu0 0.0
    %450 = vmatprep.subr.mxu0 0.0
    %451 = vmatpush1.msra.mxu0 0.0
    %452 = vmatprep.subr.mxu0 0.0
    %453 = vmatpush1.msra.mxu0 0.0
    %454 = vmatprep.subr.mxu0 0.0
    %455 = vmatpush1.msra.mxu0 0.0
    %456 = vmatprep.mubr.f32.mxu0 0.0
    %457 = vmatmul.mubr.f32.gmra.mrb[0].mxu0 %v380
    %v458 = vpop.f32.mrb[0].mxu0
    %v459 = vadd.f32 0.0, %v458
    %v460 = vpop.f32.mrb[0].mxu0
    %v461 = vadd.f32 0.0, %v460
    %462 = vmatprep.mubr.f32.mxu0 0.0
    %463 = vmatmul.mubr.f32.gmra.mrb[0].mxu0 %v382
    %v464 = vpop.f32.mrb[0].mxu0
    %v465 = vadd.f32 0.0, %v464
    %v466 = vpop.f32.mrb[0].mxu0
    %v467 = vadd.f32 0.0, %v466
    %468 = vmatprep.mubr.f32.mxu0 0.0
    %469 = vmatmul.mubr.f32.gmra.mrb[0].mxu0 %v384
    %v470 = vpop.f32.mrb[0].mxu0
    %v471 = vadd.f32 0.0, %v470
    %v472 = vpop.f32.mrb[0].mxu0
    %v473 = vadd.f32 0.0, %v472
    %474 = vdwg.mxu0
    %v475 = vadd.f32 %v347, %v459
    %v476 = vadd.f32 %v349, %v461
    %v477 = vadd.f32 %v353, %v465
    %v478 = vadd.f32 %v355, %v467
    %v479 = vadd.f32 %v359, %v471
    %v480 = vadd.f32 %v361, %v473
    %s481 = scalar_lea.vmem %s1, 192
    %v482 = vld [vmem:[%s481] sm:$0xff]
    %v483 = vld [vmem:[%s481 + $0x8] sm:$0xff]
    %v484 = vld [vmem:[%s481 + $0x10] sm:$0xff]
    %v485 = vld [vmem:[%s481 + $0x18] sm:$0xff]
    %v486 = vld [vmem:[%s481 + $0x20] sm:$0xff]
    %v487 = vld [vmem:[%s481 + $0x28] sm:$0xff]
    %v488 = vld [vmem:[%s481 + $0x30] sm:$0xf]
    %v489 = vld [vmem:[%s481 + $0x38] sm:$0xf]
    %vm490 = vcmask 1044480
    %v491 = vrot.slane %v138, 3
    %v492 = vrot.slane %v139, 3
    %v493 = vsel %vm490, %v491, %v492
    %v494 = vrot.slane %v140, 3
    %v495 = vsel %vm490, %v492, %v494
    %v496 = vrot.slane %v141, 3
    %v497 = vsel %vm490, %v494, %v496
    %v498 = vsel %vm171, %v493, 0
    %v500 = vsel %vm171, %v495, 0
    %v502 = vsel %vm171, %v497, 0
    %v505 = vsel %vm178, %v488, 0
    %v508 = vsel %vm178, %v489, 0
    %510 = vmatprep.subr.mxu0 %v483
    %511 = vmatpush1.msra.mxu0 %v482
    %512 = vmatprep.subr.mxu0 %v485
    %513 = vmatpush1.msra.mxu0 %v484
    %514 = vmatprep.subr.mxu0 %v487
    %515 = vmatpush1.msra.mxu0 %v486
    %516 = vmatprep.subr.mxu0 %v508
    %517 = vmatpush1.msra.mxu0 %v505
    %518 = vmatprep.subr.mxu0 0.0
    %519 = vmatpush1.msra.mxu0 0.0
    %520 = vmatprep.subr.mxu0 0.0
    %521 = vmatpush1.msra.mxu0 0.0
    %522 = vmatprep.subr.mxu0 0.0
    %523 = vmatpush1.msra.mxu0 0.0
    %524 = vmatprep.subr.mxu0 0.0
    %525 = vmatpush1.msra.mxu0 0.0
    %526 = vmatprep.subr.mxu0 0.0
    %527 = vmatpush1.msra.mxu0 0.0
    %528 = vmatprep.subr.mxu0 0.0
    %529 = vmatpush1.msra.mxu0 0.0
    %530 = vmatprep.subr.mxu0 0.0
    %531 = vmatpush1.msra.mxu0 0.0
    %532 = vmatprep.subr.mxu0 0.0
    %533 = vmatpush1.msra.mxu0 0.0
    %534 = vmatprep.subr.mxu0 0.0
    %535 = vmatpush1.msra.mxu0 0.0
    %536 = vmatprep.subr.mxu0 0.0
    %537 = vmatpush1.msra.mxu0 0.0
    %538 = vmatprep.subr.mxu0 0.0
    %539 = vmatpush1.msra.mxu0 0.0
    %540 = vmatprep.subr.mxu0 0.0
    %541 = vmatpush1.msra.mxu0 0.0
    %542 = vmatprep.subr.mxu0 0.0
    %543 = vmatpush1.msra.mxu0 0.0
    %544 = vmatprep.subr.mxu0 0.0
    %545 = vmatpush1.msra.mxu0 0.0
    %546 = vmatprep.subr.mxu0 0.0
    %547 = vmatpush1.msra.mxu0 0.0
    %548 = vmatprep.subr.mxu0 0.0
    %549 = vmatpush1.msra.mxu0 0.0
    %550 = vmatprep.subr.mxu0 0.0
    %551 = vmatpush1.msra.mxu0 0.0
    %552 = vmatprep.subr.mxu0 0.0
    %553 = vmatpush1.msra.mxu0 0.0
    %554 = vmatprep.subr.mxu0 0.0
    %555 = vmatpush1.msra.mxu0 0.0
    %556 = vmatprep.subr.mxu0 0.0
    %557 = vmatpush1.msra.mxu0 0.0
    %558 = vmatprep.subr.mxu0 0.0
    %559 = vmatpush1.msra.mxu0 0.0
    %560 = vmatprep.subr.mxu0 0.0
    %561 = vmatpush1.msra.mxu0 0.0
    %562 = vmatprep.subr.mxu0 0.0
    %563 = vmatpush1.msra.mxu0 0.0
    %564 = vmatprep.subr.mxu0 0.0
    %565 = vmatpush1.msra.mxu0 0.0
    %566 = vmatprep.subr.mxu0 0.0
    %567 = vmatpush1.msra.mxu0 0.0
    %568 = vmatprep.subr.mxu0 0.0
    %569 = vmatpush1.msra.mxu0 0.0
    %570 = vmatprep.subr.mxu0 0.0
    %571 = vmatpush1.msra.mxu0 0.0
    %572 = vmatprep.subr.mxu0 0.0
    %573 = vmatpush1.msra.mxu0 0.0
    %574 = vmatprep.mubr.f32.mxu0 0.0
    %575 = vmatmul.mubr.f32.gmra.mrb[0].mxu0 %v498
    %v576 = vpop.f32.mrb[0].mxu0
    %v577 = vadd.f32 0.0, %v576
    %v578 = vpop.f32.mrb[0].mxu0
    %v579 = vadd.f32 0.0, %v578
    %580 = vmatprep.mubr.f32.mxu0 0.0
    %581 = vmatmul.mubr.f32.gmra.mrb[0].mxu0 %v500
    %v582 = vpop.f32.mrb[0].mxu0
    %v583 = vadd.f32 0.0, %v582
    %v584 = vpop.f32.mrb[0].mxu0
    %v585 = vadd.f32 0.0, %v584
    %586 = vmatprep.mubr.f32.mxu0 0.0
    %587 = vmatmul.mubr.f32.gmra.mrb[0].mxu0 %v502
    %v588 = vpop.f32.mrb[0].mxu0
    %v589 = vadd.f32 0.0, %v588
    %v590 = vpop.f32.mrb[0].mxu0
    %v591 = vadd.f32 0.0, %v590
    %592 = vdwg.mxu0
    %v593 = vadd.f32 %v475, %v577
    %v594 = vadd.f32 %v476, %v579
    %v595 = vadd.f32 %v477, %v583
    %v596 = vadd.f32 %v478, %v585
    %v597 = vadd.f32 %v479, %v589
    %v598 = vadd.f32 %v480, %v591
    %s599 = scalar_lea.vmem %s1, 256
    %v600 = vld [vmem:[%s599] sm:$0xff]
    %v601 = vld [vmem:[%s599 + $0x8] sm:$0xff]
    %v602 = vld [vmem:[%s599 + $0x10] sm:$0xff]
    %v603 = vld [vmem:[%s599 + $0x18] sm:$0xff]
    %v604 = vld [vmem:[%s599 + $0x20] sm:$0xff]
    %v605 = vld [vmem:[%s599 + $0x28] sm:$0xff]
    %v606 = vld [vmem:[%s599 + $0x30] sm:$0xf]
    %v607 = vld [vmem:[%s599 + $0x38] sm:$0xf]
    %v608 = vrot.slane %v138, 4
    %v609 = vrot.slane %v139, 4
    %v610 = vsel %vm178, %v608, %v609
    %v611 = vrot.slane %v140, 4
    %v612 = vsel %vm178, %v609, %v611
    %v613 = vrot.slane %v141, 4
    %v614 = vsel %vm178, %v611, %v613
    %v615 = vsel %vm171, %v610, 0
    %v617 = vsel %vm171, %v612, 0
    %v619 = vsel %vm171, %v614, 0
    %v622 = vsel %vm178, %v606, 0
    %v625 = vsel %vm178, %v607, 0
    %627 = vmatprep.subr.mxu0 %v601
    %628 = vmatpush1.msra.mxu0 %v600
    %629 = vmatprep.subr.mxu0 %v603
    %630 = vmatpush1.msra.mxu0 %v602
    %631 = vmatprep.subr.mxu0 %v605
    %632 = vmatpush1.msra.mxu0 %v604
    %633 = vmatprep.subr.mxu0 %v625
    %634 = vmatpush1.msra.mxu0 %v622
    %635 = vmatprep.subr.mxu0 0.0
    %636 = vmatpush1.msra.mxu0 0.0
    %637 = vmatprep.subr.mxu0 0.0
    %638 = vmatpush1.msra.mxu0 0.0
    %639 = vmatprep.subr.mxu0 0.0
    %640 = vmatpush1.msra.mxu0 0.0
    %641 = vmatprep.subr.mxu0 0.0
    %642 = vmatpush1.msra.mxu0 0.0
    %643 = vmatprep.subr.mxu0 0.0
    %644 = vmatpush1.msra.mxu0 0.0
    %645 = vmatprep.subr.mxu0 0.0
    %646 = vmatpush1.msra.mxu0 0.0
    %647 = vmatprep.subr.mxu0 0.0
    %648 = vmatpush1.msra.mxu0 0.0
    %649 = vmatprep.subr.mxu0 0.0
    %650 = vmatpush1.msra.mxu0 0.0
    %651 = vmatprep.subr.mxu0 0.0
    %652 = vmatpush1.msra.mxu0 0.0
    %653 = vmatprep.subr.mxu0 0.0
    %654 = vmatpush1.msra.mxu0 0.0
    %655 = vmatprep.subr.mxu0 0.0
    %656 = vmatpush1.msra.mxu0 0.0
    %657 = vmatprep.subr.mxu0 0.0
    %658 = vmatpush1.msra.mxu0 0.0
    %659 = vmatprep.subr.mxu0 0.0
    %660 = vmatpush1.msra.mxu0 0.0
    %661 = vmatprep.subr.mxu0 0.0
    %662 = vmatpush1.msra.mxu0 0.0
    %663 = vmatprep.subr.mxu0 0.0
    %664 = vmatpush1.msra.mxu0 0.0
    %665 = vmatprep.subr.mxu0 0.0
    %666 = vmatpush1.msra.mxu0 0.0
    %667 = vmatprep.subr.mxu0 0.0
    %668 = vmatpush1.msra.mxu0 0.0
    %669 = vmatprep.subr.mxu0 0.0
    %670 = vmatpush1.msra.mxu0 0.0
    %671 = vmatprep.subr.mxu0 0.0
    %672 = vmatpush1.msra.mxu0 0.0
    %673 = vmatprep.subr.mxu0 0.0
    %674 = vmatpush1.msra.mxu0 0.0
    %675 = vmatprep.subr.mxu0 0.0
    %676 = vmatpush1.msra.mxu0 0.0
    %677 = vmatprep.subr.mxu0 0.0
    %678 = vmatpush1.msra.mxu0 0.0
    %679 = vmatprep.subr.mxu0 0.0
    %680 = vmatpush1.msra.mxu0 0.0
    %681 = vmatprep.subr.mxu0 0.0
    %682 = vmatpush1.msra.mxu0 0.0
    %683 = vmatprep.subr.mxu0 0.0
    %684 = vmatpush1.msra.mxu0 0.0
    %685 = vmatprep.subr.mxu0 0.0
    %686 = vmatpush1.msra.mxu0 0.0
    %687 = vmatprep.subr.mxu0 0.0
    %688 = vmatpush1.msra.mxu0 0.0
    %689 = vmatprep.subr.mxu0 0.0
    %690 = vmatpush1.msra.mxu0 0.0
    %691 = vmatprep.mubr.f32.mxu0 0.0
    %692 = vmatmul.mubr.f32.gmra.mrb[0].mxu0 %v615
    %v693 = vpop.f32.mrb[0].mxu0
    %v694 = vadd.f32 0.0, %v693
    %v695 = vpop.f32.mrb[0].mxu0
    %v696 = vadd.f32 0.0, %v695
    %697 = vmatprep.mubr.f32.mxu0 0.0
    %698 = vmatmul.mubr.f32.gmra.mrb[0].mxu0 %v617
    %v699 = vpop.f32.mrb[0].mxu0
    %v700 = vadd.f32 0.0, %v699
    %v701 = vpop.f32.mrb[0].mxu0
    %v702 = vadd.f32 0.0, %v701
    %703 = vmatprep.mubr.f32.mxu0 0.0
    %704 = vmatmul.mubr.f32.gmra.mrb[0].mxu0 %v619
    %v705 = vpop.f32.mrb[0].mxu0
    %v706 = vadd.f32 0.0, %v705
    %v707 = vpop.f32.mrb[0].mxu0
    %v708 = vadd.f32 0.0, %v707
    %709 = vdwg.mxu0
    %v710 = vadd.f32 %v593, %v694
    %v711 = vadd.f32 %v594, %v696
    %v712 = vadd.f32 %v595, %v700
    %v713 = vadd.f32 %v596, %v702
    %v714 = vadd.f32 %v597, %v706
    %v715 = vadd.f32 %v598, %v708
    %v716 = vld [vmem:[#allocation2] sm:$0x3]
    %v718 = vlaneseq
    %v719 = vshrl.u32 %v718, 7
    %v720 = vsub.s32 0, %v719
    %v721 = vrot.slane %v716, %v720
    %v722 = vlaneseq
    %v723 = vshrl.u32 %v722, 7
    %v724 = vsub.s32 1, %v723
    %v725 = vrot.slane %v716, %v724
    %v728 = vadd.f32 %v710, %v721
    %v729 = vadd.f32 %v711, %v725
    %v730 = vadd.f32 %v712, %v721
    %v731 = vadd.f32 %v713, %v725
    %v732 = vadd.f32 %v714, %v721
    %v733 = vadd.f32 %v715, %v725
    %v734 = vmax.f32 %v728, 0.0
    %v735 = vmax.f32 %v729, 0.0
    %v736 = vmax.f32 %v730, 0.0
    %v737 = vmax.f32 %v731, 0.0
    %v738 = vmax.f32 %v732, 0.0
    %v739 = vmax.f32 %v733, 0.0
    %v740 = vld [vmem:[%s3] sm:$0xff]
    %v741 = vld [vmem:[%s3 + $0x8] sm:$0xf]
    %vm742 = vcmask 195584
    %v744 = vsel %vm742, %v740, 0
    %v747 = vsel %vm742, %v741, 0
    %749 = vmatprep.subr.mxu0 %v735
    %750 = vmatpush1.msra.mxu0 %v734
    %751 = vmatprep.subr.mxu0 %v737
    %752 = vmatpush1.msra.mxu0 %v736
    %753 = vmatprep.subr.mxu0 %v739
    %754 = vmatpush1.msra.mxu0 %v738
    %755 = vmatprep.subr.mxu0 0.0
    %756 = vmatpush1.msra.mxu0 0.0
    %757 = vmatprep.subr.mxu0 0.0
    %758 = vmatpush1.msra.mxu0 0.0
    %759 = vmatprep.subr.mxu0 0.0
    %760 = vmatpush1.msra.mxu0 0.0
    %761 = vmatprep.subr.mxu0 0.0
    %762 = vmatpush1.msra.mxu0 0.0
    %763 = vmatprep.subr.mxu0 0.0
    %764 = vmatpush1.msra.mxu0 0.0
    %765 = vmatprep.subr.mxu0 0.0
    %766 = vmatpush1.msra.mxu0 0.0
    %767 = vmatprep.subr.mxu0 0.0
    %768 = vmatpush1.msra.mxu0 0.0
    %769 = vmatprep.subr.mxu0 0.0
    %770 = vmatpush1.msra.mxu0 0.0
    %771 = vmatprep.subr.mxu0 0.0
    %772 = vmatpush1.msra.mxu0 0.0
    %773 = vmatprep.subr.mxu0 0.0
    %774 = vmatpush1.msra.mxu0 0.0
    %775 = vmatprep.subr.mxu0 0.0
    %776 = vmatpush1.msra.mxu0 0.0
    %777 = vmatprep.subr.mxu0 0.0
    %778 = vmatpush1.msra.mxu0 0.0
    %779 = vmatprep.subr.mxu0 0.0
    %780 = vmatpush1.msra.mxu0 0.0
    %781 = vmatprep.subr.mxu0 0.0
    %782 = vmatpush1.msra.mxu0 0.0
    %783 = vmatprep.subr.mxu0 0.0
    %784 = vmatpush1.msra.mxu0 0.0
    %785 = vmatprep.subr.mxu0 0.0
    %786 = vmatpush1.msra.mxu0 0.0
    %787 = vmatprep.subr.mxu0 0.0
    %788 = vmatpush1.msra.mxu0 0.0
    %789 = vmatprep.subr.mxu0 0.0
    %790 = vmatpush1.msra.mxu0 0.0
    %791 = vmatprep.subr.mxu0 0.0
    %792 = vmatpush1.msra.mxu0 0.0
    %793 = vmatprep.subr.mxu0 0.0
    %794 = vmatpush1.msra.mxu0 0.0
    %795 = vmatprep.subr.mxu0 0.0
    %796 = vmatpush1.msra.mxu0 0.0
    %797 = vmatprep.subr.mxu0 0.0
    %798 = vmatpush1.msra.mxu0 0.0
    %799 = vmatprep.subr.mxu0 0.0
    %800 = vmatpush1.msra.mxu0 0.0
    %801 = vmatprep.subr.mxu0 0.0
    %802 = vmatpush1.msra.mxu0 0.0
    %803 = vmatprep.subr.mxu0 0.0
    %804 = vmatpush1.msra.mxu0 0.0
    %805 = vmatprep.subr.mxu0 0.0
    %806 = vmatpush1.msra.mxu0 0.0
    %807 = vmatprep.subr.mxu0 0.0
    %808 = vmatpush1.msra.mxu0 0.0
    %809 = vmatprep.subr.mxu0 0.0
    %810 = vmatpush1.msra.mxu0 0.0
    %811 = vmatprep.subr.mxu0 0.0
    %812 = vmatpush1.msra.mxu0 0.0
    %813 = vmatprep.mubr.f32.mxu0 0.0
    %814 = vmatmul.mubr.f32.gmra.mrb[0].mxu0 %v744
    %v815 = vpop.f32.mrb[0].mxu0
    %v816 = vadd.f32 0.0, %v815
    %v817 = vpop.f32.mrb[0].mxu0
    %v818 = vadd.f32 0.0, %v817
    %819 = vmatprep.mubr.f32.mxu0 0.0
    %820 = vmatmul.mubr.f32.gmra.mrb[0].mxu0 %v747
    %v821 = vpop.f32.mrb[0].mxu0
    %v822 = vadd.f32 0.0, %v821
    %v823 = vpop.f32.mrb[0].mxu0
    %v824 = vadd.f32 0.0, %v823
    %825 = vdwg.mxu0
    %s826 = scalar_lea.vmem %s3, 16
    %v827 = vld [vmem:[%s826] sm:$0xff]
    %v828 = vld [vmem:[%s826 + $0x8] sm:$0xf]
    %v830 = vsel %vm742, %v827, 0
    %v833 = vsel %vm742, %v828, 0
    %835 = vmatprep.subr.mxu0 %v735
    %836 = vmatpush1.msra.mxu0 %v734
    %837 = vmatprep.subr.mxu0 %v737
    %838 = vmatpush1.msra.mxu0 %v736
    %839 = vmatprep.subr.mxu0 %v739
    %840 = vmatpush1.msra.mxu0 %v738
    %841 = vmatprep.subr.mxu0 0.0
    %842 = vmatpush1.msra.mxu0 0.0
    %843 = vmatprep.subr.mxu0 0.0
    %844 = vmatpush1.msra.mxu0 0.0
    %845 = vmatprep.subr.mxu0 0.0
    %846 = vmatpush1.msra.mxu0 0.0
    %847 = vmatprep.subr.mxu0 0.0
    %848 = vmatpush1.msra.mxu0 0.0
    %849 = vmatprep.subr.mxu0 0.0
    %850 = vmatpush1.msra.mxu0 0.0
    %851 = vmatprep.subr.mxu0 0.0
    %852 = vmatpush1.msra.mxu0 0.0
    %853 = vmatprep.subr.mxu0 0.0
    %854 = vmatpush1.msra.mxu0 0.0
    %855 = vmatprep.subr.mxu0 0.0
    %856 = vmatpush1.msra.mxu0 0.0
    %857 = vmatprep.subr.mxu0 0.0
    %858 = vmatpush1.msra.mxu0 0.0
    %859 = vmatprep.subr.mxu0 0.0
    %860 = vmatpush1.msra.mxu0 0.0
    %861 = vmatprep.subr.mxu0 0.0
    %862 = vmatpush1.msra.mxu0 0.0
    %863 = vmatprep.subr.mxu0 0.0
    %864 = vmatpush1.msra.mxu0 0.0
    %865 = vmatprep.subr.mxu0 0.0
    %866 = vmatpush1.msra.mxu0 0.0
    %867 = vmatprep.subr.mxu0 0.0
    %868 = vmatpush1.msra.mxu0 0.0
    %869 = vmatprep.subr.mxu0 0.0
    %870 = vmatpush1.msra.mxu0 0.0
    %871 = vmatprep.subr.mxu0 0.0
    %872 = vmatpush1.msra.mxu0 0.0
    %873 = vmatprep.subr.mxu0 0.0
    %874 = vmatpush1.msra.mxu0 0.0
    %875 = vmatprep.subr.mxu0 0.0
    %876 = vmatpush1.msra.mxu0 0.0
    %877 = vmatprep.subr.mxu0 0.0
    %878 = vmatpush1.msra.mxu0 0.0
    %879 = vmatprep.subr.mxu0 0.0
    %880 = vmatpush1.msra.mxu0 0.0
    %881 = vmatprep.subr.mxu0 0.0
    %882 = vmatpush1.msra.mxu0 0.0
    %883 = vmatprep.subr.mxu0 0.0
    %884 = vmatpush1.msra.mxu0 0.0
    %885 = vmatprep.subr.mxu0 0.0
    %886 = vmatpush1.msra.mxu0 0.0
    %887 = vmatprep.subr.mxu0 0.0
    %888 = vmatpush1.msra.mxu0 0.0
    %889 = vmatprep.subr.mxu0 0.0
    %890 = vmatpush1.msra.mxu0 0.0
    %891 = vmatprep.subr.mxu0 0.0
    %892 = vmatpush1.msra.mxu0 0.0
    %893 = vmatprep.subr.mxu0 0.0
    %894 = vmatpush1.msra.mxu0 0.0
    %895 = vmatprep.subr.mxu0 0.0
    %896 = vmatpush1.msra.mxu0 0.0
    %897 = vmatprep.subr.mxu0 0.0
    %898 = vmatpush1.msra.mxu0 0.0
    %899 = vmatprep.mubr.f32.mxu0 0.0
    %900 = vmatmul.mubr.f32.gmra.mrb[0].mxu0 %v830
    %v901 = vpop.f32.mrb[0].mxu0
    %v902 = vadd.f32 0.0, %v901
    %v903 = vpop.f32.mrb[0].mxu0
    %v904 = vadd.f32 0.0, %v903
    %905 = vmatprep.mubr.f32.mxu0 0.0
    %906 = vmatmul.mubr.f32.gmra.mrb[0].mxu0 %v833
    %v907 = vpop.f32.mrb[0].mxu0
    %v908 = vadd.f32 0.0, %v907
    %v909 = vpop.f32.mrb[0].mxu0
    %v910 = vadd.f32 0.0, %v909
    %911 = vdwg.mxu0
    %v912 = vmax.f32 %v816, %v902
    %v913 = vmax.f32 %v818, %v904
    %v914 = vmax.f32 %v822, %v908
    %v915 = vmax.f32 %v824, %v910
    %v916 = vld [vmem:[#allocation5] sm:$0xff]
    %v917 = vld [vmem:[#allocation5 + $0x8] sm:$0xff]
    %v918 = vld [vmem:[#allocation5 + $0x10] sm:$0xff]
    %v919 = vld [vmem:[#allocation5 + $0x18] sm:$0xff]
    %v920 = vld [vmem:[#allocation5 + $0x20] sm:$0xff]
    %v921 = vld [vmem:[#allocation5 + $0x28] sm:$0xff]
    %v922 = vld [vmem:[#allocation5 + $0x30] sm:$0xff]
    %v923 = vld [vmem:[#allocation5 + $0x38] sm:$0xff]
    %v924 = vld [vmem:[#allocation5 + $0x40] sm:$0xff]
    %v925 = vld [vmem:[#allocation5 + $0x48] sm:$0xff]
    %v926 = vld [vmem:[#allocation5 + $0x50] sm:$0xff]
    %v927 = vld [vmem:[#allocation5 + $0x58] sm:$0xff]
    %v928 = vld [vmem:[#allocation5 + $0x60] sm:$0xff]
    %v929 = vld [vmem:[#allocation5 + $0x68] sm:$0xff]
    %v930 = vld [vmem:[#allocation5 + $0x70] sm:$0xff]
    %v931 = vld [vmem:[#allocation5 + $0x78] sm:$0xff]
    %v932 = vld [vmem:[#allocation5 + $0x80] sm:$0xff]
    %v933 = vld [vmem:[#allocation5 + $0x88] sm:$0xff]
    %vm934 = vcmask 130048
    %v936 = vsel %vm934, %v913, 0
    %v939 = vsel %vm934, %v915, 0
    %941 = vmatprep.subr.mxu0 0.0
    %942 = vmatpush1.msra.mxu0 %v916
    %943 = vmatprep.subr.mxu0 0.0
    %944 = vmatpush1.msra.mxu0 %v917
    %945 = vmatprep.subr.mxu0 0.0
    %946 = vmatpush1.msra.mxu0 %v918
    %947 = vmatprep.subr.mxu0 0.0
    %948 = vmatpush1.msra.mxu0 %v919
    %949 = vmatprep.subr.mxu0 0.0
    %950 = vmatpush1.msra.mxu0 %v920
    %951 = vmatprep.subr.mxu0 0.0
    %952 = vmatpush1.msra.mxu0 %v921
    %953 = vmatprep.subr.mxu0 0.0
    %954 = vmatpush1.msra.mxu0 %v922
    %955 = vmatprep.subr.mxu0 0.0
    %956 = vmatpush1.msra.mxu0 %v923
    %957 = vmatprep.subr.mxu0 0.0
    %958 = vmatpush1.msra.mxu0 %v924
    %959 = vmatprep.subr.mxu0 0.0
    %960 = vmatpush1.msra.mxu0 %v925
    %961 = vmatprep.subr.mxu0 0.0
    %962 = vmatpush1.msra.mxu0 %v926
    %963 = vmatprep.subr.mxu0 0.0
    %964 = vmatpush1.msra.mxu0 %v927
    %965 = vmatprep.subr.mxu0 0.0
    %966 = vmatpush1.msra.mxu0 %v928
    %967 = vmatprep.subr.mxu0 0.0
    %968 = vmatpush1.msra.mxu0 %v929
    %969 = vmatprep.subr.mxu0 0.0
    %970 = vmatpush1.msra.mxu0 %v930
    %971 = vmatprep.subr.mxu0 0.0
    %972 = vmatpush1.msra.mxu0 %v931
    %973 = vmatprep.subr.mxu0 0.0
    %974 = vmatpush1.msra.mxu0 %v932
    %975 = vmatprep.subr.mxu0 0.0
    %976 = vmatpush1.msra.mxu0 %v933
    %977 = vmatprep.subr.mxu0 0.0
    %978 = vmatpush1.msra.mxu0 0.0
    %979 = vmatprep.subr.mxu0 0.0
    %980 = vmatpush1.msra.mxu0 0.0
    %981 = vmatprep.subr.mxu0 0.0
    %982 = vmatpush1.msra.mxu0 0.0
    %983 = vmatprep.subr.mxu0 0.0
    %984 = vmatpush1.msra.mxu0 0.0
    %985 = vmatprep.subr.mxu0 0.0
    %986 = vmatpush1.msra.mxu0 0.0
    %987 = vmatprep.subr.mxu0 0.0
    %988 = vmatpush1.msra.mxu0 0.0
    %989 = vmatprep.subr.mxu0 0.0
    %990 = vmatpush1.msra.mxu0 0.0
    %991 = vmatprep.subr.mxu0 0.0
    %992 = vmatpush1.msra.mxu0 0.0
    %993 = vmatprep.subr.mxu0 0.0
    %994 = vmatpush1.msra.mxu0 0.0
    %995 = vmatprep.subr.mxu0 0.0
    %996 = vmatpush1.msra.mxu0 0.0
    %997 = vmatprep.subr.mxu0 0.0
    %998 = vmatpush1.msra.mxu0 0.0
    %999 = vmatprep.subr.mxu0 0.0
    %1000 = vmatpush1.msra.mxu0 0.0
    %1001 = vmatprep.subr.mxu0 0.0
    %1002 = vmatpush1.msra.mxu0 0.0
    %1003 = vmatprep.subr.mxu0 0.0
    %1004 = vmatpush1.msra.mxu0 0.0
    %1005 = vmatprep.mubr.f32.mxu0 %v936
    %1006 = vmatmul.mubr.f32.gmra.mrb[0].mxu0 %v912
    %v1007 = vpop.f32.mrb[0].mxu0
    %v1008 = vadd.f32 0.0, %v1007
    %v1009 = vpop.f32.mrb[0].mxu0
    %1010 = vmatprep.mubr.f32.mxu0 %v939
    %1011 = vmatmul.mubr.f32.gmra.mrb[0].mxu0 %v914
    %v1012 = vpop.f32.mrb[0].mxu0
    %v1013 = vadd.f32 0.0, %v1012
    %v1014 = vpop.f32.mrb[0].mxu0
    %1015 = vdwg.mxu0
    %s1016 = scalar_lea.vmem [#allocation5], 144
    %v1017 = vld [vmem:[%s1016] sm:$0xff]
    %v1018 = vld [vmem:[%s1016 + $0x8] sm:$0xff]
    %v1019 = vld [vmem:[%s1016 + $0x10] sm:$0xff]
    %v1020 = vld [vmem:[%s1016 + $0x18] sm:$0xff]
    %v1021 = vld [vmem:[%s1016 + $0x20] sm:$0xff]
    %v1022 = vld [vmem:[%s1016 + $0x28] sm:$0xff]
    %v1023 = vld [vmem:[%s1016 + $0x30] sm:$0xff]
    %v1024 = vld [vmem:[%s1016 + $0x38] sm:$0xff]
    %v1025 = vld [vmem:[%s1016 + $0x40] sm:$0xff]
    %v1026 = vld [vmem:[%s1016 + $0x48] sm:$0xff]
    %v1027 = vld [vmem:[%s1016 + $0x50] sm:$0xff]
    %v1028 = vld [vmem:[%s1016 + $0x58] sm:$0xff]
    %v1029 = vld [vmem:[%s1016 + $0x60] sm:$0xff]
    %v1030 = vld [vmem:[%s1016 + $0x68] sm:$0xff]
    %v1031 = vld [vmem:[%s1016 + $0x70] sm:$0xff]
    %v1032 = vld [vmem:[%s1016 + $0x78] sm:$0xff]
    %v1033 = vld [vmem:[%s1016 + $0x80] sm:$0xff]
    %v1034 = vld [vmem:[%s1016 + $0x88] sm:$0xff]
    %1035 = vmatprep.subr.mxu0 0.0
    %1036 = vmatpush1.msra.mxu0 %v1017
    %1037 = vmatprep.subr.mxu0 0.0
    %1038 = vmatpush1.msra.mxu0 %v1018
    %1039 = vmatprep.subr.mxu0 0.0
    %1040 = vmatpush1.msra.mxu0 %v1019
    %1041 = vmatprep.subr.mxu0 0.0
    %1042 = vmatpush1.msra.mxu0 %v1020
    %1043 = vmatprep.subr.mxu0 0.0
    %1044 = vmatpush1.msra.mxu0 %v1021
    %1045 = vmatprep.subr.mxu0 0.0
    %1046 = vmatpush1.msra.mxu0 %v1022
    %1047 = vmatprep.subr.mxu0 0.0
    %1048 = vmatpush1.msra.mxu0 %v1023
    %1049 = vmatprep.subr.mxu0 0.0
    %1050 = vmatpush1.msra.mxu0 %v1024
    %1051 = vmatprep.subr.mxu0 0.0
    %1052 = vmatpush1.msra.mxu0 %v1025
    %1053 = vmatprep.subr.mxu0 0.0
    %1054 = vmatpush1.msra.mxu0 %v1026
    %1055 = vmatprep.subr.mxu0 0.0
    %1056 = vmatpush1.msra.mxu0 %v1027
    %1057 = vmatprep.subr.mxu0 0.0
    %1058 = vmatpush1.msra.mxu0 %v1028
    %1059 = vmatprep.subr.mxu0 0.0
    %1060 = vmatpush1.msra.mxu0 %v1029
    %1061 = vmatprep.subr.mxu0 0.0
    %1062 = vmatpush1.msra.mxu0 %v1030
    %1063 = vmatprep.subr.mxu0 0.0
    %1064 = vmatpush1.msra.mxu0 %v1031
    %1065 = vmatprep.subr.mxu0 0.0
    %1066 = vmatpush1.msra.mxu0 %v1032
    %1067 = vmatprep.subr.mxu0 0.0
    %1068 = vmatpush1.msra.mxu0 %v1033
    %1069 = vmatprep.subr.mxu0 0.0
    %1070 = vmatpush1.msra.mxu0 %v1034
    %1071 = vmatprep.subr.mxu0 0.0
    %1072 = vmatpush1.msra.mxu0 0.0
    %1073 = vmatprep.subr.mxu0 0.0
    %1074 = vmatpush1.msra.mxu0 0.0
    %1075 = vmatprep.subr.mxu0 0.0
    %1076 = vmatpush1.msra.mxu0 0.0
    %1077 = vmatprep.subr.mxu0 0.0
    %1078 = vmatpush1.msra.mxu0 0.0
    %1079 = vmatprep.subr.mxu0 0.0
    %1080 = vmatpush1.msra.mxu0 0.0
    %1081 = vmatprep.subr.mxu0 0.0
    %1082 = vmatpush1.msra.mxu0 0.0
    %1083 = vmatprep.subr.mxu0 0.0
    %1084 = vmatpush1.msra.mxu0 0.0
    %1085 = vmatprep.subr.mxu0 0.0
    %1086 = vmatpush1.msra.mxu0 0.0
    %1087 = vmatprep.subr.mxu0 0.0
    %1088 = vmatpush1.msra.mxu0 0.0
    %1089 = vmatprep.subr.mxu0 0.0
    %1090 = vmatpush1.msra.mxu0 0.0
    %1091 = vmatprep.subr.mxu0 0.0
    %1092 = vmatpush1.msra.mxu0 0.0
    %1093 = vmatprep.subr.mxu0 0.0
    %1094 = vmatpush1.msra.mxu0 0.0
    %1095 = vmatprep.subr.mxu0 0.0
    %1096 = vmatpush1.msra.mxu0 0.0
    %1097 = vmatprep.subr.mxu0 0.0
    %1098 = vmatpush1.msra.mxu0 0.0
    %1099 = vmatprep.mubr.f32.mxu0 %v936
    %1100 = vmatmul.mubr.f32.gmra.mrb[0].mxu0 %v912
    %v1101 = vpop.f32.mrb[0].mxu0
    %v1102 = vadd.f32 0.0, %v1101
    %v1103 = vpop.f32.mrb[0].mxu0
    %1104 = vmatprep.mubr.f32.mxu0 %v939
    %1105 = vmatmul.mubr.f32.gmra.mrb[0].mxu0 %v914
    %v1106 = vpop.f32.mrb[0].mxu0
    %v1107 = vadd.f32 0.0, %v1106
    %v1108 = vpop.f32.mrb[0].mxu0
    %1109 = vdwg.mxu0
    %v1110 = vmax.f32 %v1008, %v1102
    %v1111 = vmax.f32 %v1013, %v1107
    %v1112 = vld [vmem:[%s5] sm:$0xff]
    %v1113 = vld [vmem:[%s5 + $0x8] sm:$0xff]
    %v1114 = vld [vmem:[%s5 + $0x10] sm:$0xff]
    %v1115 = vld [vmem:[%s5 + $0x18] sm:$0xff]
    %v1116 = vld [vmem:[%s5 + $0x20] sm:$0xff]
    %v1117 = vld [vmem:[%s5 + $0x28] sm:$0xff]
    %v1118 = vld [vmem:[%s5 + $0x30] sm:$0xff]
    %v1119 = vld [vmem:[%s5 + $0x38] sm:$0xff]
    %v1120 = vld [vmem:[%s5 + $0x40] sm:$0xff]
    %s1121 = scalar_lea.vmem %s5, 72
    %v1122 = vld [vmem:[%s1121] sm:$0xff]
    %v1123 = vld [vmem:[%s1121 + $0x8] sm:$0xff]
    %v1124 = vld [vmem:[%s1121 + $0x10] sm:$0xff]
    %v1125 = vld [vmem:[%s1121 + $0x18] sm:$0xff]
    %v1126 = vld [vmem:[%s1121 + $0x20] sm:$0xff]
    %v1127 = vld [vmem:[%s1121 + $0x28] sm:$0xff]
    %v1128 = vld [vmem:[%s1121 + $0x30] sm:$0xff]
    %v1129 = vld [vmem:[%s1121 + $0x38] sm:$0xff]
    %v1130 = vld [vmem:[%s1121 + $0x40] sm:$0xff]
    %v1133 = vrot.slane %v1110, 1
    %v1134 = vrot.slane %v1111, 1
    %v1135 = vsel %vm163, %v1133, %v1134
    %vm1136 = vcmask 588800
    %v1137 = vsel %vm1136, %v1135, 0
    %1139 = vmatprep.subr.mxu0 0.0
    %1140 = vmatpush1.msra.mxu0 %v1122
    %1141 = vmatprep.subr.mxu0 0.0
    %1142 = vmatpush1.msra.mxu0 %v1123
    %1143 = vmatprep.subr.mxu0 0.0
    %1144 = vmatpush1.msra.mxu0 %v1124
    %1145 = vmatprep.subr.mxu0 0.0
    %1146 = vmatpush1.msra.mxu0 %v1125
    %1147 = vmatprep.subr.mxu0 0.0
    %1148 = vmatpush1.msra.mxu0 %v1126
    %1149 = vmatprep.subr.mxu0 0.0
    %1150 = vmatpush1.msra.mxu0 %v1127
    %1151 = vmatprep.subr.mxu0 0.0
    %1152 = vmatpush1.msra.mxu0 %v1128
    %1153 = vmatprep.subr.mxu0 0.0
    %1154 = vmatpush1.msra.mxu0 %v1129
    %1155 = vmatprep.subr.mxu0 0.0
    %1156 = vmatpush1.msra.mxu0 %v1130
    %1157 = vmatprep.subr.mxu0 0.0
    %1158 = vmatpush1.msra.mxu0 0.0
    %1159 = vmatprep.subr.mxu0 0.0
    %1160 = vmatpush1.msra.mxu0 0.0
    %1161 = vmatprep.subr.mxu0 0.0
    %1162 = vmatpush1.msra.mxu0 0.0
    %1163 = vmatprep.subr.mxu0 0.0
    %1164 = vmatpush1.msra.mxu0 0.0
    %1165 = vmatprep.subr.mxu0 0.0
    %1166 = vmatpush1.msra.mxu0 0.0
    %1167 = vmatprep.subr.mxu0 0.0
    %1168 = vmatpush1.msra.mxu0 0.0
    %1169 = vmatprep.subr.mxu0 0.0
    %1170 = vmatpush1.msra.mxu0 0.0
    %1171 = vmatprep.subr.mxu0 0.0
    %1172 = vmatpush1.msra.mxu0 0.0
    %1173 = vmatprep.subr.mxu0 0.0
    %1174 = vmatpush1.msra.mxu0 0.0
    %1175 = vmatprep.subr.mxu0 0.0
    %1176 = vmatpush1.msra.mxu0 0.0
    %1177 = vmatprep.subr.mxu0 0.0
    %1178 = vmatpush1.msra.mxu0 0.0
    %1179 = vmatprep.subr.mxu0 0.0
    %1180 = vmatpush1.msra.mxu0 0.0
    %1181 = vmatprep.subr.mxu0 0.0
    %1182 = vmatpush1.msra.mxu0 0.0
    %1183 = vmatprep.subr.mxu0 0.0
    %1184 = vmatpush1.msra.mxu0 0.0
    %1185 = vmatprep.subr.mxu0 0.0
    %1186 = vmatpush1.msra.mxu0 0.0
    %1187 = vmatprep.subr.mxu0 0.0
    %1188 = vmatpush1.msra.mxu0 0.0
    %1189 = vmatprep.subr.mxu0 0.0
    %1190 = vmatpush1.msra.mxu0 0.0
    %1191 = vmatprep.subr.mxu0 0.0
    %1192 = vmatpush1.msra.mxu0 0.0
    %1193 = vmatprep.subr.mxu0 0.0
    %1194 = vmatpush1.msra.mxu0 0.0
    %1195 = vmatprep.subr.mxu0 0.0
    %1196 = vmatpush1.msra.mxu0 0.0
    %1197 = vmatprep.subr.mxu0 0.0
    %1198 = vmatpush1.msra.mxu0 0.0
    %1199 = vmatprep.subr.mxu0 0.0
    %1200 = vmatpush1.msra.mxu0 0.0
    %1201 = vmatprep.subr.mxu0 0.0
    %1202 = vmatpush1.msra.mxu0 0.0
    %1203 = vmatprep.mubr.f32.mxu0 0.0
    %1204 = vmatmul.mubr.f32.gmra.mrb[0].mxu0 %v1137
    %v1205 = vpop.f32.mrb[0].mxu0
    %v1206 = vadd.f32 0.0, %v1205
    %v1207 = vpop.f32.mrb[0].mxu0
    %1208 = vdwg.mxu0
    %v1209 = vsel %vm1136, %v1110, 0
    %1211 = vmatprep.subr.mxu0 0.0
    %1212 = vmatpush1.msra.mxu0 %v1112
    %1213 = vmatprep.subr.mxu0 0.0
    %1214 = vmatpush1.msra.mxu0 %v1113
    %1215 = vmatprep.subr.mxu0 0.0
    %1216 = vmatpush1.msra.mxu0 %v1114
    %1217 = vmatprep.subr.mxu0 0.0
    %1218 = vmatpush1.msra.mxu0 %v1115
    %1219 = vmatprep.subr.mxu0 0.0
    %1220 = vmatpush1.msra.mxu0 %v1116
    %1221 = vmatprep.subr.mxu0 0.0
    %1222 = vmatpush1.msra.mxu0 %v1117
    %1223 = vmatprep.subr.mxu0 0.0
    %1224 = vmatpush1.msra.mxu0 %v1118
    %1225 = vmatprep.subr.mxu0 0.0
    %1226 = vmatpush1.msra.mxu0 %v1119
    %1227 = vmatprep.subr.mxu0 0.0
    %1228 = vmatpush1.msra.mxu0 %v1120
    %1229 = vmatprep.subr.mxu0 0.0
    %1230 = vmatpush1.msra.mxu0 0.0
    %1231 = vmatprep.subr.mxu0 0.0
    %1232 = vmatpush1.msra.mxu0 0.0
    %1233 = vmatprep.subr.mxu0 0.0
    %1234 = vmatpush1.msra.mxu0 0.0
    %1235 = vmatprep.subr.mxu0 0.0
    %1236 = vmatpush1.msra.mxu0 0.0
    %1237 = vmatprep.subr.mxu0 0.0
    %1238 = vmatpush1.msra.mxu0 0.0
    %1239 = vmatprep.subr.mxu0 0.0
    %1240 = vmatpush1.msra.mxu0 0.0
    %1241 = vmatprep.subr.mxu0 0.0
    %1242 = vmatpush1.msra.mxu0 0.0
    %1243 = vmatprep.subr.mxu0 0.0
    %1244 = vmatpush1.msra.mxu0 0.0
    %1245 = vmatprep.subr.mxu0 0.0
    %1246 = vmatpush1.msra.mxu0 0.0
    %1247 = vmatprep.subr.mxu0 0.0
    %1248 = vmatpush1.msra.mxu0 0.0
    %1249 = vmatprep.subr.mxu0 0.0
    %1250 = vmatpush1.msra.mxu0 0.0
    %1251 = vmatprep.subr.mxu0 0.0
    %1252 = vmatpush1.msra.mxu0 0.0
    %1253 = vmatprep.subr.mxu0 0.0
    %1254 = vmatpush1.msra.mxu0 0.0
    %1255 = vmatprep.subr.mxu0 0.0
    %1256 = vmatpush1.msra.mxu0 0.0
    %1257 = vmatprep.subr.mxu0 0.0
    %1258 = vmatpush1.msra.mxu0 0.0
    %1259 = vmatprep.subr.mxu0 0.0
    %1260 = vmatpush1.msra.mxu0 0.0
    %1261 = vmatprep.subr.mxu0 0.0
    %1262 = vmatpush1.msra.mxu0 0.0
    %1263 = vmatprep.subr.mxu0 0.0
    %1264 = vmatpush1.msra.mxu0 0.0
    %1265 = vmatprep.subr.mxu0 0.0
    %1266 = vmatpush1.msra.mxu0 0.0
    %1267 = vmatprep.subr.mxu0 0.0
    %1268 = vmatpush1.msra.mxu0 0.0
    %1269 = vmatprep.subr.mxu0 0.0
    %1270 = vmatpush1.msra.mxu0 0.0
    %1271 = vmatprep.subr.mxu0 0.0
    %1272 = vmatpush1.msra.mxu0 0.0
    %1273 = vmatprep.subr.mxu0 0.0
    %1274 = vmatpush1.msra.mxu0 0.0
    %1275 = vmatprep.mubr.f32.mxu0 0.0
    %1276 = vmatmul.mubr.f32.gmra.mrb[0].mxu0 %v1209
    %v1277 = vpop.f32.mrb[0].mxu0
    %v1278 = vadd.f32 %v1206, %v1277
    %v1279 = vpop.f32.mrb[0].mxu0
    %1280 = vdwg.mxu0
    %s1281 = scalar_lea.vmem %s5, 144
    %v1282 = vld [vmem:[%s1281] sm:$0xff]
    %v1283 = vld [vmem:[%s1281 + $0x8] sm:$0xff]
    %v1284 = vld [vmem:[%s1281 + $0x10] sm:$0xff]
    %v1285 = vld [vmem:[%s1281 + $0x18] sm:$0xff]
    %v1286 = vld [vmem:[%s1281 + $0x20] sm:$0xff]
    %v1287 = vld [vmem:[%s1281 + $0x28] sm:$0xff]
    %v1288 = vld [vmem:[%s1281 + $0x30] sm:$0xff]
    %v1289 = vld [vmem:[%s1281 + $0x38] sm:$0xff]
    %v1290 = vld [vmem:[%s1281 + $0x40] sm:$0xff]
    %v1291 = vrot.slane %v1110, 2
    %v1292 = vrot.slane %v1111, 2
    %v1293 = vsel %vm372, %v1291, %v1292
    %v1294 = vsel %vm1136, %v1293, 0
    %1296 = vmatprep.subr.mxu0 0.0
    %1297 = vmatpush1.msra.mxu0 %v1282
    %1298 = vmatprep.subr.mxu0 0.0
    %1299 = vmatpush1.msra.mxu0 %v1283
    %1300 = vmatprep.subr.mxu0 0.0
    %1301 = vmatpush1.msra.mxu0 %v1284
    %1302 = vmatprep.subr.mxu0 0.0
    %1303 = vmatpush1.msra.mxu0 %v1285
    %1304 = vmatprep.subr.mxu0 0.0
    %1305 = vmatpush1.msra.mxu0 %v1286
    %1306 = vmatprep.subr.mxu0 0.0
    %1307 = vmatpush1.msra.mxu0 %v1287
    %1308 = vmatprep.subr.mxu0 0.0
    %1309 = vmatpush1.msra.mxu0 %v1288
    %1310 = vmatprep.subr.mxu0 0.0
    %1311 = vmatpush1.msra.mxu0 %v1289
    %1312 = vmatprep.subr.mxu0 0.0
    %1313 = vmatpush1.msra.mxu0 %v1290
    %1314 = vmatprep.subr.mxu0 0.0
    %1315 = vmatpush1.msra.mxu0 0.0
    %1316 = vmatprep.subr.mxu0 0.0
    %1317 = vmatpush1.msra.mxu0 0.0
    %1318 = vmatprep.subr.mxu0 0.0
    %1319 = vmatpush1.msra.mxu0 0.0
    %1320 = vmatprep.subr.mxu0 0.0
    %1321 = vmatpush1.msra.mxu0 0.0
    %1322 = vmatprep.subr.mxu0 0.0
    %1323 = vmatpush1.msra.mxu0 0.0
    %1324 = vmatprep.subr.mxu0 0.0
    %1325 = vmatpush1.msra.mxu0 0.0
    %1326 = vmatprep.subr.mxu0 0.0
    %1327 = vmatpush1.msra.mxu0 0.0
    %1328 = vmatprep.subr.mxu0 0.0
    %1329 = vmatpush1.msra.mxu0 0.0
    %1330 = vmatprep.subr.mxu0 0.0
    %1331 = vmatpush1.msra.mxu0 0.0
    %1332 = vmatprep.subr.mxu0 0.0
    %1333 = vmatpush1.msra.mxu0 0.0
    %1334 = vmatprep.subr.mxu0 0.0
    %1335 = vmatpush1.msra.mxu0 0.0
    %1336 = vmatprep.subr.mxu0 0.0
    %1337 = vmatpush1.msra.mxu0 0.0
    %1338 = vmatprep.subr.mxu0 0.0
    %1339 = vmatpush1.msra.mxu0 0.0
    %1340 = vmatprep.subr.mxu0 0.0
    %1341 = vmatpush1.msra.mxu0 0.0
    %1342 = vmatprep.subr.mxu0 0.0
    %1343 = vmatpush1.msra.mxu0 0.0
    %1344 = vmatprep.subr.mxu0 0.0
    %1345 = vmatpush1.msra.mxu0 0.0
    %1346 = vmatprep.subr.mxu0 0.0
    %1347 = vmatpush1.msra.mxu0 0.0
    %1348 = vmatprep.subr.mxu0 0.0
    %1349 = vmatpush1.msra.mxu0 0.0
    %1350 = vmatprep.subr.mxu0 0.0
    %1351 = vmatpush1.msra.mxu0 0.0
    %1352 = vmatprep.subr.mxu0 0.0
    %1353 = vmatpush1.msra.mxu0 0.0
    %1354 = vmatprep.subr.mxu0 0.0
    %1355 = vmatpush1.msra.mxu0 0.0
    %1356 = vmatprep.subr.mxu0 0.0
    %1357 = vmatpush1.msra.mxu0 0.0
    %1358 = vmatprep.subr.mxu0 0.0
    %1359 = vmatpush1.msra.mxu0 0.0
    %1360 = vmatprep.mubr.f32.mxu0 0.0
    %1361 = vmatmul.mubr.f32.gmra.mrb[0].mxu0 %v1294
    %v1362 = vpop.f32.mrb[0].mxu0
    %v1363 = vadd.f32 0.0, %v1362
    %v1364 = vpop.f32.mrb[0].mxu0
    %1365 = vdwg.mxu0
    %v1366 = vadd.f32 %v1278, %v1363
    %s1367 = scalar_lea.vmem %s5, 216
    %v1368 = vld [vmem:[%s1367] sm:$0xff]
    %v1369 = vld [vmem:[%s1367 + $0x8] sm:$0xff]
    %v1370 = vld [vmem:[%s1367 + $0x10] sm:$0xff]
    %v1371 = vld [vmem:[%s1367 + $0x18] sm:$0xff]
    %v1372 = vld [vmem:[%s1367 + $0x20] sm:$0xff]
    %v1373 = vld [vmem:[%s1367 + $0x28] sm:$0xff]
    %v1374 = vld [vmem:[%s1367 + $0x30] sm:$0xff]
    %v1375 = vld [vmem:[%s1367 + $0x38] sm:$0xff]
    %v1376 = vld [vmem:[%s1367 + $0x40] sm:$0xff]
    %v1377 = vrot.slane %v1110, 3
    %v1378 = vrot.slane %v1111, 3
    %v1379 = vsel %vm490, %v1377, %v1378
    %v1380 = vsel %vm1136, %v1379, 0
    %1382 = vmatprep.subr.mxu0 0.0
    %1383 = vmatpush1.msra.mxu0 %v1368
    %1384 = vmatprep.subr.mxu0 0.0
    %1385 = vmatpush1.msra.mxu0 %v1369
    %1386 = vmatprep.subr.mxu0 0.0
    %1387 = vmatpush1.msra.mxu0 %v1370
    %1388 = vmatprep.subr.mxu0 0.0
    %1389 = vmatpush1.msra.mxu0 %v1371
    %1390 = vmatprep.subr.mxu0 0.0
    %1391 = vmatpush1.msra.mxu0 %v1372
    %1392 = vmatprep.subr.mxu0 0.0
    %1393 = vmatpush1.msra.mxu0 %v1373
    %1394 = vmatprep.subr.mxu0 0.0
    %1395 = vmatpush1.msra.mxu0 %v1374
    %1396 = vmatprep.subr.mxu0 0.0
    %1397 = vmatpush1.msra.mxu0 %v1375
    %1398 = vmatprep.subr.mxu0 0.0
    %1399 = vmatpush1.msra.mxu0 %v1376
    %1400 = vmatprep.subr.mxu0 0.0
    %1401 = vmatpush1.msra.mxu0 0.0
    %1402 = vmatprep.subr.mxu0 0.0
    %1403 = vmatpush1.msra.mxu0 0.0
    %1404 = vmatprep.subr.mxu0 0.0
    %1405 = vmatpush1.msra.mxu0 0.0
    %1406 = vmatprep.subr.mxu0 0.0
    %1407 = vmatpush1.msra.mxu0 0.0
    %1408 = vmatprep.subr.mxu0 0.0
    %1409 = vmatpush1.msra.mxu0 0.0
    %1410 = vmatprep.subr.mxu0 0.0
    %1411 = vmatpush1.msra.mxu0 0.0
    %1412 = vmatprep.subr.mxu0 0.0
    %1413 = vmatpush1.msra.mxu0 0.0
    %1414 = vmatprep.subr.mxu0 0.0
    %1415 = vmatpush1.msra.mxu0 0.0
    %1416 = vmatprep.subr.mxu0 0.0
    %1417 = vmatpush1.msra.mxu0 0.0
    %1418 = vmatprep.subr.mxu0 0.0
    %1419 = vmatpush1.msra.mxu0 0.0
    %1420 = vmatprep.subr.mxu0 0.0
    %1421 = vmatpush1.msra.mxu0 0.0
    %1422 = vmatprep.subr.mxu0 0.0
    %1423 = vmatpush1.msra.mxu0 0.0
    %1424 = vmatprep.subr.mxu0 0.0
    %1425 = vmatpush1.msra.mxu0 0.0
    %1426 = vmatprep.subr.mxu0 0.0
    %1427 = vmatpush1.msra.mxu0 0.0
    %1428 = vmatprep.subr.mxu0 0.0
    %1429 = vmatpush1.msra.mxu0 0.0
    %1430 = vmatprep.subr.mxu0 0.0
    %1431 = vmatpush1.msra.mxu0 0.0
    %1432 = vmatprep.subr.mxu0 0.0
    %1433 = vmatpush1.msra.mxu0 0.0
    %1434 = vmatprep.subr.mxu0 0.0
    %1435 = vmatpush1.msra.mxu0 0.0
    %1436 = vmatprep.subr.mxu0 0.0
    %1437 = vmatpush1.msra.mxu0 0.0
    %1438 = vmatprep.subr.mxu0 0.0
    %1439 = vmatpush1.msra.mxu0 0.0
    %1440 = vmatprep.subr.mxu0 0.0
    %1441 = vmatpush1.msra.mxu0 0.0
    %1442 = vmatprep.subr.mxu0 0.0
    %1443 = vmatpush1.msra.mxu0 0.0
    %1444 = vmatprep.subr.mxu0 0.0
    %1445 = vmatpush1.msra.mxu0 0.0
    %1446 = vmatprep.mubr.f32.mxu0 0.0
    %1447 = vmatmul.mubr.f32.gmra.mrb[0].mxu0 %v1380
    %v1448 = vpop.f32.mrb[0].mxu0
    %v1449 = vadd.f32 0.0, %v1448
    %v1450 = vpop.f32.mrb[0].mxu0
    %1451 = vdwg.mxu0
    %v1452 = vadd.f32 %v1366, %v1449
    %s1453 = scalar_lea.vmem %s5, 288
    %v1454 = vld [vmem:[%s1453] sm:$0xff]
    %v1455 = vld [vmem:[%s1453 + $0x8] sm:$0xff]
    %v1456 = vld [vmem:[%s1453 + $0x10] sm:$0xff]
    %v1457 = vld [vmem:[%s1453 + $0x18] sm:$0xff]
    %v1458 = vld [vmem:[%s1453 + $0x20] sm:$0xff]
    %v1459 = vld [vmem:[%s1453 + $0x28] sm:$0xff]
    %v1460 = vld [vmem:[%s1453 + $0x30] sm:$0xff]
    %v1461 = vld [vmem:[%s1453 + $0x38] sm:$0xff]
    %v1462 = vld [vmem:[%s1453 + $0x40] sm:$0xff]
    %v1463 = vrot.slane %v1110, 4
    %v1464 = vrot.slane %v1111, 4
    %v1465 = vsel %vm178, %v1463, %v1464
    %v1466 = vsel %vm1136, %v1465, 0
    %1468 = vmatprep.subr.mxu0 0.0
    %1469 = vmatpush1.msra.mxu0 %v1454
    %1470 = vmatprep.subr.mxu0 0.0
    %1471 = vmatpush1.msra.mxu0 %v1455
    %1472 = vmatprep.subr.mxu0 0.0
    %1473 = vmatpush1.msra.mxu0 %v1456
    %1474 = vmatprep.subr.mxu0 0.0
    %1475 = vmatpush1.msra.mxu0 %v1457
    %1476 = vmatprep.subr.mxu0 0.0
    %1477 = vmatpush1.msra.mxu0 %v1458
    %1478 = vmatprep.subr.mxu0 0.0
    %1479 = vmatpush1.msra.mxu0 %v1459
    %1480 = vmatprep.subr.mxu0 0.0
    %1481 = vmatpush1.msra.mxu0 %v1460
    %1482 = vmatprep.subr.mxu0 0.0
    %1483 = vmatpush1.msra.mxu0 %v1461
    %1484 = vmatprep.subr.mxu0 0.0
    %1485 = vmatpush1.msra.mxu0 %v1462
    %1486 = vmatprep.subr.mxu0 0.0
    %1487 = vmatpush1.msra.mxu0 0.0
    %1488 = vmatprep.subr.mxu0 0.0
    %1489 = vmatpush1.msra.mxu0 0.0
    %1490 = vmatprep.subr.mxu0 0.0
    %1491 = vmatpush1.msra.mxu0 0.0
    %1492 = vmatprep.subr.mxu0 0.0
    %1493 = vmatpush1.msra.mxu0 0.0
    %1494 = vmatprep.subr.mxu0 0.0
    %1495 = vmatpush1.msra.mxu0 0.0
    %1496 = vmatprep.subr.mxu0 0.0
    %1497 = vmatpush1.msra.mxu0 0.0
    %1498 = vmatprep.subr.mxu0 0.0
    %1499 = vmatpush1.msra.mxu0 0.0
    %1500 = vmatprep.subr.mxu0 0.0
    %1501 = vmatpush1.msra.mxu0 0.0
    %1502 = vmatprep.subr.mxu0 0.0
    %1503 = vmatpush1.msra.mxu0 0.0
    %1504 = vmatprep.subr.mxu0 0.0
    %1505 = vmatpush1.msra.mxu0 0.0
    %1506 = vmatprep.subr.mxu0 0.0
    %1507 = vmatpush1.msra.mxu0 0.0
    %1508 = vmatprep.subr.mxu0 0.0
    %1509 = vmatpush1.msra.mxu0 0.0
    %1510 = vmatprep.subr.mxu0 0.0
    %1511 = vmatpush1.msra.mxu0 0.0
    %1512 = vmatprep.subr.mxu0 0.0
    %1513 = vmatpush1.msra.mxu0 0.0
    %1514 = vmatprep.subr.mxu0 0.0
    %1515 = vmatpush1.msra.mxu0 0.0
    %1516 = vmatprep.subr.mxu0 0.0
    %1517 = vmatpush1.msra.mxu0 0.0
    %1518 = vmatprep.subr.mxu0 0.0
    %1519 = vmatpush1.msra.mxu0 0.0
    %1520 = vmatprep.subr.mxu0 0.0
    %1521 = vmatpush1.msra.mxu0 0.0
    %1522 = vmatprep.subr.mxu0 0.0
    %1523 = vmatpush1.msra.mxu0 0.0
    %1524 = vmatprep.subr.mxu0 0.0
    %1525 = vmatpush1.msra.mxu0 0.0
    %1526 = vmatprep.subr.mxu0 0.0
    %1527 = vmatpush1.msra.mxu0 0.0
    %1528 = vmatprep.subr.mxu0 0.0
    %1529 = vmatpush1.msra.mxu0 0.0
    %1530 = vmatprep.subr.mxu0 0.0
    %1531 = vmatpush1.msra.mxu0 0.0
    %1532 = vmatprep.mubr.f32.mxu0 0.0
    %1533 = vmatmul.mubr.f32.gmra.mrb[0].mxu0 %v1466
    %v1534 = vpop.f32.mrb[0].mxu0
    %v1535 = vadd.f32 0.0, %v1534
    %v1536 = vpop.f32.mrb[0].mxu0
    %1537 = vdwg.mxu0
    %v1538 = vadd.f32 %v1452, %v1535
    %v1539 = vld [vmem:[%s6] sm:$0x1]
    %v1541 = vlaneseq
    %v1542 = vshrl.u32 %v1541, 7
    %v1543 = vsub.s32 0, %v1542
    %v1544 = vrot.slane %v1539, %v1543
    %v1546 = vadd.f32 %v1538, %v1544
    %v1547 = vmax.f32 %v1546, 0.0
    %v1548 = vld [vmem:[#allocation7] sm:$0xf]
    %vm1549 = vcmask 64512
    %v1551 = vsel %vm1549, %v1548, 0
    %1553 = vmatprep.subr.mxu0 0.0
    %1554 = vmatpush1.msra.mxu0 %v1547
    %1555 = vmatprep.subr.mxu0 0.0
    %1556 = vmatpush1.msra.mxu0 0.0
    %1557 = vmatprep.subr.mxu0 0.0
    %1558 = vmatpush1.msra.mxu0 0.0
    %1559 = vmatprep.subr.mxu0 0.0
    %1560 = vmatpush1.msra.mxu0 0.0
    %1561 = vmatprep.subr.mxu0 0.0
    %1562 = vmatpush1.msra.mxu0 0.0
    %1563 = vmatprep.subr.mxu0 0.0
    %1564 = vmatpush1.msra.mxu0 0.0
    %1565 = vmatprep.subr.mxu0 0.0
    %1566 = vmatpush1.msra.mxu0 0.0
    %1567 = vmatprep.subr.mxu0 0.0
    %1568 = vmatpush1.msra.mxu0 0.0
    %1569 = vmatprep.subr.mxu0 0.0
    %1570 = vmatpush1.msra.mxu0 0.0
    %1571 = vmatprep.subr.mxu0 0.0
    %1572 = vmatpush1.msra.mxu0 0.0
    %1573 = vmatprep.subr.mxu0 0.0
    %1574 = vmatpush1.msra.mxu0 0.0
    %1575 = vmatprep.subr.mxu0 0.0
    %1576 = vmatpush1.msra.mxu0 0.0
    %1577 = vmatprep.subr.mxu0 0.0
    %1578 = vmatpush1.msra.mxu0 0.0
    %1579 = vmatprep.subr.mxu0 0.0
    %1580 = vmatpush1.msra.mxu0 0.0
    %1581 = vmatprep.subr.mxu0 0.0
    %1582 = vmatpush1.msra.mxu0 0.0
    %1583 = vmatprep.subr.mxu0 0.0
    %1584 = vmatpush1.msra.mxu0 0.0
    %1585 = vmatprep.subr.mxu0 0.0
    %1586 = vmatpush1.msra.mxu0 0.0
    %1587 = vmatprep.subr.mxu0 0.0
    %1588 = vmatpush1.msra.mxu0 0.0
    %1589 = vmatprep.subr.mxu0 0.0
    %1590 = vmatpush1.msra.mxu0 0.0
    %1591 = vmatprep.subr.mxu0 0.0
    %1592 = vmatpush1.msra.mxu0 0.0
    %1593 = vmatprep.subr.mxu0 0.0
    %1594 = vmatpush1.msra.mxu0 0.0
    %1595 = vmatprep.subr.mxu0 0.0
    %1596 = vmatpush1.msra.mxu0 0.0
    %1597 = vmatprep.subr.mxu0 0.0
    %1598 = vmatpush1.msra.mxu0 0.0
    %1599 = vmatprep.subr.mxu0 0.0
    %1600 = vmatpush1.msra.mxu0 0.0
    %1601 = vmatprep.subr.mxu0 0.0
    %1602 = vmatpush1.msra.mxu0 0.0
    %1603 = vmatprep.subr.mxu0 0.0
    %1604 = vmatpush1.msra.mxu0 0.0
    %1605 = vmatprep.subr.mxu0 0.0
    %1606 = vmatpush1.msra.mxu0 0.0
    %1607 = vmatprep.subr.mxu0 0.0
    %1608 = vmatpush1.msra.mxu0 0.0
    %1609 = vmatprep.subr.mxu0 0.0
    %1610 = vmatpush1.msra.mxu0 0.0
    %1611 = vmatprep.subr.mxu0 0.0
    %1612 = vmatpush1.msra.mxu0 0.0
    %1613 = vmatprep.subr.mxu0 0.0
    %1614 = vmatpush1.msra.mxu0 0.0
    %1615 = vmatprep.subr.mxu0 0.0
    %1616 = vmatpush1.msra.mxu0 0.0
    %1617 = vmatprep.mubr.f32.mxu0 0.0
    %1618 = vmatmul.mubr.f32.gmra.mrb[0].mxu0 %v1551
    %v1619 = vpop.f32.mrb[0].mxu0
    %v1620 = vadd.f32 0.0, %v1619
    %v1621 = vpop.f32.mrb[0].mxu0
    %1622 = vdwg.mxu0
    %s1623 = scalar_lea.vmem [#allocation7], 4
    %v1624 = vld [vmem:[%s1623] sm:$0xf]
    %v1626 = vsel %vm1549, %v1624, 0
    %1628 = vmatprep.subr.mxu0 0.0
    %1629 = vmatpush1.msra.mxu0 %v1547
    %1630 = vmatprep.subr.mxu0 0.0
    %1631 = vmatpush1.msra.mxu0 0.0
    %1632 = vmatprep.subr.mxu0 0.0
    %1633 = vmatpush1.msra.mxu0 0.0
    %1634 = vmatprep.subr.mxu0 0.0
    %1635 = vmatpush1.msra.mxu0 0.0
    %1636 = vmatprep.subr.mxu0 0.0
    %1637 = vmatpush1.msra.mxu0 0.0
    %1638 = vmatprep.subr.mxu0 0.0
    %1639 = vmatpush1.msra.mxu0 0.0
    %1640 = vmatprep.subr.mxu0 0.0
    %1641 = vmatpush1.msra.mxu0 0.0
    %1642 = vmatprep.subr.mxu0 0.0
    %1643 = vmatpush1.msra.mxu0 0.0
    %1644 = vmatprep.subr.mxu0 0.0
    %1645 = vmatpush1.msra.mxu0 0.0
    %1646 = vmatprep.subr.mxu0 0.0
    %1647 = vmatpush1.msra.mxu0 0.0
    %1648 = vmatprep.subr.mxu0 0.0
    %1649 = vmatpush1.msra.mxu0 0.0
    %1650 = vmatprep.subr.mxu0 0.0
    %1651 = vmatpush1.msra.mxu0 0.0
    %1652 = vmatprep.subr.mxu0 0.0
    %1653 = vmatpush1.msra.mxu0 0.0
    %1654 = vmatprep.subr.mxu0 0.0
    %1655 = vmatpush1.msra.mxu0 0.0
    %1656 = vmatprep.subr.mxu0 0.0
    %1657 = vmatpush1.msra.mxu0 0.0
    %1658 = vmatprep.subr.mxu0 0.0
    %1659 = vmatpush1.msra.mxu0 0.0
    %1660 = vmatprep.subr.mxu0 0.0
    %1661 = vmatpush1.msra.mxu0 0.0
    %1662 = vmatprep.subr.mxu0 0.0
    %1663 = vmatpush1.msra.mxu0 0.0
    %1664 = vmatprep.subr.mxu0 0.0
    %1665 = vmatpush1.msra.mxu0 0.0
    %1666 = vmatprep.subr.mxu0 0.0
    %1667 = vmatpush1.msra.mxu0 0.0
    %1668 = vmatprep.subr.mxu0 0.0
    %1669 = vmatpush1.msra.mxu0 0.0
    %1670 = vmatprep.subr.mxu0 0.0
    %1671 = vmatpush1.msra.mxu0 0.0
    %1672 = vmatprep.subr.mxu0 0.0
    %1673 = vmatpush1.msra.mxu0 0.0
    %1674 = vmatprep.subr.mxu0 0.0
    %1675 = vmatpush1.msra.mxu0 0.0
    %1676 = vmatprep.subr.mxu0 0.0
    %1677 = vmatpush1.msra.mxu0 0.0
    %1678 = vmatprep.subr.mxu0 0.0
    %1679 = vmatpush1.msra.mxu0 0.0
    %1680 = vmatprep.subr.mxu0 0.0
    %1681 = vmatpush1.msra.mxu0 0.0
    %1682 = vmatprep.subr.mxu0 0.0
    %1683 = vmatpush1.msra.mxu0 0.0
    %1684 = vmatprep.subr.mxu0 0.0
    %1685 = vmatpush1.msra.mxu0 0.0
    %1686 = vmatprep.subr.mxu0 0.0
    %1687 = vmatpush1.msra.mxu0 0.0
    %1688 = vmatprep.subr.mxu0 0.0
    %1689 = vmatpush1.msra.mxu0 0.0
    %1690 = vmatprep.subr.mxu0 0.0
    %1691 = vmatpush1.msra.mxu0 0.0
    %1692 = vmatprep.mubr.f32.mxu0 0.0
    %1693 = vmatmul.mubr.f32.gmra.mrb[0].mxu0 %v1626
    %v1694 = vpop.f32.mrb[0].mxu0
    %v1695 = vadd.f32 0.0, %v1694
    %v1696 = vpop.f32.mrb[0].mxu0
    %1697 = vdwg.mxu0
    %v1698 = vmax.f32 %v1620, %v1695
    %v1699 = vld [vmem:[%s8] sm:$0xff]
    %v1700 = vld [vmem:[%s8 + $0x8] sm:$0xff]
    %v1701 = vld [vmem:[%s8 + $0x10] sm:$0xff]
    %v1702 = vld [vmem:[%s8 + $0x18] sm:$0xff]
    %v1703 = vld [vmem:[%s8 + $0x20] sm:$0xff]
    %v1704 = vld [vmem:[%s8 + $0x28] sm:$0xff]
    %v1705 = vld [vmem:[%s8 + $0x30] sm:$0xff]
    %v1706 = vld [vmem:[%s8 + $0x38] sm:$0xff]
    %v1707 = vld [vmem:[%s8 + $0x40] sm:$0xff]
    %v1708 = vld [vmem:[%s8 + $0x48] sm:$0xff]
    %v1709 = vld [vmem:[%s8 + $0x50] sm:$0xff]
    %v1710 = vld [vmem:[%s8 + $0x58] sm:$0xff]
    %v1711 = vld [vmem:[%s8 + $0x60] sm:$0xff]
    %v1712 = vld [vmem:[%s8 + $0x68] sm:$0xff]
    %v1713 = vld [vmem:[%s8 + $0x70] sm:$0xff]
    %v1714 = vld [vmem:[%s8 + $0x78] sm:$0xff]
    %1715 = vmatprep.subr.mxu0 0.0
    %1716 = vmatpush1.msra.mxu0 %v1699
    %1717 = vmatprep.subr.mxu0 0.0
    %1718 = vmatpush1.msra.mxu0 %v1700
    %1719 = vmatprep.subr.mxu0 0.0
    %1720 = vmatpush1.msra.mxu0 %v1701
    %1721 = vmatprep.subr.mxu0 0.0
    %1722 = vmatpush1.msra.mxu0 %v1702
    %1723 = vmatprep.subr.mxu0 0.0
    %1724 = vmatpush1.msra.mxu0 %v1703
    %1725 = vmatprep.subr.mxu0 0.0
    %1726 = vmatpush1.msra.mxu0 %v1704
    %1727 = vmatprep.subr.mxu0 0.0
    %1728 = vmatpush1.msra.mxu0 %v1705
    %1729 = vmatprep.subr.mxu0 0.0
    %1730 = vmatpush1.msra.mxu0 %v1706
    %1731 = vmatprep.subr.mxu0 0.0
    %1732 = vmatpush1.msra.mxu0 %v1707
    %1733 = vmatprep.subr.mxu0 0.0
    %1734 = vmatpush1.msra.mxu0 %v1708
    %1735 = vmatprep.subr.mxu0 0.0
    %1736 = vmatpush1.msra.mxu0 %v1709
    %1737 = vmatprep.subr.mxu0 0.0
    %1738 = vmatpush1.msra.mxu0 %v1710
    %1739 = vmatprep.subr.mxu0 0.0
    %1740 = vmatpush1.msra.mxu0 %v1711
    %1741 = vmatprep.subr.mxu0 0.0
    %1742 = vmatpush1.msra.mxu0 %v1712
    %1743 = vmatprep.subr.mxu0 0.0
    %1744 = vmatpush1.msra.mxu0 %v1713
    %1745 = vmatprep.subr.mxu0 0.0
    %1746 = vmatpush1.msra.mxu0 %v1714
    %1747 = vmatprep.subr.mxu0 0.0
    %1748 = vmatpush1.msra.mxu0 0.0
    %1749 = vmatprep.subr.mxu0 0.0
    %1750 = vmatpush1.msra.mxu0 0.0
    %1751 = vmatprep.subr.mxu0 0.0
    %1752 = vmatpush1.msra.mxu0 0.0
    %1753 = vmatprep.subr.mxu0 0.0
    %1754 = vmatpush1.msra.mxu0 0.0
    %1755 = vmatprep.subr.mxu0 0.0
    %1756 = vmatpush1.msra.mxu0 0.0
    %1757 = vmatprep.subr.mxu0 0.0
    %1758 = vmatpush1.msra.mxu0 0.0
    %1759 = vmatprep.subr.mxu0 0.0
    %1760 = vmatpush1.msra.mxu0 0.0
    %1761 = vmatprep.subr.mxu0 0.0
    %1762 = vmatpush1.msra.mxu0 0.0
    %1763 = vmatprep.subr.mxu0 0.0
    %1764 = vmatpush1.msra.mxu0 0.0
    %1765 = vmatprep.subr.mxu0 0.0
    %1766 = vmatpush1.msra.mxu0 0.0
    %1767 = vmatprep.subr.mxu0 0.0
    %1768 = vmatpush1.msra.mxu0 0.0
    %1769 = vmatprep.subr.mxu0 0.0
    %1770 = vmatpush1.msra.mxu0 0.0
    %1771 = vmatprep.subr.mxu0 0.0
    %1772 = vmatpush1.msra.mxu0 0.0
    %1773 = vmatprep.subr.mxu0 0.0
    %1774 = vmatpush1.msra.mxu0 0.0
    %1775 = vmatprep.subr.mxu0 0.0
    %1776 = vmatpush1.msra.mxu0 0.0
    %1777 = vmatprep.subr.mxu0 0.0
    %1778 = vmatpush1.msra.mxu0 0.0
    %1779 = vmatprep.mubr.f32.mxu0 0.0
    %1780 = vmatmul.mubr.f32.gmra.mrb[0].mxu0 %v1698
    %v1781 = vpop.f32.mrb[0].mxu0
    %v1782 = vadd.f32 0.0, %v1781
    %v1783 = vpop.f32.mrb[0].mxu0
    %1784 = vdwg.mxu0
    %s1785 = scalar_lea.vmem %s8, 128
    %v1786 = vld [vmem:[%s1785] sm:$0xff]
    %v1787 = vld [vmem:[%s1785 + $0x8] sm:$0xff]
    %v1788 = vld [vmem:[%s1785 + $0x10] sm:$0xff]
    %v1789 = vld [vmem:[%s1785 + $0x18] sm:$0xff]
    %v1790 = vld [vmem:[%s1785 + $0x20] sm:$0xff]
    %v1791 = vld [vmem:[%s1785 + $0x28] sm:$0xff]
    %v1792 = vld [vmem:[%s1785 + $0x30] sm:$0xff]
    %v1793 = vld [vmem:[%s1785 + $0x38] sm:$0xff]
    %v1794 = vld [vmem:[%s1785 + $0x40] sm:$0xff]
    %v1795 = vld [vmem:[%s1785 + $0x48] sm:$0xff]
    %v1796 = vld [vmem:[%s1785 + $0x50] sm:$0xff]
    %v1797 = vld [vmem:[%s1785 + $0x58] sm:$0xff]
    %v1798 = vld [vmem:[%s1785 + $0x60] sm:$0xff]
    %v1799 = vld [vmem:[%s1785 + $0x68] sm:$0xff]
    %v1800 = vld [vmem:[%s1785 + $0x70] sm:$0xff]
    %v1801 = vld [vmem:[%s1785 + $0x78] sm:$0xff]
    %1802 = vmatprep.subr.mxu0 0.0
    %1803 = vmatpush1.msra.mxu0 %v1786
    %1804 = vmatprep.subr.mxu0 0.0
    %1805 = vmatpush1.msra.mxu0 %v1787
    %1806 = vmatprep.subr.mxu0 0.0
    %1807 = vmatpush1.msra.mxu0 %v1788
    %1808 = vmatprep.subr.mxu0 0.0
    %1809 = vmatpush1.msra.mxu0 %v1789
    %1810 = vmatprep.subr.mxu0 0.0
    %1811 = vmatpush1.msra.mxu0 %v1790
    %1812 = vmatprep.subr.mxu0 0.0
    %1813 = vmatpush1.msra.mxu0 %v1791
    %1814 = vmatprep.subr.mxu0 0.0
    %1815 = vmatpush1.msra.mxu0 %v1792
    %1816 = vmatprep.subr.mxu0 0.0
    %1817 = vmatpush1.msra.mxu0 %v1793
    %1818 = vmatprep.subr.mxu0 0.0
    %1819 = vmatpush1.msra.mxu0 %v1794
    %1820 = vmatprep.subr.mxu0 0.0
    %1821 = vmatpush1.msra.mxu0 %v1795
    %1822 = vmatprep.subr.mxu0 0.0
    %1823 = vmatpush1.msra.mxu0 %v1796
    %1824 = vmatprep.subr.mxu0 0.0
    %1825 = vmatpush1.msra.mxu0 %v1797
    %1826 = vmatprep.subr.mxu0 0.0
    %1827 = vmatpush1.msra.mxu0 %v1798
    %1828 = vmatprep.subr.mxu0 0.0
    %1829 = vmatpush1.msra.mxu0 %v1799
    %1830 = vmatprep.subr.mxu0 0.0
    %1831 = vmatpush1.msra.mxu0 %v1800
    %1832 = vmatprep.subr.mxu0 0.0
    %1833 = vmatpush1.msra.mxu0 %v1801
    %1834 = vmatprep.subr.mxu0 0.0
    %1835 = vmatpush1.msra.mxu0 0.0
    %1836 = vmatprep.subr.mxu0 0.0
    %1837 = vmatpush1.msra.mxu0 0.0
    %1838 = vmatprep.subr.mxu0 0.0
    %1839 = vmatpush1.msra.mxu0 0.0
    %1840 = vmatprep.subr.mxu0 0.0
    %1841 = vmatpush1.msra.mxu0 0.0
    %1842 = vmatprep.subr.mxu0 0.0
    %1843 = vmatpush1.msra.mxu0 0.0
    %1844 = vmatprep.subr.mxu0 0.0
    %1845 = vmatpush1.msra.mxu0 0.0
    %1846 = vmatprep.subr.mxu0 0.0
    %1847 = vmatpush1.msra.mxu0 0.0
    %1848 = vmatprep.subr.mxu0 0.0
    %1849 = vmatpush1.msra.mxu0 0.0
    %1850 = vmatprep.subr.mxu0 0.0
    %1851 = vmatpush1.msra.mxu0 0.0
    %1852 = vmatprep.subr.mxu0 0.0
    %1853 = vmatpush1.msra.mxu0 0.0
    %1854 = vmatprep.subr.mxu0 0.0
    %1855 = vmatpush1.msra.mxu0 0.0
    %1856 = vmatprep.subr.mxu0 0.0
    %1857 = vmatpush1.msra.mxu0 0.0
    %1858 = vmatprep.subr.mxu0 0.0
    %1859 = vmatpush1.msra.mxu0 0.0
    %1860 = vmatprep.subr.mxu0 0.0
    %1861 = vmatpush1.msra.mxu0 0.0
    %1862 = vmatprep.subr.mxu0 0.0
    %1863 = vmatpush1.msra.mxu0 0.0
    %1864 = vmatprep.subr.mxu0 0.0
    %1865 = vmatpush1.msra.mxu0 0.0
    %1866 = vmatprep.mubr.f32.mxu0 0.0
    %1867 = vmatmul.mubr.f32.gmra.mrb[0].mxu0 %v1698
    %v1868 = vpop.f32.mrb[0].mxu0
    %v1869 = vadd.f32 0.0, %v1868
    %v1870 = vpop.f32.mrb[0].mxu0
    %1871 = vdwg.mxu0
    %v1872 = vmax.f32 %v1782, %v1869
    %v1873 = vld [vmem:[#allocation8] sm:$0xff]
    %v1874 = vld [vmem:[#allocation8 + $0x8] sm:$0xff]
    %v1875 = vld [vmem:[#allocation8 + $0x10] sm:$0xff]
    %v1876 = vld [vmem:[#allocation8 + $0x18] sm:$0xff]
    %v1877 = vld [vmem:[#allocation8 + $0x20] sm:$0xff]
    %v1878 = vld [vmem:[#allocation8 + $0x28] sm:$0xff]
    %v1879 = vld [vmem:[#allocation8 + $0x30] sm:$0xff]
    %v1880 = vld [vmem:[#allocation8 + $0x38] sm:$0xff]
    %s1881 = scalar_lea.vmem [#allocation8], 64
    %v1882 = vld [vmem:[%s1881] sm:$0xff]
    %v1883 = vld [vmem:[%s1881 + $0x8] sm:$0xff]
    %v1884 = vld [vmem:[%s1881 + $0x10] sm:$0xff]
    %v1885 = vld [vmem:[%s1881 + $0x18] sm:$0xff]
    %v1886 = vld [vmem:[%s1881 + $0x20] sm:$0xff]
    %v1887 = vld [vmem:[%s1881 + $0x28] sm:$0xff]
    %v1888 = vld [vmem:[%s1881 + $0x30] sm:$0xff]
    %v1889 = vld [vmem:[%s1881 + $0x38] sm:$0xff]
    %v1891 = vrot.slane %v1872, 1
    %vm1892 = vcmask 523264
    %v1893 = vsel %vm1892, %v1891, 0
    %1895 = vmatprep.subr.mxu0 0.0
    %1896 = vmatpush1.msra.mxu0 %v1882
    %1897 = vmatprep.subr.mxu0 0.0
    %1898 = vmatpush1.msra.mxu0 %v1883
    %1899 = vmatprep.subr.mxu0 0.0
    %1900 = vmatpush1.msra.mxu0 %v1884
    %1901 = vmatprep.subr.mxu0 0.0
    %1902 = vmatpush1.msra.mxu0 %v1885
    %1903 = vmatprep.subr.mxu0 0.0
    %1904 = vmatpush1.msra.mxu0 %v1886
    %1905 = vmatprep.subr.mxu0 0.0
    %1906 = vmatpush1.msra.mxu0 %v1887
    %1907 = vmatprep.subr.mxu0 0.0
    %1908 = vmatpush1.msra.mxu0 %v1888
    %1909 = vmatprep.subr.mxu0 0.0
    %1910 = vmatpush1.msra.mxu0 %v1889
    %1911 = vmatprep.subr.mxu0 0.0
    %1912 = vmatpush1.msra.mxu0 0.0
    %1913 = vmatprep.subr.mxu0 0.0
    %1914 = vmatpush1.msra.mxu0 0.0
    %1915 = vmatprep.subr.mxu0 0.0
    %1916 = vmatpush1.msra.mxu0 0.0
    %1917 = vmatprep.subr.mxu0 0.0
    %1918 = vmatpush1.msra.mxu0 0.0
    %1919 = vmatprep.subr.mxu0 0.0
    %1920 = vmatpush1.msra.mxu0 0.0
    %1921 = vmatprep.subr.mxu0 0.0
    %1922 = vmatpush1.msra.mxu0 0.0
    %1923 = vmatprep.subr.mxu0 0.0
    %1924 = vmatpush1.msra.mxu0 0.0
    %1925 = vmatprep.subr.mxu0 0.0
    %1926 = vmatpush1.msra.mxu0 0.0
    %1927 = vmatprep.subr.mxu0 0.0
    %1928 = vmatpush1.msra.mxu0 0.0
    %1929 = vmatprep.subr.mxu0 0.0
    %1930 = vmatpush1.msra.mxu0 0.0
    %1931 = vmatprep.subr.mxu0 0.0
    %1932 = vmatpush1.msra.mxu0 0.0
    %1933 = vmatprep.subr.mxu0 0.0
    %1934 = vmatpush1.msra.mxu0 0.0
    %1935 = vmatprep.subr.mxu0 0.0
    %1936 = vmatpush1.msra.mxu0 0.0
    %1937 = vmatprep.subr.mxu0 0.0
    %1938 = vmatpush1.msra.mxu0 0.0
    %1939 = vmatprep.subr.mxu0 0.0
    %1940 = vmatpush1.msra.mxu0 0.0
    %1941 = vmatprep.subr.mxu0 0.0
    %1942 = vmatpush1.msra.mxu0 0.0
    %1943 = vmatprep.subr.mxu0 0.0
    %1944 = vmatpush1.msra.mxu0 0.0
    %1945 = vmatprep.subr.mxu0 0.0
    %1946 = vmatpush1.msra.mxu0 0.0
    %1947 = vmatprep.subr.mxu0 0.0
    %1948 = vmatpush1.msra.mxu0 0.0
    %1949 = vmatprep.subr.mxu0 0.0
    %1950 = vmatpush1.msra.mxu0 0.0
    %1951 = vmatprep.subr.mxu0 0.0
    %1952 = vmatpush1.msra.mxu0 0.0
    %1953 = vmatprep.subr.mxu0 0.0
    %1954 = vmatpush1.msra.mxu0 0.0
    %1955 = vmatprep.subr.mxu0 0.0
    %1956 = vmatpush1.msra.mxu0 0.0
    %1957 = vmatprep.subr.mxu0 0.0
    %1958 = vmatpush1.msra.mxu0 0.0
    %1959 = vmatprep.mubr.f32.mxu0 0.0
    %1960 = vmatmul.mubr.f32.gmra.mrb[0].mxu0 %v1893
    %v1961 = vpop.f32.mrb[0].mxu0
    %v1962 = vadd.f32 0.0, %v1961
    %v1963 = vpop.f32.mrb[0].mxu0
    %1964 = vdwg.mxu0
    %v1965 = vsel %vm1892, %v1872, 0
    %1967 = vmatprep.subr.mxu0 0.0
    %1968 = vmatpush1.msra.mxu0 %v1873
    %1969 = vmatprep.subr.mxu0 0.0
    %1970 = vmatpush1.msra.mxu0 %v1874
    %1971 = vmatprep.subr.mxu0 0.0
    %1972 = vmatpush1.msra.mxu0 %v1875
    %1973 = vmatprep.subr.mxu0 0.0
    %1974 = vmatpush1.msra.mxu0 %v1876
    %1975 = vmatprep.subr.mxu0 0.0
    %1976 = vmatpush1.msra.mxu0 %v1877
    %1977 = vmatprep.subr.mxu0 0.0
    %1978 = vmatpush1.msra.mxu0 %v1878
    %1979 = vmatprep.subr.mxu0 0.0
    %1980 = vmatpush1.msra.mxu0 %v1879
    %1981 = vmatprep.subr.mxu0 0.0
    %1982 = vmatpush1.msra.mxu0 %v1880
    %1983 = vmatprep.subr.mxu0 0.0
    %1984 = vmatpush1.msra.mxu0 0.0
    %1985 = vmatprep.subr.mxu0 0.0
    %1986 = vmatpush1.msra.mxu0 0.0
    %1987 = vmatprep.subr.mxu0 0.0
    %1988 = vmatpush1.msra.mxu0 0.0
    %1989 = vmatprep.subr.mxu0 0.0
    %1990 = vmatpush1.msra.mxu0 0.0
    %1991 = vmatprep.subr.mxu0 0.0
    %1992 = vmatpush1.msra.mxu0 0.0
    %1993 = vmatprep.subr.mxu0 0.0
    %1994 = vmatpush1.msra.mxu0 0.0
    %1995 = vmatprep.subr.mxu0 0.0
    %1996 = vmatpush1.msra.mxu0 0.0
    %1997 = vmatprep.subr.mxu0 0.0
    %1998 = vmatpush1.msra.mxu0 0.0
    %1999 = vmatprep.subr.mxu0 0.0
    %2000 = vmatpush1.msra.mxu0 0.0
    %2001 = vmatprep.subr.mxu0 0.0
    %2002 = vmatpush1.msra.mxu0 0.0
    %2003 = vmatprep.subr.mxu0 0.0
    %2004 = vmatpush1.msra.mxu0 0.0
    %2005 = vmatprep.subr.mxu0 0.0
    %2006 = vmatpush1.msra.mxu0 0.0
    %2007 = vmatprep.subr.mxu0 0.0
    %2008 = vmatpush1.msra.mxu0 0.0
    %2009 = vmatprep.subr.mxu0 0.0
    %2010 = vmatpush1.msra.mxu0 0.0
    %2011 = vmatprep.subr.mxu0 0.0
    %2012 = vmatpush1.msra.mxu0 0.0
    %2013 = vmatprep.subr.mxu0 0.0
    %2014 = vmatpush1.msra.mxu0 0.0
    %2015 = vmatprep.subr.mxu0 0.0
    %2016 = vmatpush1.msra.mxu0 0.0
    %2017 = vmatprep.subr.mxu0 0.0
    %2018 = vmatpush1.msra.mxu0 0.0
    %2019 = vmatprep.subr.mxu0 0.0
    %2020 = vmatpush1.msra.mxu0 0.0
    %2021 = vmatprep.subr.mxu0 0.0
    %2022 = vmatpush1.msra.mxu0 0.0
    %2023 = vmatprep.subr.mxu0 0.0
    %2024 = vmatpush1.msra.mxu0 0.0
    %2025 = vmatprep.subr.mxu0 0.0
    %2026 = vmatpush1.msra.mxu0 0.0
    %2027 = vmatprep.subr.mxu0 0.0
    %2028 = vmatpush1.msra.mxu0 0.0
    %2029 = vmatprep.subr.mxu0 0.0
    %2030 = vmatpush1.msra.mxu0 0.0
    %2031 = vmatprep.mubr.f32.mxu0 0.0
    %2032 = vmatmul.mubr.f32.gmra.mrb[0].mxu0 %v1965
    %v2033 = vpop.f32.mrb[0].mxu0
    %v2034 = vadd.f32 %v1962, %v2033
    %v2035 = vpop.f32.mrb[0].mxu0
    %2036 = vdwg.mxu0
    %s2037 = scalar_lea.vmem [#allocation8], 128
    %v2038 = vld [vmem:[%s2037] sm:$0xff]
    %v2039 = vld [vmem:[%s2037 + $0x8] sm:$0xff]
    %v2040 = vld [vmem:[%s2037 + $0x10] sm:$0xff]
    %v2041 = vld [vmem:[%s2037 + $0x18] sm:$0xff]
    %v2042 = vld [vmem:[%s2037 + $0x20] sm:$0xff]
    %v2043 = vld [vmem:[%s2037 + $0x28] sm:$0xff]
    %v2044 = vld [vmem:[%s2037 + $0x30] sm:$0xff]
    %v2045 = vld [vmem:[%s2037 + $0x38] sm:$0xff]
    %v2046 = vrot.slane %v1872, 2
    %v2047 = vsel %vm1892, %v2046, 0
    %2049 = vmatprep.subr.mxu0 0.0
    %2050 = vmatpush1.msra.mxu0 %v2038
    %2051 = vmatprep.subr.mxu0 0.0
    %2052 = vmatpush1.msra.mxu0 %v2039
    %2053 = vmatprep.subr.mxu0 0.0
    %2054 = vmatpush1.msra.mxu0 %v2040
    %2055 = vmatprep.subr.mxu0 0.0
    %2056 = vmatpush1.msra.mxu0 %v2041
    %2057 = vmatprep.subr.mxu0 0.0
    %2058 = vmatpush1.msra.mxu0 %v2042
    %2059 = vmatprep.subr.mxu0 0.0
    %2060 = vmatpush1.msra.mxu0 %v2043
    %2061 = vmatprep.subr.mxu0 0.0
    %2062 = vmatpush1.msra.mxu0 %v2044
    %2063 = vmatprep.subr.mxu0 0.0
    %2064 = vmatpush1.msra.mxu0 %v2045
    %2065 = vmatprep.subr.mxu0 0.0
    %2066 = vmatpush1.msra.mxu0 0.0
    %2067 = vmatprep.subr.mxu0 0.0
    %2068 = vmatpush1.msra.mxu0 0.0
    %2069 = vmatprep.subr.mxu0 0.0
    %2070 = vmatpush1.msra.mxu0 0.0
    %2071 = vmatprep.subr.mxu0 0.0
    %2072 = vmatpush1.msra.mxu0 0.0
    %2073 = vmatprep.subr.mxu0 0.0
    %2074 = vmatpush1.msra.mxu0 0.0
    %2075 = vmatprep.subr.mxu0 0.0
    %2076 = vmatpush1.msra.mxu0 0.0
    %2077 = vmatprep.subr.mxu0 0.0
    %2078 = vmatpush1.msra.mxu0 0.0
    %2079 = vmatprep.subr.mxu0 0.0
    %2080 = vmatpush1.msra.mxu0 0.0
    %2081 = vmatprep.subr.mxu0 0.0
    %2082 = vmatpush1.msra.mxu0 0.0
    %2083 = vmatprep.subr.mxu0 0.0
    %2084 = vmatpush1.msra.mxu0 0.0
    %2085 = vmatprep.subr.mxu0 0.0
    %2086 = vmatpush1.msra.mxu0 0.0
    %2087 = vmatprep.subr.mxu0 0.0
    %2088 = vmatpush1.msra.mxu0 0.0
    %2089 = vmatprep.subr.mxu0 0.0
    %2090 = vmatpush1.msra.mxu0 0.0
    %2091 = vmatprep.subr.mxu0 0.0
    %2092 = vmatpush1.msra.mxu0 0.0
    %2093 = vmatprep.subr.mxu0 0.0
    %2094 = vmatpush1.msra.mxu0 0.0
    %2095 = vmatprep.subr.mxu0 0.0
    %2096 = vmatpush1.msra.mxu0 0.0
    %2097 = vmatprep.subr.mxu0 0.0
    %2098 = vmatpush1.msra.mxu0 0.0
    %2099 = vmatprep.subr.mxu0 0.0
    %2100 = vmatpush1.msra.mxu0 0.0
    %2101 = vmatprep.subr.mxu0 0.0
    %2102 = vmatpush1.msra.mxu0 0.0
    %2103 = vmatprep.subr.mxu0 0.0
    %2104 = vmatpush1.msra.mxu0 0.0
    %2105 = vmatprep.subr.mxu0 0.0
    %2106 = vmatpush1.msra.mxu0 0.0
    %2107 = vmatprep.subr.mxu0 0.0
    %2108 = vmatpush1.msra.mxu0 0.0
    %2109 = vmatprep.subr.mxu0 0.0
    %2110 = vmatpush1.msra.mxu0 0.0
    %2111 = vmatprep.subr.mxu0 0.0
    %2112 = vmatpush1.msra.mxu0 0.0
    %2113 = vmatprep.mubr.f32.mxu0 0.0
    %2114 = vmatmul.mubr.f32.gmra.mrb[0].mxu0 %v2047
    %v2115 = vpop.f32.mrb[0].mxu0
    %v2116 = vadd.f32 0.0, %v2115
    %v2117 = vpop.f32.mrb[0].mxu0
    %2118 = vdwg.mxu0
    %v2119 = vadd.f32 %v2034, %v2116
    %s2120 = scalar_lea.vmem [#allocation8], 192
    %v2121 = vld [vmem:[%s2120] sm:$0xff]
    %v2122 = vld [vmem:[%s2120 + $0x8] sm:$0xff]
    %v2123 = vld [vmem:[%s2120 + $0x10] sm:$0xff]
    %v2124 = vld [vmem:[%s2120 + $0x18] sm:$0xff]
    %v2125 = vld [vmem:[%s2120 + $0x20] sm:$0xff]
    %v2126 = vld [vmem:[%s2120 + $0x28] sm:$0xff]
    %v2127 = vld [vmem:[%s2120 + $0x30] sm:$0xff]
    %v2128 = vld [vmem:[%s2120 + $0x38] sm:$0xff]
    %v2129 = vrot.slane %v1872, 3
    %v2130 = vsel %vm1892, %v2129, 0
    %2132 = vmatprep.subr.mxu0 0.0
    %2133 = vmatpush1.msra.mxu0 %v2121
    %2134 = vmatprep.subr.mxu0 0.0
    %2135 = vmatpush1.msra.mxu0 %v2122
    %2136 = vmatprep.subr.mxu0 0.0
    %2137 = vmatpush1.msra.mxu0 %v2123
    %2138 = vmatprep.subr.mxu0 0.0
    %2139 = vmatpush1.msra.mxu0 %v2124
    %2140 = vmatprep.subr.mxu0 0.0
    %2141 = vmatpush1.msra.mxu0 %v2125
    %2142 = vmatprep.subr.mxu0 0.0
    %2143 = vmatpush1.msra.mxu0 %v2126
    %2144 = vmatprep.subr.mxu0 0.0
    %2145 = vmatpush1.msra.mxu0 %v2127
    %2146 = vmatprep.subr.mxu0 0.0
    %2147 = vmatpush1.msra.mxu0 %v2128
    %2148 = vmatprep.subr.mxu0 0.0
    %2149 = vmatpush1.msra.mxu0 0.0
    %2150 = vmatprep.subr.mxu0 0.0
    %2151 = vmatpush1.msra.mxu0 0.0
    %2152 = vmatprep.subr.mxu0 0.0
    %2153 = vmatpush1.msra.mxu0 0.0
    %2154 = vmatprep.subr.mxu0 0.0
    %2155 = vmatpush1.msra.mxu0 0.0
    %2156 = vmatprep.subr.mxu0 0.0
    %2157 = vmatpush1.msra.mxu0 0.0
    %2158 = vmatprep.subr.mxu0 0.0
    %2159 = vmatpush1.msra.mxu0 0.0
    %2160 = vmatprep.subr.mxu0 0.0
    %2161 = vmatpush1.msra.mxu0 0.0
    %2162 = vmatprep.subr.mxu0 0.0
    %2163 = vmatpush1.msra.mxu0 0.0
    %2164 = vmatprep.subr.mxu0 0.0
    %2165 = vmatpush1.msra.mxu0 0.0
    %2166 = vmatprep.subr.mxu0 0.0
    %2167 = vmatpush1.msra.mxu0 0.0
    %2168 = vmatprep.subr.mxu0 0.0
    %2169 = vmatpush1.msra.mxu0 0.0
    %2170 = vmatprep.subr.mxu0 0.0
    %2171 = vmatpush1.msra.mxu0 0.0
    %2172 = vmatprep.subr.mxu0 0.0
    %2173 = vmatpush1.msra.mxu0 0.0
    %2174 = vmatprep.subr.mxu0 0.0
    %2175 = vmatpush1.msra.mxu0 0.0
    %2176 = vmatprep.subr.mxu0 0.0
    %2177 = vmatpush1.msra.mxu0 0.0
    %2178 = vmatprep.subr.mxu0 0.0
    %2179 = vmatpush1.msra.mxu0 0.0
    %2180 = vmatprep.subr.mxu0 0.0
    %2181 = vmatpush1.msra.mxu0 0.0
    %2182 = vmatprep.subr.mxu0 0.0
    %2183 = vmatpush1.msra.mxu0 0.0
    %2184 = vmatprep.subr.mxu0 0.0
    %2185 = vmatpush1.msra.mxu0 0.0
    %2186 = vmatprep.subr.mxu0 0.0
    %2187 = vmatpush1.msra.mxu0 0.0
    %2188 = vmatprep.subr.mxu0 0.0
    %2189 = vmatpush1.msra.mxu0 0.0
    %2190 = vmatprep.subr.mxu0 0.0
    %2191 = vmatpush1.msra.mxu0 0.0
    %2192 = vmatprep.subr.mxu0 0.0
    %2193 = vmatpush1.msra.mxu0 0.0
    %2194 = vmatprep.subr.mxu0 0.0
    %2195 = vmatpush1.msra.mxu0 0.0
    %2196 = vmatprep.mubr.f32.mxu0 0.0
    %2197 = vmatmul.mubr.f32.gmra.mrb[0].mxu0 %v2130
    %v2198 = vpop.f32.mrb[0].mxu0
    %v2199 = vadd.f32 0.0, %v2198
    %v2200 = vpop.f32.mrb[0].mxu0
    %2201 = vdwg.mxu0
    %v2202 = vadd.f32 %v2119, %v2199
    %v2203 = vld [vmem:[#allocation10] sm:$0x1]
    %v2204 = vadd.f32 %v2202, %v2203
    %v2205 = vmax.f32 %v2204, 0.0
    %v2206 = vld [vmem:[%s11] sm:$0xff]
    %v2207 = vld [vmem:[%s11 + $0x8] sm:$0xff]
    %v2208 = vld [vmem:[%s11 + $0x10] sm:$0xff]
    %v2209 = vld [vmem:[%s11 + $0x18] sm:$0xff]
    %v2210 = vld [vmem:[%s11 + $0x20] sm:$0xff]
    %v2211 = vld [vmem:[%s11 + $0x28] sm:$0xff]
    %v2212 = vld [vmem:[%s11 + $0x30] sm:$0xff]
    %v2213 = vld [vmem:[%s11 + $0x38] sm:$0xff]
    %v2214 = vld [vmem:[%s11 + $0x40] sm:$0xff]
    %v2215 = vld [vmem:[%s11 + $0x48] sm:$0xff]
    %v2216 = vld [vmem:[%s11 + $0x50] sm:$0xff]
    %v2217 = vld [vmem:[%s11 + $0x58] sm:$0xff]
    %v2218 = vld [vmem:[%s11 + $0x60] sm:$0xff]
    %v2219 = vld [vmem:[%s11 + $0x68] sm:$0xff]
    %v2220 = vld [vmem:[%s11 + $0x70] sm:$0xff]
    %v2221 = vld [vmem:[#allocation11] sm:$0x1]
    %vm2222 = vcmask 982016
    %v2224 = vsel %vm2222, %v2205, 0
    %2226 = vmatprep.subr.mxu0 0.0
    %2227 = vmatpush1.msra.mxu0 %v2206
    %2228 = vmatprep.subr.mxu0 0.0
    %2229 = vmatpush1.msra.mxu0 %v2207
    %2230 = vmatprep.subr.mxu0 0.0
    %2231 = vmatpush1.msra.mxu0 %v2208
    %2232 = vmatprep.subr.mxu0 0.0
    %2233 = vmatpush1.msra.mxu0 %v2209
    %2234 = vmatprep.subr.mxu0 0.0
    %2235 = vmatpush1.msra.mxu0 %v2210
    %2236 = vmatprep.subr.mxu0 0.0
    %2237 = vmatpush1.msra.mxu0 %v2211
    %2238 = vmatprep.subr.mxu0 0.0
    %2239 = vmatpush1.msra.mxu0 %v2212
    %2240 = vmatprep.subr.mxu0 0.0
    %2241 = vmatpush1.msra.mxu0 %v2213
    %2242 = vmatprep.subr.mxu0 0.0
    %2243 = vmatpush1.msra.mxu0 %v2214
    %2244 = vmatprep.subr.mxu0 0.0
    %2245 = vmatpush1.msra.mxu0 %v2215
    %2246 = vmatprep.subr.mxu0 0.0
    %2247 = vmatpush1.msra.mxu0 %v2216
    %2248 = vmatprep.subr.mxu0 0.0
    %2249 = vmatpush1.msra.mxu0 %v2217
    %2250 = vmatprep.subr.mxu0 0.0
    %2251 = vmatpush1.msra.mxu0 %v2218
    %2252 = vmatprep.subr.mxu0 0.0
    %2253 = vmatpush1.msra.mxu0 %v2219
    %2254 = vmatprep.subr.mxu0 0.0
    %2255 = vmatpush1.msra.mxu0 %v2220
    %2256 = vmatprep.subr.mxu0 0.0
    %2257 = vmatpush1.msra.mxu0 0.0
    %2258 = vmatprep.subr.mxu0 0.0
    %2259 = vmatpush1.msra.mxu0 0.0
    %2260 = vmatprep.subr.mxu0 0.0
    %2261 = vmatpush1.msra.mxu0 0.0
    %2262 = vmatprep.subr.mxu0 0.0
    %2263 = vmatpush1.msra.mxu0 0.0
    %2264 = vmatprep.subr.mxu0 0.0
    %2265 = vmatpush1.msra.mxu0 0.0
    %2266 = vmatprep.subr.mxu0 0.0
    %2267 = vmatpush1.msra.mxu0 0.0
    %2268 = vmatprep.subr.mxu0 0.0
    %2269 = vmatpush1.msra.mxu0 0.0
    %2270 = vmatprep.subr.mxu0 0.0
    %2271 = vmatpush1.msra.mxu0 0.0
    %2272 = vmatprep.subr.mxu0 0.0
    %2273 = vmatpush1.msra.mxu0 0.0
    %2274 = vmatprep.subr.mxu0 0.0
    %2275 = vmatpush1.msra.mxu0 0.0
    %2276 = vmatprep.subr.mxu0 0.0
    %2277 = vmatpush1.msra.mxu0 0.0
    %2278 = vmatprep.subr.mxu0 0.0
    %2279 = vmatpush1.msra.mxu0 0.0
    %2280 = vmatprep.subr.mxu0 0.0
    %2281 = vmatpush1.msra.mxu0 0.0
    %2282 = vmatprep.subr.mxu0 0.0
    %2283 = vmatpush1.msra.mxu0 0.0
    %2284 = vmatprep.subr.mxu0 0.0
    %2285 = vmatpush1.msra.mxu0 0.0
    %2286 = vmatprep.subr.mxu0 0.0
    %2287 = vmatpush1.msra.mxu0 0.0
    %2288 = vmatprep.subr.mxu0 0.0
    %2289 = vmatpush1.msra.mxu0 0.0
    %2290 = vmatprep.mubr.f32.mxu0 0.0
    %2291 = vmatmul.mubr.f32.gmra.mrb[0].mxu0 %v2224
    %v2292 = vpop.f32.mrb[0].mxu0
    %v2293 = vadd.f32 %v2221, %v2292
    %v2294 = vpop.f32.mrb[0].mxu0
    %2295 = vdwg.mxu0
    %v2296 = vmax.f32 %v2293, 0.0
    %v2297 = vld [vmem:[%s13] sm:$0xff]
    %v2298 = vld [vmem:[%s13 + $0x8] sm:$0xff]
    %v2299 = vld [vmem:[%s13 + $0x10] sm:$0xff]
    %v2300 = vld [vmem:[%s13 + $0x18] sm:$0xff]
    %v2301 = vld [vmem:[%s13 + $0x20] sm:$0xff]
    %v2302 = vld [vmem:[%s13 + $0x28] sm:$0xff]
    %v2303 = vld [vmem:[%s13 + $0x30] sm:$0xff]
    %v2304 = vld [vmem:[%s13 + $0x38] sm:$0xff]
    %v2305 = vld [vmem:[%s13 + $0x40] sm:$0xff]
    %v2306 = vld [vmem:[%s13 + $0x48] sm:$0xff]
    %v2307 = vld [vmem:[%s13 + $0x50] sm:$0xf]
    %v2308 = vld [vmem:[#allocation13] sm:$0x1]
    %vm2309 = vcmask 687104
    %v2311 = vsel %vm2309, %v2296, 0
    %v2314 = vsel %vm178, %v2307, 0
    %2316 = vmatprep.subr.mxu0 0.0
    %2317 = vmatpush1.msra.mxu0 %v2297
    %2318 = vmatprep.subr.mxu0 0.0
    %2319 = vmatpush1.msra.mxu0 %v2298
    %2320 = vmatprep.subr.mxu0 0.0
    %2321 = vmatpush1.msra.mxu0 %v2299
    %2322 = vmatprep.subr.mxu0 0.0
    %2323 = vmatpush1.msra.mxu0 %v2300
    %2324 = vmatprep.subr.mxu0 0.0
    %2325 = vmatpush1.msra.mxu0 %v2301
    %2326 = vmatprep.subr.mxu0 0.0
    %2327 = vmatpush1.msra.mxu0 %v2302
    %2328 = vmatprep.subr.mxu0 0.0
    %2329 = vmatpush1.msra.mxu0 %v2303
    %2330 = vmatprep.subr.mxu0 0.0
    %2331 = vmatpush1.msra.mxu0 %v2304
    %2332 = vmatprep.subr.mxu0 0.0
    %2333 = vmatpush1.msra.mxu0 %v2305
    %2334 = vmatprep.subr.mxu0 0.0
    %2335 = vmatpush1.msra.mxu0 %v2306
    %2336 = vmatprep.subr.mxu0 0.0
    %2337 = vmatpush1.msra.mxu0 %v2314
    %2338 = vmatprep.subr.mxu0 0.0
    %2339 = vmatpush1.msra.mxu0 0.0
    %2340 = vmatprep.subr.mxu0 0.0
    %2341 = vmatpush1.msra.mxu0 0.0
    %2342 = vmatprep.subr.mxu0 0.0
    %2343 = vmatpush1.msra.mxu0 0.0
    %2344 = vmatprep.subr.mxu0 0.0
    %2345 = vmatpush1.msra.mxu0 0.0
    %2346 = vmatprep.subr.mxu0 0.0
    %2347 = vmatpush1.msra.mxu0 0.0
    %2348 = vmatprep.subr.mxu0 0.0
    %2349 = vmatpush1.msra.mxu0 0.0
    %2350 = vmatprep.subr.mxu0 0.0
    %2351 = vmatpush1.msra.mxu0 0.0
    %2352 = vmatprep.subr.mxu0 0.0
    %2353 = vmatpush1.msra.mxu0 0.0
    %2354 = vmatprep.subr.mxu0 0.0
    %2355 = vmatpush1.msra.mxu0 0.0
    %2356 = vmatprep.subr.mxu0 0.0
    %2357 = vmatpush1.msra.mxu0 0.0
    %2358 = vmatprep.subr.mxu0 0.0
    %2359 = vmatpush1.msra.mxu0 0.0
    %2360 = vmatprep.subr.mxu0 0.0
    %2361 = vmatpush1.msra.mxu0 0.0
    %2362 = vmatprep.subr.mxu0 0.0
    %2363 = vmatpush1.msra.mxu0 0.0
    %2364 = vmatprep.subr.mxu0 0.0
    %2365 = vmatpush1.msra.mxu0 0.0
    %2366 = vmatprep.subr.mxu0 0.0
    %2367 = vmatpush1.msra.mxu0 0.0
    %2368 = vmatprep.subr.mxu0 0.0
    %2369 = vmatpush1.msra.mxu0 0.0
    %2370 = vmatprep.subr.mxu0 0.0
    %2371 = vmatpush1.msra.mxu0 0.0
    %2372 = vmatprep.subr.mxu0 0.0
    %2373 = vmatpush1.msra.mxu0 0.0
    %2374 = vmatprep.subr.mxu0 0.0
    %2375 = vmatpush1.msra.mxu0 0.0
    %2376 = vmatprep.subr.mxu0 0.0
    %2377 = vmatpush1.msra.mxu0 0.0
    %2378 = vmatprep.subr.mxu0 0.0
    %2379 = vmatpush1.msra.mxu0 0.0
    %2380 = vmatprep.mubr.f32.mxu0 0.0
    %2381 = vmatmul.mubr.f32.gmra.mrb[0].mxu0 %v2311
    %v2382 = vpop.f32.mrb[0].mxu0
    %v2383 = vadd.f32 %v2308, %v2382
    %v2384 = vpop.f32.mrb[0].mxu0
    %2385 = vdwg.mxu0
    %vm2386 = vcmask 73728
    %2387 = vst.msk [vmem:[#allocation14] sm:$0x1] %vm2386, %v2383
    %s2388 = scalar_lea.vmem %s0, 32
    %v2389 = vld [vmem:[%s2388] sm:$0xff]
    %v2390 = vld [vmem:[%s2388 + $0x8] sm:$0xff]
    %v2391 = vld [vmem:[%s2388 + $0x10] sm:$0xff]
    %v2392 = vld [vmem:[%s2388 + $0x18] sm:$0xf]
    %v2393 = vld [vmem:[%s1] sm:$0xff]
    %v2394 = vld [vmem:[%s1 + $0x8] sm:$0xff]
    %v2395 = vld [vmem:[%s1 + $0x10] sm:$0xff]
    %v2396 = vld [vmem:[%s1 + $0x18] sm:$0xff]
    %v2397 = vld [vmem:[%s1 + $0x20] sm:$0xff]
    %v2398 = vld [vmem:[%s1 + $0x28] sm:$0xff]
    %v2399 = vld [vmem:[%s1 + $0x30] sm:$0xf]
    %v2400 = vld [vmem:[%s1 + $0x38] sm:$0xf]
    %v2401 = vld [vmem:[%s150] sm:$0xff]
    %v2402 = vld [vmem:[%s150 + $0x8] sm:$0xff]
    %v2403 = vld [vmem:[%s150 + $0x10] sm:$0xff]
    %v2404 = vld [vmem:[%s150 + $0x18] sm:$0xff]
    %v2405 = vld [vmem:[%s150 + $0x20] sm:$0xff]
    %v2406 = vld [vmem:[%s150 + $0x28] sm:$0xff]
    %v2407 = vld [vmem:[%s150 + $0x30] sm:$0xf]
    %v2408 = vld [vmem:[%s150 + $0x38] sm:$0xf]
    %v2413 = vrot.slane %v2389, 1
    %v2414 = vrot.slane %v2390, 1
    %v2415 = vsel %vm163, %v2413, %v2414
    %v2416 = vrot.slane %v2391, 1
    %v2417 = vsel %vm163, %v2414, %v2416
    %v2418 = vrot.slane %v2392, 1
    %v2419 = vsel %vm163, %v2416, %v2418
    %v2420 = vsel %vm171, %v2415, 0
    %v2422 = vsel %vm171, %v2417, 0
    %v2424 = vsel %vm171, %v2419, 0
    %v2427 = vsel %vm178, %v2407, 0
    %v2430 = vsel %vm178, %v2408, 0
    %2432 = vmatprep.subr.mxu0 %v2402
    %2433 = vmatpush1.msra.mxu0 %v2401
    %2434 = vmatprep.subr.mxu0 %v2404
    %2435 = vmatpush1.msra.mxu0 %v2403
    %2436 = vmatprep.subr.mxu0 %v2406
    %2437 = vmatpush1.msra.mxu0 %v2405
    %2438 = vmatprep.subr.mxu0 %v2430
    %2439 = vmatpush1.msra.mxu0 %v2427
    %2440 = vmatprep.subr.mxu0 0.0
    %2441 = vmatpush1.msra.mxu0 0.0
    %2442 = vmatprep.subr.mxu0 0.0
    %2443 = vmatpush1.msra.mxu0 0.0
    %2444 = vmatprep.subr.mxu0 0.0
    %2445 = vmatpush1.msra.mxu0 0.0
    %2446 = vmatprep.subr.mxu0 0.0
    %2447 = vmatpush1.msra.mxu0 0.0
    %2448 = vmatprep.subr.mxu0 0.0
    %2449 = vmatpush1.msra.mxu0 0.0
    %2450 = vmatprep.subr.mxu0 0.0
    %2451 = vmatpush1.msra.mxu0 0.0
    %2452 = vmatprep.subr.mxu0 0.0
    %2453 = vmatpush1.msra.mxu0 0.0
    %2454 = vmatprep.subr.mxu0 0.0
    %2455 = vmatpush1.msra.mxu0 0.0
    %2456 = vmatprep.subr.mxu0 0.0
    %2457 = vmatpush1.msra.mxu0 0.0
    %2458 = vmatprep.subr.mxu0 0.0
    %2459 = vmatpush1.msra.mxu0 0.0
    %2460 = vmatprep.subr.mxu0 0.0
    %2461 = vmatpush1.msra.mxu0 0.0
    %2462 = vmatprep.subr.mxu0 0.0
    %2463 = vmatpush1.msra.mxu0 0.0
    %2464 = vmatprep.subr.mxu0 0.0
    %2465 = vmatpush1.msra.mxu0 0.0
    %2466 = vmatprep.subr.mxu0 0.0
    %2467 = vmatpush1.msra.mxu0 0.0
    %2468 = vmatprep.subr.mxu0 0.0
    %2469 = vmatpush1.msra.mxu0 0.0
    %2470 = vmatprep.subr.mxu0 0.0
    %2471 = vmatpush1.msra.mxu0 0.0
    %2472 = vmatprep.subr.mxu0 0.0
    %2473 = vmatpush1.msra.mxu0 0.0
    %2474 = vmatprep.subr.mxu0 0.0
    %2475 = vmatpush1.msra.mxu0 0.0
    %2476 = vmatprep.subr.mxu0 0.0
    %2477 = vmatpush1.msra.mxu0 0.0
    %2478 = vmatprep.subr.mxu0 0.0
    %2479 = vmatpush1.msra.mxu0 0.0
    %2480 = vmatprep.subr.mxu0 0.0
    %2481 = vmatpush1.msra.mxu0 0.0
    %2482 = vmatprep.subr.mxu0 0.0
    %2483 = vmatpush1.msra.mxu0 0.0
    %2484 = vmatprep.subr.mxu0 0.0
    %2485 = vmatpush1.msra.mxu0 0.0
    %2486 = vmatprep.subr.mxu0 0.0
    %2487 = vmatpush1.msra.mxu0 0.0
    %2488 = vmatprep.subr.mxu0 0.0
    %2489 = vmatpush1.msra.mxu0 0.0
    %2490 = vmatprep.subr.mxu0 0.0
    %2491 = vmatpush1.msra.mxu0 0.0
    %2492 = vmatprep.subr.mxu0 0.0
    %2493 = vmatpush1.msra.mxu0 0.0
    %2494 = vmatprep.subr.mxu0 0.0
    %2495 = vmatpush1.msra.mxu0 0.0
    %2496 = vmatprep.mubr.f32.mxu0 0.0
    %2497 = vmatmul.mubr.f32.gmra.mrb[0].mxu0 %v2420
    %v2498 = vpop.f32.mrb[0].mxu0
    %v2499 = vadd.f32 0.0, %v2498
    %v2500 = vpop.f32.mrb[0].mxu0
    %v2501 = vadd.f32 0.0, %v2500
    %2502 = vmatprep.mubr.f32.mxu0 0.0
    %2503 = vmatmul.mubr.f32.gmra.mrb[0].mxu0 %v2422
    %v2504 = vpop.f32.mrb[0].mxu0
    %v2505 = vadd.f32 0.0, %v2504
    %v2506 = vpop.f32.mrb[0].mxu0
    %v2507 = vadd.f32 0.0, %v2506
    %2508 = vmatprep.mubr.f32.mxu0 0.0
    %2509 = vmatmul.mubr.f32.gmra.mrb[0].mxu0 %v2424
    %v2510 = vpop.f32.mrb[0].mxu0
    %v2511 = vadd.f32 0.0, %v2510
    %v2512 = vpop.f32.mrb[0].mxu0
    %v2513 = vadd.f32 0.0, %v2512
    %2514 = vdwg.mxu0
    %v2515 = vsel %vm171, %v2389, 0
    %v2517 = vsel %vm171, %v2390, 0
    %v2519 = vsel %vm171, %v2391, 0
    %v2522 = vsel %vm178, %v2399, 0
    %v2525 = vsel %vm178, %v2400, 0
    %2527 = vmatprep.subr.mxu0 %v2394
    %2528 = vmatpush1.msra.mxu0 %v2393
    %2529 = vmatprep.subr.mxu0 %v2396
    %2530 = vmatpush1.msra.mxu0 %v2395
    %2531 = vmatprep.subr.mxu0 %v2398
    %2532 = vmatpush1.msra.mxu0 %v2397
    %2533 = vmatprep.subr.mxu0 %v2525
    %2534 = vmatpush1.msra.mxu0 %v2522
    %2535 = vmatprep.subr.mxu0 0.0
    %2536 = vmatpush1.msra.mxu0 0.0
    %2537 = vmatprep.subr.mxu0 0.0
    %2538 = vmatpush1.msra.mxu0 0.0
    %2539 = vmatprep.subr.mxu0 0.0
    %2540 = vmatpush1.msra.mxu0 0.0
    %2541 = vmatprep.subr.mxu0 0.0
    %2542 = vmatpush1.msra.mxu0 0.0
    %2543 = vmatprep.subr.mxu0 0.0
    %2544 = vmatpush1.msra.mxu0 0.0
    %2545 = vmatprep.subr.mxu0 0.0
    %2546 = vmatpush1.msra.mxu0 0.0
    %2547 = vmatprep.subr.mxu0 0.0
    %2548 = vmatpush1.msra.mxu0 0.0
    %2549 = vmatprep.subr.mxu0 0.0
    %2550 = vmatpush1.msra.mxu0 0.0
    %2551 = vmatprep.subr.mxu0 0.0
    %2552 = vmatpush1.msra.mxu0 0.0
    %2553 = vmatprep.subr.mxu0 0.0
    %2554 = vmatpush1.msra.mxu0 0.0
    %2555 = vmatprep.subr.mxu0 0.0
    %2556 = vmatpush1.msra.mxu0 0.0
    %2557 = vmatprep.subr.mxu0 0.0
    %2558 = vmatpush1.msra.mxu0 0.0
    %2559 = vmatprep.subr.mxu0 0.0
    %2560 = vmatpush1.msra.mxu0 0.0
    %2561 = vmatprep.subr.mxu0 0.0
    %2562 = vmatpush1.msra.mxu0 0.0
    %2563 = vmatprep.subr.mxu0 0.0
    %2564 = vmatpush1.msra.mxu0 0.0
    %2565 = vmatprep.subr.mxu0 0.0
    %2566 = vmatpush1.msra.mxu0 0.0
    %2567 = vmatprep.subr.mxu0 0.0
    %2568 = vmatpush1.msra.mxu0 0.0
    %2569 = vmatprep.subr.mxu0 0.0
    %2570 = vmatpush1.msra.mxu0 0.0
    %2571 = vmatprep.subr.mxu0 0.0
    %2572 = vmatpush1.msra.mxu0 0.0
    %2573 = vmatprep.subr.mxu0 0.0
    %2574 = vmatpush1.msra.mxu0 0.0
    %2575 = vmatprep.subr.mxu0 0.0
    %2576 = vmatpush1.msra.mxu0 0.0
    %2577 = vmatprep.subr.mxu0 0.0
    %2578 = vmatpush1.msra.mxu0 0.0
    %2579 = vmatprep.subr.mxu0 0.0
    %2580 = vmatpush1.msra.mxu0 0.0
    %2581 = vmatprep.subr.mxu0 0.0
    %2582 = vmatpush1.msra.mxu0 0.0
    %2583 = vmatprep.subr.mxu0 0.0
    %2584 = vmatpush1.msra.mxu0 0.0
    %2585 = vmatprep.subr.mxu0 0.0
    %2586 = vmatpush1.msra.mxu0 0.0
    %2587 = vmatprep.subr.mxu0 0.0
    %2588 = vmatpush1.msra.mxu0 0.0
    %2589 = vmatprep.subr.mxu0 0.0
    %2590 = vmatpush1.msra.mxu0 0.0
    %2591 = vmatprep.mubr.f32.mxu0 0.0
    %2592 = vmatmul.mubr.f32.gmra.mrb[0].mxu0 %v2515
    %v2593 = vpop.f32.mrb[0].mxu0
    %v2594 = vadd.f32 %v2499, %v2593
    %v2595 = vpop.f32.mrb[0].mxu0
    %v2596 = vadd.f32 %v2501, %v2595
    %2597 = vmatprep.mubr.f32.mxu0 0.0
    %2598 = vmatmul.mubr.f32.gmra.mrb[0].mxu0 %v2517
    %v2599 = vpop.f32.mrb[0].mxu0
    %v2600 = vadd.f32 %v2505, %v2599
    %v2601 = vpop.f32.mrb[0].mxu0
    %v2602 = vadd.f32 %v2507, %v2601
    %2603 = vmatprep.mubr.f32.mxu0 0.0
    %2604 = vmatmul.mubr.f32.gmra.mrb[0].mxu0 %v2519
    %v2605 = vpop.f32.mrb[0].mxu0
    %v2606 = vadd.f32 %v2511, %v2605
    %v2607 = vpop.f32.mrb[0].mxu0
    %v2608 = vadd.f32 %v2513, %v2607
    %2609 = vdwg.mxu0
    %v2610 = vld [vmem:[%s363] sm:$0xff]
    %v2611 = vld [vmem:[%s363 + $0x8] sm:$0xff]
    %v2612 = vld [vmem:[%s363 + $0x10] sm:$0xff]
    %v2613 = vld [vmem:[%s363 + $0x18] sm:$0xff]
    %v2614 = vld [vmem:[%s363 + $0x20] sm:$0xff]
    %v2615 = vld [vmem:[%s363 + $0x28] sm:$0xff]
    %v2616 = vld [vmem:[%s363 + $0x30] sm:$0xf]
    %v2617 = vld [vmem:[%s363 + $0x38] sm:$0xf]
    %v2618 = vrot.slane %v2389, 2
    %v2619 = vrot.slane %v2390, 2
    %v2620 = vsel %vm372, %v2618, %v2619
    %v2621 = vrot.slane %v2391, 2
    %v2622 = vsel %vm372, %v2619, %v2621
    %v2623 = vrot.slane %v2392, 2
    %v2624 = vsel %vm372, %v2621, %v2623
    %v2625 = vsel %vm171, %v2620, 0
    %v2627 = vsel %vm171, %v2622, 0
    %v2629 = vsel %vm171, %v2624, 0
    %v2632 = vsel %vm178, %v2616, 0
    %v2635 = vsel %vm178, %v2617, 0
    %2637 = vmatprep.subr.mxu0 %v2611
    %2638 = vmatpush1.msra.mxu0 %v2610
    %2639 = vmatprep.subr.mxu0 %v2613
    %2640 = vmatpush1.msra.mxu0 %v2612
    %2641 = vmatprep.subr.mxu0 %v2615
    %2642 = vmatpush1.msra.mxu0 %v2614
    %2643 = vmatprep.subr.mxu0 %v2635
    %2644 = vmatpush1.msra.mxu0 %v2632
    %2645 = vmatprep.subr.mxu0 0.0
    %2646 = vmatpush1.msra.mxu0 0.0
    %2647 = vmatprep.subr.mxu0 0.0
    %2648 = vmatpush1.msra.mxu0 0.0
    %2649 = vmatprep.subr.mxu0 0.0
    %2650 = vmatpush1.msra.mxu0 0.0
    %2651 = vmatprep.subr.mxu0 0.0
    %2652 = vmatpush1.msra.mxu0 0.0
    %2653 = vmatprep.subr.mxu0 0.0
    %2654 = vmatpush1.msra.mxu0 0.0
    %2655 = vmatprep.subr.mxu0 0.0
    %2656 = vmatpush1.msra.mxu0 0.0
    %2657 = vmatprep.subr.mxu0 0.0
    %2658 = vmatpush1.msra.mxu0 0.0
    %2659 = vmatprep.subr.mxu0 0.0
    %2660 = vmatpush1.msra.mxu0 0.0
    %2661 = vmatprep.subr.mxu0 0.0
    %2662 = vmatpush1.msra.mxu0 0.0
    %2663 = vmatprep.subr.mxu0 0.0
    %2664 = vmatpush1.msra.mxu0 0.0
    %2665 = vmatprep.subr.mxu0 0.0
    %2666 = vmatpush1.msra.mxu0 0.0
    %2667 = vmatprep.subr.mxu0 0.0
    %2668 = vmatpush1.msra.mxu0 0.0
    %2669 = vmatprep.subr.mxu0 0.0
    %2670 = vmatpush1.msra.mxu0 0.0
    %2671 = vmatprep.subr.mxu0 0.0
    %2672 = vmatpush1.msra.mxu0 0.0
    %2673 = vmatprep.subr.mxu0 0.0
    %2674 = vmatpush1.msra.mxu0 0.0
    %2675 = vmatprep.subr.mxu0 0.0
    %2676 = vmatpush1.msra.mxu0 0.0
    %2677 = vmatprep.subr.mxu0 0.0
    %2678 = vmatpush1.msra.mxu0 0.0
    %2679 = vmatprep.subr.mxu0 0.0
    %2680 = vmatpush1.msra.mxu0 0.0
    %2681 = vmatprep.subr.mxu0 0.0
    %2682 = vmatpush1.msra.mxu0 0.0
    %2683 = vmatprep.subr.mxu0 0.0
    %2684 = vmatpush1.msra.mxu0 0.0
    %2685 = vmatprep.subr.mxu0 0.0
    %2686 = vmatpush1.msra.mxu0 0.0
    %2687 = vmatprep.subr.mxu0 0.0
    %2688 = vmatpush1.msra.mxu0 0.0
    %2689 = vmatprep.subr.mxu0 0.0
    %2690 = vmatpush1.msra.mxu0 0.0
    %2691 = vmatprep.subr.mxu0 0.0
    %2692 = vmatpush1.msra.mxu0 0.0
    %2693 = vmatprep.subr.mxu0 0.0
    %2694 = vmatpush1.msra.mxu0 0.0
    %2695 = vmatprep.subr.mxu0 0.0
    %2696 = vmatpush1.msra.mxu0 0.0
    %2697 = vmatprep.subr.mxu0 0.0
    %2698 = vmatpush1.msra.mxu0 0.0
    %2699 = vmatprep.subr.mxu0 0.0
    %2700 = vmatpush1.msra.mxu0 0.0
    %2701 = vmatprep.mubr.f32.mxu0 0.0
    %2702 = vmatmul.mubr.f32.gmra.mrb[0].mxu0 %v2625
    %v2703 = vpop.f32.mrb[0].mxu0
    %v2704 = vadd.f32 0.0, %v2703
    %v2705 = vpop.f32.mrb[0].mxu0
    %v2706 = vadd.f32 0.0, %v2705
    %2707 = vmatprep.mubr.f32.mxu0 0.0
    %2708 = vmatmul.mubr.f32.gmra.mrb[0].mxu0 %v2627
    %v2709 = vpop.f32.mrb[0].mxu0
    %v2710 = vadd.f32 0.0, %v2709
    %v2711 = vpop.f32.mrb[0].mxu0
    %v2712 = vadd.f32 0.0, %v2711
    %2713 = vmatprep.mubr.f32.mxu0 0.0
    %2714 = vmatmul.mubr.f32.gmra.mrb[0].mxu0 %v2629
    %v2715 = vpop.f32.mrb[0].mxu0
    %v2716 = vadd.f32 0.0, %v2715
    %v2717 = vpop.f32.mrb[0].mxu0
    %v2718 = vadd.f32 0.0, %v2717
    %2719 = vdwg.mxu0
    %v2720 = vadd.f32 %v2594, %v2704
    %v2721 = vadd.f32 %v2596, %v2706
    %v2722 = vadd.f32 %v2600, %v2710
    %v2723 = vadd.f32 %v2602, %v2712
    %v2724 = vadd.f32 %v2606, %v2716
    %v2725 = vadd.f32 %v2608, %v2718
    %v2726 = vld [vmem:[%s481] sm:$0xff]
    %v2727 = vld [vmem:[%s481 + $0x8] sm:$0xff]
    %v2728 = vld [vmem:[%s481 + $0x10] sm:$0xff]
    %v2729 = vld [vmem:[%s481 + $0x18] sm:$0xff]
    %v2730 = vld [vmem:[%s481 + $0x20] sm:$0xff]
    %v2731 = vld [vmem:[%s481 + $0x28] sm:$0xff]
    %v2732 = vld [vmem:[%s481 + $0x30] sm:$0xf]
    %v2733 = vld [vmem:[%s481 + $0x38] sm:$0xf]
    %v2734 = vrot.slane %v2389, 3
    %v2735 = vrot.slane %v2390, 3
    %v2736 = vsel %vm490, %v2734, %v2735
    %v2737 = vrot.slane %v2391, 3
    %v2738 = vsel %vm490, %v2735, %v2737
    %v2739 = vrot.slane %v2392, 3
    %v2740 = vsel %vm490, %v2737, %v2739
    %v2741 = vsel %vm171, %v2736, 0
    %v2743 = vsel %vm171, %v2738, 0
    %v2745 = vsel %vm171, %v2740, 0
    %v2748 = vsel %vm178, %v2732, 0
    %v2751 = vsel %vm178, %v2733, 0
    %2753 = vmatprep.subr.mxu0 %v2727
    %2754 = vmatpush1.msra.mxu0 %v2726
    %2755 = vmatprep.subr.mxu0 %v2729
    %2756 = vmatpush1.msra.mxu0 %v2728
    %2757 = vmatprep.subr.mxu0 %v2731
    %2758 = vmatpush1.msra.mxu0 %v2730
    %2759 = vmatprep.subr.mxu0 %v2751
    %2760 = vmatpush1.msra.mxu0 %v2748
    %2761 = vmatprep.subr.mxu0 0.0
    %2762 = vmatpush1.msra.mxu0 0.0
    %2763 = vmatprep.subr.mxu0 0.0
    %2764 = vmatpush1.msra.mxu0 0.0
    %2765 = vmatprep.subr.mxu0 0.0
    %2766 = vmatpush1.msra.mxu0 0.0
    %2767 = vmatprep.subr.mxu0 0.0
    %2768 = vmatpush1.msra.mxu0 0.0
    %2769 = vmatprep.subr.mxu0 0.0
    %2770 = vmatpush1.msra.mxu0 0.0
    %2771 = vmatprep.subr.mxu0 0.0
    %2772 = vmatpush1.msra.mxu0 0.0
    %2773 = vmatprep.subr.mxu0 0.0
    %2774 = vmatpush1.msra.mxu0 0.0
    %2775 = vmatprep.subr.mxu0 0.0
    %2776 = vmatpush1.msra.mxu0 0.0
    %2777 = vmatprep.subr.mxu0 0.0
    %2778 = vmatpush1.msra.mxu0 0.0
    %2779 = vmatprep.subr.mxu0 0.0
    %2780 = vmatpush1.msra.mxu0 0.0
    %2781 = vmatprep.subr.mxu0 0.0
    %2782 = vmatpush1.msra.mxu0 0.0
    %2783 = vmatprep.subr.mxu0 0.0
    %2784 = vmatpush1.msra.mxu0 0.0
    %2785 = vmatprep.subr.mxu0 0.0
    %2786 = vmatpush1.msra.mxu0 0.0
    %2787 = vmatprep.subr.mxu0 0.0
    %2788 = vmatpush1.msra.mxu0 0.0
    %2789 = vmatprep.subr.mxu0 0.0
    %2790 = vmatpush1.msra.mxu0 0.0
    %2791 = vmatprep.subr.mxu0 0.0
    %2792 = vmatpush1.msra.mxu0 0.0
    %2793 = vmatprep.subr.mxu0 0.0
    %2794 = vmatpush1.msra.mxu0 0.0
    %2795 = vmatprep.subr.mxu0 0.0
    %2796 = vmatpush1.msra.mxu0 0.0
    %2797 = vmatprep.subr.mxu0 0.0
    %2798 = vmatpush1.msra.mxu0 0.0
    %2799 = vmatprep.subr.mxu0 0.0
    %2800 = vmatpush1.msra.mxu0 0.0
    %2801 = vmatprep.subr.mxu0 0.0
    %2802 = vmatpush1.msra.mxu0 0.0
    %2803 = vmatprep.subr.mxu0 0.0
    %2804 = vmatpush1.msra.mxu0 0.0
    %2805 = vmatprep.subr.mxu0 0.0
    %2806 = vmatpush1.msra.mxu0 0.0
    %2807 = vmatprep.subr.mxu0 0.0
    %2808 = vmatpush1.msra.mxu0 0.0
    %2809 = vmatprep.subr.mxu0 0.0
    %2810 = vmatpush1.msra.mxu0 0.0
    %2811 = vmatprep.subr.mxu0 0.0
    %2812 = vmatpush1.msra.mxu0 0.0
    %2813 = vmatprep.subr.mxu0 0.0
    %2814 = vmatpush1.msra.mxu0 0.0
    %2815 = vmatprep.subr.mxu0 0.0
    %2816 = vmatpush1.msra.mxu0 0.0
    %2817 = vmatprep.mubr.f32.mxu0 0.0
    %2818 = vmatmul.mubr.f32.gmra.mrb[0].mxu0 %v2741
    %v2819 = vpop.f32.mrb[0].mxu0
    %v2820 = vadd.f32 0.0, %v2819
    %v2821 = vpop.f32.mrb[0].mxu0
    %v2822 = vadd.f32 0.0, %v2821
    %2823 = vmatprep.mubr.f32.mxu0 0.0
    %2824 = vmatmul.mubr.f32.gmra.mrb[0].mxu0 %v2743
    %v2825 = vpop.f32.mrb[0].mxu0
    %v2826 = vadd.f32 0.0, %v2825
    %v2827 = vpop.f32.mrb[0].mxu0
    %v2828 = vadd.f32 0.0, %v2827
    %2829 = vmatprep.mubr.f32.mxu0 0.0
    %2830 = vmatmul.mubr.f32.gmra.mrb[0].mxu0 %v2745
    %v2831 = vpop.f32.mrb[0].mxu0
    %v2832 = vadd.f32 0.0, %v2831
    %v2833 = vpop.f32.mrb[0].mxu0
    %v2834 = vadd.f32 0.0, %v2833
    %2835 = vdwg.mxu0
    %v2836 = vadd.f32 %v2720, %v2820
    %v2837 = vadd.f32 %v2721, %v2822
    %v2838 = vadd.f32 %v2722, %v2826
    %v2839 = vadd.f32 %v2723, %v2828
    %v2840 = vadd.f32 %v2724, %v2832
    %v2841 = vadd.f32 %v2725, %v2834
    %v2842 = vld [vmem:[%s599] sm:$0xff]
    %v2843 = vld [vmem:[%s599 + $0x8] sm:$0xff]
    %v2844 = vld [vmem:[%s599 + $0x10] sm:$0xff]
    %v2845 = vld [vmem:[%s599 + $0x18] sm:$0xff]
    %v2846 = vld [vmem:[%s599 + $0x20] sm:$0xff]
    %v2847 = vld [vmem:[%s599 + $0x28] sm:$0xff]
    %v2848 = vld [vmem:[%s599 + $0x30] sm:$0xf]
    %v2849 = vld [vmem:[%s599 + $0x38] sm:$0xf]
    %v2850 = vrot.slane %v2389, 4
    %v2851 = vrot.slane %v2390, 4
    %v2852 = vsel %vm178, %v2850, %v2851
    %v2853 = vrot.slane %v2391, 4
    %v2854 = vsel %vm178, %v2851, %v2853
    %v2855 = vrot.slane %v2392, 4
    %v2856 = vsel %vm178, %v2853, %v2855
    %v2857 = vsel %vm171, %v2852, 0
    %v2859 = vsel %vm171, %v2854, 0
    %v2861 = vsel %vm171, %v2856, 0
    %v2864 = vsel %vm178, %v2848, 0
    %v2867 = vsel %vm178, %v2849, 0
    %2869 = vmatprep.subr.mxu0 %v2843
    %2870 = vmatpush1.msra.mxu0 %v2842
    %2871 = vmatprep.subr.mxu0 %v2845
    %2872 = vmatpush1.msra.mxu0 %v2844
    %2873 = vmatprep.subr.mxu0 %v2847
    %2874 = vmatpush1.msra.mxu0 %v2846
    %2875 = vmatprep.subr.mxu0 %v2867
    %2876 = vmatpush1.msra.mxu0 %v2864
    %2877 = vmatprep.subr.mxu0 0.0
    %2878 = vmatpush1.msra.mxu0 0.0
    %2879 = vmatprep.subr.mxu0 0.0
    %2880 = vmatpush1.msra.mxu0 0.0
    %2881 = vmatprep.subr.mxu0 0.0
    %2882 = vmatpush1.msra.mxu0 0.0
    %2883 = vmatprep.subr.mxu0 0.0
    %2884 = vmatpush1.msra.mxu0 0.0
    %2885 = vmatprep.subr.mxu0 0.0
    %2886 = vmatpush1.msra.mxu0 0.0
    %2887 = vmatprep.subr.mxu0 0.0
    %2888 = vmatpush1.msra.mxu0 0.0
    %2889 = vmatprep.subr.mxu0 0.0
    %2890 = vmatpush1.msra.mxu0 0.0
    %2891 = vmatprep.subr.mxu0 0.0
    %2892 = vmatpush1.msra.mxu0 0.0
    %2893 = vmatprep.subr.mxu0 0.0
    %2894 = vmatpush1.msra.mxu0 0.0
    %2895 = vmatprep.subr.mxu0 0.0
    %2896 = vmatpush1.msra.mxu0 0.0
    %2897 = vmatprep.subr.mxu0 0.0
    %2898 = vmatpush1.msra.mxu0 0.0
    %2899 = vmatprep.subr.mxu0 0.0
    %2900 = vmatpush1.msra.mxu0 0.0
    %2901 = vmatprep.subr.mxu0 0.0
    %2902 = vmatpush1.msra.mxu0 0.0
    %2903 = vmatprep.subr.mxu0 0.0
    %2904 = vmatpush1.msra.mxu0 0.0
    %2905 = vmatprep.subr.mxu0 0.0
    %2906 = vmatpush1.msra.mxu0 0.0
    %2907 = vmatprep.subr.mxu0 0.0
    %2908 = vmatpush1.msra.mxu0 0.0
    %2909 = vmatprep.subr.mxu0 0.0
    %2910 = vmatpush1.msra.mxu0 0.0
    %2911 = vmatprep.subr.mxu0 0.0
    %2912 = vmatpush1.msra.mxu0 0.0
    %2913 = vmatprep.subr.mxu0 0.0
    %2914 = vmatpush1.msra.mxu0 0.0
    %2915 = vmatprep.subr.mxu0 0.0
    %2916 = vmatpush1.msra.mxu0 0.0
    %2917 = vmatprep.subr.mxu0 0.0
    %2918 = vmatpush1.msra.mxu0 0.0
    %2919 = vmatprep.subr.mxu0 0.0
    %2920 = vmatpush1.msra.mxu0 0.0
    %2921 = vmatprep.subr.mxu0 0.0
    %2922 = vmatpush1.msra.mxu0 0.0
    %2923 = vmatprep.subr.mxu0 0.0
    %2924 = vmatpush1.msra.mxu0 0.0
    %2925 = vmatprep.subr.mxu0 0.0
    %2926 = vmatpush1.msra.mxu0 0.0
    %2927 = vmatprep.subr.mxu0 0.0
    %2928 = vmatpush1.msra.mxu0 0.0
    %2929 = vmatprep.subr.mxu0 0.0
    %2930 = vmatpush1.msra.mxu0 0.0
    %2931 = vmatprep.subr.mxu0 0.0
    %2932 = vmatpush1.msra.mxu0 0.0
    %2933 = vmatprep.mubr.f32.mxu0 0.0
    %2934 = vmatmul.mubr.f32.gmra.mrb[0].mxu0 %v2857
    %v2935 = vpop.f32.mrb[0].mxu0
    %v2936 = vadd.f32 0.0, %v2935
    %v2937 = vpop.f32.mrb[0].mxu0
    %v2938 = vadd.f32 0.0, %v2937
    %2939 = vmatprep.mubr.f32.mxu0 0.0
    %2940 = vmatmul.mubr.f32.gmra.mrb[0].mxu0 %v2859
    %v2941 = vpop.f32.mrb[0].mxu0
    %v2942 = vadd.f32 0.0, %v2941
    %v2943 = vpop.f32.mrb[0].mxu0
    %v2944 = vadd.f32 0.0, %v2943
    %2945 = vmatprep.mubr.f32.mxu0 0.0
    %2946 = vmatmul.mubr.f32.gmra.mrb[0].mxu0 %v2861
    %v2947 = vpop.f32.mrb[0].mxu0
    %v2948 = vadd.f32 0.0, %v2947
    %v2949 = vpop.f32.mrb[0].mxu0
    %v2950 = vadd.f32 0.0, %v2949
    %2951 = vdwg.mxu0
    %v2952 = vadd.f32 %v2836, %v2936
    %v2953 = vadd.f32 %v2837, %v2938
    %v2954 = vadd.f32 %v2838, %v2942
    %v2955 = vadd.f32 %v2839, %v2944
    %v2956 = vadd.f32 %v2840, %v2948
    %v2957 = vadd.f32 %v2841, %v2950
    %v2958 = vld [vmem:[#allocation2] sm:$0x3]
    %v2960 = vlaneseq
    %v2961 = vshrl.u32 %v2960, 7
    %v2962 = vsub.s32 0, %v2961
    %v2963 = vrot.slane %v2958, %v2962
    %v2964 = vlaneseq
    %v2965 = vshrl.u32 %v2964, 7
    %v2966 = vsub.s32 1, %v2965
    %v2967 = vrot.slane %v2958, %v2966
    %v2970 = vadd.f32 %v2952, %v2963
    %v2971 = vadd.f32 %v2953, %v2967
    %v2972 = vadd.f32 %v2954, %v2963
    %v2973 = vadd.f32 %v2955, %v2967
    %v2974 = vadd.f32 %v2956, %v2963
    %v2975 = vadd.f32 %v2957, %v2967
    %v2976 = vmax.f32 %v2970, 0.0
    %v2977 = vmax.f32 %v2971, 0.0
    %v2978 = vmax.f32 %v2972, 0.0
    %v2979 = vmax.f32 %v2973, 0.0
    %v2980 = vmax.f32 %v2974, 0.0
    %v2981 = vmax.f32 %v2975, 0.0
    %v2982 = vld [vmem:[%s3] sm:$0xff]
    %v2983 = vld [vmem:[%s3 + $0x8] sm:$0xf]
    %v2985 = vsel %vm742, %v2982, 0
    %v2988 = vsel %vm742, %v2983, 0
    %2990 = vmatprep.subr.mxu0 %v2977
    %2991 = vmatpush1.msra.mxu0 %v2976
    %2992 = vmatprep.subr.mxu0 %v2979
    %2993 = vmatpush1.msra.mxu0 %v2978
    %2994 = vmatprep.subr.mxu0 %v2981
    %2995 = vmatpush1.msra.mxu0 %v2980
    %2996 = vmatprep.subr.mxu0 0.0
    %2997 = vmatpush1.msra.mxu0 0.0
    %2998 = vmatprep.subr.mxu0 0.0
    %2999 = vmatpush1.msra.mxu0 0.0
    %3000 = vmatprep.subr.mxu0 0.0
    %3001 = vmatpush1.msra.mxu0 0.0
    %3002 = vmatprep.subr.mxu0 0.0
    %3003 = vmatpush1.msra.mxu0 0.0
    %3004 = vmatprep.subr.mxu0 0.0
    %3005 = vmatpush1.msra.mxu0 0.0
    %3006 = vmatprep.subr.mxu0 0.0
    %3007 = vmatpush1.msra.mxu0 0.0
    %3008 = vmatprep.subr.mxu0 0.0
    %3009 = vmatpush1.msra.mxu0 0.0
    %3010 = vmatprep.subr.mxu0 0.0
    %3011 = vmatpush1.msra.mxu0 0.0
    %3012 = vmatprep.subr.mxu0 0.0
    %3013 = vmatpush1.msra.mxu0 0.0
    %3014 = vmatprep.subr.mxu0 0.0
    %3015 = vmatpush1.msra.mxu0 0.0
    %3016 = vmatprep.subr.mxu0 0.0
    %3017 = vmatpush1.msra.mxu0 0.0
    %3018 = vmatprep.subr.mxu0 0.0
    %3019 = vmatpush1.msra.mxu0 0.0
    %3020 = vmatprep.subr.mxu0 0.0
    %3021 = vmatpush1.msra.mxu0 0.0
    %3022 = vmatprep.subr.mxu0 0.0
    %3023 = vmatpush1.msra.mxu0 0.0
    %3024 = vmatprep.subr.mxu0 0.0
    %3025 = vmatpush1.msra.mxu0 0.0
    %3026 = vmatprep.subr.mxu0 0.0
    %3027 = vmatpush1.msra.mxu0 0.0
    %3028 = vmatprep.subr.mxu0 0.0
    %3029 = vmatpush1.msra.mxu0 0.0
    %3030 = vmatprep.subr.mxu0 0.0
    %3031 = vmatpush1.msra.mxu0 0.0
    %3032 = vmatprep.subr.mxu0 0.0
    %3033 = vmatpush1.msra.mxu0 0.0
    %3034 = vmatprep.subr.mxu0 0.0
    %3035 = vmatpush1.msra.mxu0 0.0
    %3036 = vmatprep.subr.mxu0 0.0
    %3037 = vmatpush1.msra.mxu0 0.0
    %3038 = vmatprep.subr.mxu0 0.0
    %3039 = vmatpush1.msra.mxu0 0.0
    %3040 = vmatprep.subr.mxu0 0.0
    %3041 = vmatpush1.msra.mxu0 0.0
    %3042 = vmatprep.subr.mxu0 0.0
    %3043 = vmatpush1.msra.mxu0 0.0
    %3044 = vmatprep.subr.mxu0 0.0
    %3045 = vmatpush1.msra.mxu0 0.0
    %3046 = vmatprep.subr.mxu0 0.0
    %3047 = vmatpush1.msra.mxu0 0.0
    %3048 = vmatprep.subr.mxu0 0.0
    %3049 = vmatpush1.msra.mxu0 0.0
    %3050 = vmatprep.subr.mxu0 0.0
    %3051 = vmatpush1.msra.mxu0 0.0
    %3052 = vmatprep.subr.mxu0 0.0
    %3053 = vmatpush1.msra.mxu0 0.0
    %3054 = vmatprep.mubr.f32.mxu0 0.0
    %3055 = vmatmul.mubr.f32.gmra.mrb[0].mxu0 %v2985
    %v3056 = vpop.f32.mrb[0].mxu0
    %v3057 = vadd.f32 0.0, %v3056
    %v3058 = vpop.f32.mrb[0].mxu0
    %v3059 = vadd.f32 0.0, %v3058
    %3060 = vmatprep.mubr.f32.mxu0 0.0
    %3061 = vmatmul.mubr.f32.gmra.mrb[0].mxu0 %v2988
    %v3062 = vpop.f32.mrb[0].mxu0
    %v3063 = vadd.f32 0.0, %v3062
    %v3064 = vpop.f32.mrb[0].mxu0
    %v3065 = vadd.f32 0.0, %v3064
    %3066 = vdwg.mxu0
    %v3067 = vld [vmem:[%s826] sm:$0xff]
    %v3068 = vld [vmem:[%s826 + $0x8] sm:$0xf]
    %v3070 = vsel %vm742, %v3067, 0
    %v3073 = vsel %vm742, %v3068, 0
    %3075 = vmatprep.subr.mxu0 %v2977
    %3076 = vmatpush1.msra.mxu0 %v2976
    %3077 = vmatprep.subr.mxu0 %v2979
    %3078 = vmatpush1.msra.mxu0 %v2978
    %3079 = vmatprep.subr.mxu0 %v2981
    %3080 = vmatpush1.msra.mxu0 %v2980
    %3081 = vmatprep.subr.mxu0 0.0
    %3082 = vmatpush1.msra.mxu0 0.0
    %3083 = vmatprep.subr.mxu0 0.0
    %3084 = vmatpush1.msra.mxu0 0.0
    %3085 = vmatprep.subr.mxu0 0.0
    %3086 = vmatpush1.msra.mxu0 0.0
    %3087 = vmatprep.subr.mxu0 0.0
    %3088 = vmatpush1.msra.mxu0 0.0
    %3089 = vmatprep.subr.mxu0 0.0
    %3090 = vmatpush1.msra.mxu0 0.0
    %3091 = vmatprep.subr.mxu0 0.0
    %3092 = vmatpush1.msra.mxu0 0.0
    %3093 = vmatprep.subr.mxu0 0.0
    %3094 = vmatpush1.msra.mxu0 0.0
    %3095 = vmatprep.subr.mxu0 0.0
    %3096 = vmatpush1.msra.mxu0 0.0
    %3097 = vmatprep.subr.mxu0 0.0
    %3098 = vmatpush1.msra.mxu0 0.0
    %3099 = vmatprep.subr.mxu0 0.0
    %3100 = vmatpush1.msra.mxu0 0.0
    %3101 = vmatprep.subr.mxu0 0.0
    %3102 = vmatpush1.msra.mxu0 0.0
    %3103 = vmatprep.subr.mxu0 0.0
    %3104 = vmatpush1.msra.mxu0 0.0
    %3105 = vmatprep.subr.mxu0 0.0
    %3106 = vmatpush1.msra.mxu0 0.0
    %3107 = vmatprep.subr.mxu0 0.0
    %3108 = vmatpush1.msra.mxu0 0.0
    %3109 = vmatprep.subr.mxu0 0.0
    %3110 = vmatpush1.msra.mxu0 0.0
    %3111 = vmatprep.subr.mxu0 0.0
    %3112 = vmatpush1.msra.mxu0 0.0
    %3113 = vmatprep.subr.mxu0 0.0
    %3114 = vmatpush1.msra.mxu0 0.0
    %3115 = vmatprep.subr.mxu0 0.0
    %3116 = vmatpush1.msra.mxu0 0.0
    %3117 = vmatprep.subr.mxu0 0.0
    %3118 = vmatpush1.msra.mxu0 0.0
    %3119 = vmatprep.subr.mxu0 0.0
    %3120 = vmatpush1.msra.mxu0 0.0
    %3121 = vmatprep.subr.mxu0 0.0
    %3122 = vmatpush1.msra.mxu0 0.0
    %3123 = vmatprep.subr.mxu0 0.0
    %3124 = vmatpush1.msra.mxu0 0.0
    %3125 = vmatprep.subr.mxu0 0.0
    %3126 = vmatpush1.msra.mxu0 0.0
    %3127 = vmatprep.subr.mxu0 0.0
    %3128 = vmatpush1.msra.mxu0 0.0
    %3129 = vmatprep.subr.mxu0 0.0
    %3130 = vmatpush1.msra.mxu0 0.0
    %3131 = vmatprep.subr.mxu0 0.0
    %3132 = vmatpush1.msra.mxu0 0.0
    %3133 = vmatprep.subr.mxu0 0.0
    %3134 = vmatpush1.msra.mxu0 0.0
    %3135 = vmatprep.subr.mxu0 0.0
    %3136 = vmatpush1.msra.mxu0 0.0
    %3137 = vmatprep.subr.mxu0 0.0
    %3138 = vmatpush1.msra.mxu0 0.0
    %3139 = vmatprep.mubr.f32.mxu0 0.0
    %3140 = vmatmul.mubr.f32.gmra.mrb[0].mxu0 %v3070
    %v3141 = vpop.f32.mrb[0].mxu0
    %v3142 = vadd.f32 0.0, %v3141
    %v3143 = vpop.f32.mrb[0].mxu0
    %v3144 = vadd.f32 0.0, %v3143
    %3145 = vmatprep.mubr.f32.mxu0 0.0
    %3146 = vmatmul.mubr.f32.gmra.mrb[0].mxu0 %v3073
    %v3147 = vpop.f32.mrb[0].mxu0
    %v3148 = vadd.f32 0.0, %v3147
    %v3149 = vpop.f32.mrb[0].mxu0
    %v3150 = vadd.f32 0.0, %v3149
    %3151 = vdwg.mxu0
    %v3152 = vmax.f32 %v3057, %v3142
    %v3153 = vmax.f32 %v3059, %v3144
    %v3154 = vmax.f32 %v3063, %v3148
    %v3155 = vmax.f32 %v3065, %v3150
    %v3156 = vld [vmem:[#allocation5] sm:$0xff]
    %v3157 = vld [vmem:[#allocation5 + $0x8] sm:$0xff]
    %v3158 = vld [vmem:[#allocation5 + $0x10] sm:$0xff]
    %v3159 = vld [vmem:[#allocation5 + $0x18] sm:$0xff]
    %v3160 = vld [vmem:[#allocation5 + $0x20] sm:$0xff]
    %v3161 = vld [vmem:[#allocation5 + $0x28] sm:$0xff]
    %v3162 = vld [vmem:[#allocation5 + $0x30] sm:$0xff]
    %v3163 = vld [vmem:[#allocation5 + $0x38] sm:$0xff]
    %v3164 = vld [vmem:[#allocation5 + $0x40] sm:$0xff]
    %v3165 = vld [vmem:[#allocation5 + $0x48] sm:$0xff]
    %v3166 = vld [vmem:[#allocation5 + $0x50] sm:$0xff]
    %v3167 = vld [vmem:[#allocation5 + $0x58] sm:$0xff]
    %v3168 = vld [vmem:[#allocation5 + $0x60] sm:$0xff]
    %v3169 = vld [vmem:[#allocation5 + $0x68] sm:$0xff]
    %v3170 = vld [vmem:[#allocation5 + $0x70] sm:$0xff]
    %v3171 = vld [vmem:[#allocation5 + $0x78] sm:$0xff]
    %v3172 = vld [vmem:[#allocation5 + $0x80] sm:$0xff]
    %v3173 = vld [vmem:[#allocation5 + $0x88] sm:$0xff]
    %v3175 = vsel %vm934, %v3153, 0
    %v3178 = vsel %vm934, %v3155, 0
    %3180 = vmatprep.subr.mxu0 0.0
    %3181 = vmatpush1.msra.mxu0 %v3156
    %3182 = vmatprep.subr.mxu0 0.0
    %3183 = vmatpush1.msra.mxu0 %v3157
    %3184 = vmatprep.subr.mxu0 0.0
    %3185 = vmatpush1.msra.mxu0 %v3158
    %3186 = vmatprep.subr.mxu0 0.0
    %3187 = vmatpush1.msra.mxu0 %v3159
    %3188 = vmatprep.subr.mxu0 0.0
    %3189 = vmatpush1.msra.mxu0 %v3160
    %3190 = vmatprep.subr.mxu0 0.0
    %3191 = vmatpush1.msra.mxu0 %v3161
    %3192 = vmatprep.subr.mxu0 0.0
    %3193 = vmatpush1.msra.mxu0 %v3162
    %3194 = vmatprep.subr.mxu0 0.0
    %3195 = vmatpush1.msra.mxu0 %v3163
    %3196 = vmatprep.subr.mxu0 0.0
    %3197 = vmatpush1.msra.mxu0 %v3164
    %3198 = vmatprep.subr.mxu0 0.0
    %3199 = vmatpush1.msra.mxu0 %v3165
    %3200 = vmatprep.subr.mxu0 0.0
    %3201 = vmatpush1.msra.mxu0 %v3166
    %3202 = vmatprep.subr.mxu0 0.0
    %3203 = vmatpush1.msra.mxu0 %v3167
    %3204 = vmatprep.subr.mxu0 0.0
    %3205 = vmatpush1.msra.mxu0 %v3168
    %3206 = vmatprep.subr.mxu0 0.0
    %3207 = vmatpush1.msra.mxu0 %v3169
    %3208 = vmatprep.subr.mxu0 0.0
    %3209 = vmatpush1.msra.mxu0 %v3170
    %3210 = vmatprep.subr.mxu0 0.0
    %3211 = vmatpush1.msra.mxu0 %v3171
    %3212 = vmatprep.subr.mxu0 0.0
    %3213 = vmatpush1.msra.mxu0 %v3172
    %3214 = vmatprep.subr.mxu0 0.0
    %3215 = vmatpush1.msra.mxu0 %v3173
    %3216 = vmatprep.subr.mxu0 0.0
    %3217 = vmatpush1.msra.mxu0 0.0
    %3218 = vmatprep.subr.mxu0 0.0
    %3219 = vmatpush1.msra.mxu0 0.0
    %3220 = vmatprep.subr.mxu0 0.0
    %3221 = vmatpush1.msra.mxu0 0.0
    %3222 = vmatprep.subr.mxu0 0.0
    %3223 = vmatpush1.msra.mxu0 0.0
    %3224 = vmatprep.subr.mxu0 0.0
    %3225 = vmatpush1.msra.mxu0 0.0
    %3226 = vmatprep.subr.mxu0 0.0
    %3227 = vmatpush1.msra.mxu0 0.0
    %3228 = vmatprep.subr.mxu0 0.0
    %3229 = vmatpush1.msra.mxu0 0.0
    %3230 = vmatprep.subr.mxu0 0.0
    %3231 = vmatpush1.msra.mxu0 0.0
    %3232 = vmatprep.subr.mxu0 0.0
    %3233 = vmatpush1.msra.mxu0 0.0
    %3234 = vmatprep.subr.mxu0 0.0
    %3235 = vmatpush1.msra.mxu0 0.0
    %3236 = vmatprep.subr.mxu0 0.0
    %3237 = vmatpush1.msra.mxu0 0.0
    %3238 = vmatprep.subr.mxu0 0.0
    %3239 = vmatpush1.msra.mxu0 0.0
    %3240 = vmatprep.subr.mxu0 0.0
    %3241 = vmatpush1.msra.mxu0 0.0
    %3242 = vmatprep.subr.mxu0 0.0
    %3243 = vmatpush1.msra.mxu0 0.0
    %3244 = vmatprep.mubr.f32.mxu0 %v3175
    %3245 = vmatmul.mubr.f32.gmra.mrb[0].mxu0 %v3152
    %v3246 = vpop.f32.mrb[0].mxu0
    %v3247 = vadd.f32 0.0, %v3246
    %v3248 = vpop.f32.mrb[0].mxu0
    %3249 = vmatprep.mubr.f32.mxu0 %v3178
    %3250 = vmatmul.mubr.f32.gmra.mrb[0].mxu0 %v3154
    %v3251 = vpop.f32.mrb[0].mxu0
    %v3252 = vadd.f32 0.0, %v3251
    %v3253 = vpop.f32.mrb[0].mxu0
    %3254 = vdwg.mxu0
    %v3255 = vld [vmem:[%s1016] sm:$0xff]
    %v3256 = vld [vmem:[%s1016 + $0x8] sm:$0xff]
    %v3257 = vld [vmem:[%s1016 + $0x10] sm:$0xff]
    %v3258 = vld [vmem:[%s1016 + $0x18] sm:$0xff]
    %v3259 = vld [vmem:[%s1016 + $0x20] sm:$0xff]
    %v3260 = vld [vmem:[%s1016 + $0x28] sm:$0xff]
    %v3261 = vld [vmem:[%s1016 + $0x30] sm:$0xff]
    %v3262 = vld [vmem:[%s1016 + $0x38] sm:$0xff]
    %v3263 = vld [vmem:[%s1016 + $0x40] sm:$0xff]
    %v3264 = vld [vmem:[%s1016 + $0x48] sm:$0xff]
    %v3265 = vld [vmem:[%s1016 + $0x50] sm:$0xff]
    %v3266 = vld [vmem:[%s1016 + $0x58] sm:$0xff]
    %v3267 = vld [vmem:[%s1016 + $0x60] sm:$0xff]
    %v3268 = vld [vmem:[%s1016 + $0x68] sm:$0xff]
    %v3269 = vld [vmem:[%s1016 + $0x70] sm:$0xff]
    %v3270 = vld [vmem:[%s1016 + $0x78] sm:$0xff]
    %v3271 = vld [vmem:[%s1016 + $0x80] sm:$0xff]
    %v3272 = vld [vmem:[%s1016 + $0x88] sm:$0xff]
    %3273 = vmatprep.subr.mxu0 0.0
    %3274 = vmatpush1.msra.mxu0 %v3255
    %3275 = vmatprep.subr.mxu0 0.0
    %3276 = vmatpush1.msra.mxu0 %v3256
    %3277 = vmatprep.subr.mxu0 0.0
    %3278 = vmatpush1.msra.mxu0 %v3257
    %3279 = vmatprep.subr.mxu0 0.0
    %3280 = vmatpush1.msra.mxu0 %v3258
    %3281 = vmatprep.subr.mxu0 0.0
    %3282 = vmatpush1.msra.mxu0 %v3259
    %3283 = vmatprep.subr.mxu0 0.0
    %3284 = vmatpush1.msra.mxu0 %v3260
    %3285 = vmatprep.subr.mxu0 0.0
    %3286 = vmatpush1.msra.mxu0 %v3261
    %3287 = vmatprep.subr.mxu0 0.0
    %3288 = vmatpush1.msra.mxu0 %v3262
    %3289 = vmatprep.subr.mxu0 0.0
    %3290 = vmatpush1.msra.mxu0 %v3263
    %3291 = vmatprep.subr.mxu0 0.0
    %3292 = vmatpush1.msra.mxu0 %v3264
    %3293 = vmatprep.subr.mxu0 0.0
    %3294 = vmatpush1.msra.mxu0 %v3265
    %3295 = vmatprep.subr.mxu0 0.0
    %3296 = vmatpush1.msra.mxu0 %v3266
    %3297 = vmatprep.subr.mxu0 0.0
    %3298 = vmatpush1.msra.mxu0 %v3267
    %3299 = vmatprep.subr.mxu0 0.0
    %3300 = vmatpush1.msra.mxu0 %v3268
    %3301 = vmatprep.subr.mxu0 0.0
    %3302 = vmatpush1.msra.mxu0 %v3269
    %3303 = vmatprep.subr.mxu0 0.0
    %3304 = vmatpush1.msra.mxu0 %v3270
    %3305 = vmatprep.subr.mxu0 0.0
    %3306 = vmatpush1.msra.mxu0 %v3271
    %3307 = vmatprep.subr.mxu0 0.0
    %3308 = vmatpush1.msra.mxu0 %v3272
    %3309 = vmatprep.subr.mxu0 0.0
    %3310 = vmatpush1.msra.mxu0 0.0
    %3311 = vmatprep.subr.mxu0 0.0
    %3312 = vmatpush1.msra.mxu0 0.0
    %3313 = vmatprep.subr.mxu0 0.0
    %3314 = vmatpush1.msra.mxu0 0.0
    %3315 = vmatprep.subr.mxu0 0.0
    %3316 = vmatpush1.msra.mxu0 0.0
    %3317 = vmatprep.subr.mxu0 0.0
    %3318 = vmatpush1.msra.mxu0 0.0
    %3319 = vmatprep.subr.mxu0 0.0
    %3320 = vmatpush1.msra.mxu0 0.0
    %3321 = vmatprep.subr.mxu0 0.0
    %3322 = vmatpush1.msra.mxu0 0.0
    %3323 = vmatprep.subr.mxu0 0.0
    %3324 = vmatpush1.msra.mxu0 0.0
    %3325 = vmatprep.subr.mxu0 0.0
    %3326 = vmatpush1.msra.mxu0 0.0
    %3327 = vmatprep.subr.mxu0 0.0
    %3328 = vmatpush1.msra.mxu0 0.0
    %3329 = vmatprep.subr.mxu0 0.0
    %3330 = vmatpush1.msra.mxu0 0.0
    %3331 = vmatprep.subr.mxu0 0.0
    %3332 = vmatpush1.msra.mxu0 0.0
    %3333 = vmatprep.subr.mxu0 0.0
    %3334 = vmatpush1.msra.mxu0 0.0
    %3335 = vmatprep.subr.mxu0 0.0
    %3336 = vmatpush1.msra.mxu0 0.0
    %3337 = vmatprep.mubr.f32.mxu0 %v3175
    %3338 = vmatmul.mubr.f32.gmra.mrb[0].mxu0 %v3152
    %v3339 = vpop.f32.mrb[0].mxu0
    %v3340 = vadd.f32 0.0, %v3339
    %v3341 = vpop.f32.mrb[0].mxu0
    %3342 = vmatprep.mubr.f32.mxu0 %v3178
    %3343 = vmatmul.mubr.f32.gmra.mrb[0].mxu0 %v3154
    %v3344 = vpop.f32.mrb[0].mxu0
    %v3345 = vadd.f32 0.0, %v3344
    %v3346 = vpop.f32.mrb[0].mxu0
    %3347 = vdwg.mxu0
    %v3348 = vmax.f32 %v3247, %v3340
    %v3349 = vmax.f32 %v3252, %v3345
    %v3350 = vld [vmem:[%s5] sm:$0xff]
    %v3351 = vld [vmem:[%s5 + $0x8] sm:$0xff]
    %v3352 = vld [vmem:[%s5 + $0x10] sm:$0xff]
    %v3353 = vld [vmem:[%s5 + $0x18] sm:$0xff]
    %v3354 = vld [vmem:[%s5 + $0x20] sm:$0xff]
    %v3355 = vld [vmem:[%s5 + $0x28] sm:$0xff]
    %v3356 = vld [vmem:[%s5 + $0x30] sm:$0xff]
    %v3357 = vld [vmem:[%s5 + $0x38] sm:$0xff]
    %v3358 = vld [vmem:[%s5 + $0x40] sm:$0xff]
    %v3359 = vld [vmem:[%s1121] sm:$0xff]
    %v3360 = vld [vmem:[%s1121 + $0x8] sm:$0xff]
    %v3361 = vld [vmem:[%s1121 + $0x10] sm:$0xff]
    %v3362 = vld [vmem:[%s1121 + $0x18] sm:$0xff]
    %v3363 = vld [vmem:[%s1121 + $0x20] sm:$0xff]
    %v3364 = vld [vmem:[%s1121 + $0x28] sm:$0xff]
    %v3365 = vld [vmem:[%s1121 + $0x30] sm:$0xff]
    %v3366 = vld [vmem:[%s1121 + $0x38] sm:$0xff]
    %v3367 = vld [vmem:[%s1121 + $0x40] sm:$0xff]
    %v3370 = vrot.slane %v3348, 1
    %v3371 = vrot.slane %v3349, 1
    %v3372 = vsel %vm163, %v3370, %v3371
    %v3373 = vsel %vm1136, %v3372, 0
    %3375 = vmatprep.subr.mxu0 0.0
    %3376 = vmatpush1.msra.mxu0 %v3359
    %3377 = vmatprep.subr.mxu0 0.0
    %3378 = vmatpush1.msra.mxu0 %v3360
    %3379 = vmatprep.subr.mxu0 0.0
    %3380 = vmatpush1.msra.mxu0 %v3361
    %3381 = vmatprep.subr.mxu0 0.0
    %3382 = vmatpush1.msra.mxu0 %v3362
    %3383 = vmatprep.subr.mxu0 0.0
    %3384 = vmatpush1.msra.mxu0 %v3363
    %3385 = vmatprep.subr.mxu0 0.0
    %3386 = vmatpush1.msra.mxu0 %v3364
    %3387 = vmatprep.subr.mxu0 0.0
    %3388 = vmatpush1.msra.mxu0 %v3365
    %3389 = vmatprep.subr.mxu0 0.0
    %3390 = vmatpush1.msra.mxu0 %v3366
    %3391 = vmatprep.subr.mxu0 0.0
    %3392 = vmatpush1.msra.mxu0 %v3367
    %3393 = vmatprep.subr.mxu0 0.0
    %3394 = vmatpush1.msra.mxu0 0.0
    %3395 = vmatprep.subr.mxu0 0.0
    %3396 = vmatpush1.msra.mxu0 0.0
    %3397 = vmatprep.subr.mxu0 0.0
    %3398 = vmatpush1.msra.mxu0 0.0
    %3399 = vmatprep.subr.mxu0 0.0
    %3400 = vmatpush1.msra.mxu0 0.0
    %3401 = vmatprep.subr.mxu0 0.0
    %3402 = vmatpush1.msra.mxu0 0.0
    %3403 = vmatprep.subr.mxu0 0.0
    %3404 = vmatpush1.msra.mxu0 0.0
    %3405 = vmatprep.subr.mxu0 0.0
    %3406 = vmatpush1.msra.mxu0 0.0
    %3407 = vmatprep.subr.mxu0 0.0
    %3408 = vmatpush1.msra.mxu0 0.0
    %3409 = vmatprep.subr.mxu0 0.0
    %3410 = vmatpush1.msra.mxu0 0.0
    %3411 = vmatprep.subr.mxu0 0.0
    %3412 = vmatpush1.msra.mxu0 0.0
    %3413 = vmatprep.subr.mxu0 0.0
    %3414 = vmatpush1.msra.mxu0 0.0
    %3415 = vmatprep.subr.mxu0 0.0
    %3416 = vmatpush1.msra.mxu0 0.0
    %3417 = vmatprep.subr.mxu0 0.0
    %3418 = vmatpush1.msra.mxu0 0.0
    %3419 = vmatprep.subr.mxu0 0.0
    %3420 = vmatpush1.msra.mxu0 0.0
    %3421 = vmatprep.subr.mxu0 0.0
    %3422 = vmatpush1.msra.mxu0 0.0
    %3423 = vmatprep.subr.mxu0 0.0
    %3424 = vmatpush1.msra.mxu0 0.0
    %3425 = vmatprep.subr.mxu0 0.0
    %3426 = vmatpush1.msra.mxu0 0.0
    %3427 = vmatprep.subr.mxu0 0.0
    %3428 = vmatpush1.msra.mxu0 0.0
    %3429 = vmatprep.subr.mxu0 0.0
    %3430 = vmatpush1.msra.mxu0 0.0
    %3431 = vmatprep.subr.mxu0 0.0
    %3432 = vmatpush1.msra.mxu0 0.0
    %3433 = vmatprep.subr.mxu0 0.0
    %3434 = vmatpush1.msra.mxu0 0.0
    %3435 = vmatprep.subr.mxu0 0.0
    %3436 = vmatpush1.msra.mxu0 0.0
    %3437 = vmatprep.subr.mxu0 0.0
    %3438 = vmatpush1.msra.mxu0 0.0
    %3439 = vmatprep.mubr.f32.mxu0 0.0
    %3440 = vmatmul.mubr.f32.gmra.mrb[0].mxu0 %v3373
    %v3441 = vpop.f32.mrb[0].mxu0
    %v3442 = vadd.f32 0.0, %v3441
    %v3443 = vpop.f32.mrb[0].mxu0
    %3444 = vdwg.mxu0
    %v3445 = vsel %vm1136, %v3348, 0
    %3447 = vmatprep.subr.mxu0 0.0
    %3448 = vmatpush1.msra.mxu0 %v3350
    %3449 = vmatprep.subr.mxu0 0.0
    %3450 = vmatpush1.msra.mxu0 %v3351
    %3451 = vmatprep.subr.mxu0 0.0
    %3452 = vmatpush1.msra.mxu0 %v3352
    %3453 = vmatprep.subr.mxu0 0.0
    %3454 = vmatpush1.msra.mxu0 %v3353
    %3455 = vmatprep.subr.mxu0 0.0
    %3456 = vmatpush1.msra.mxu0 %v3354
    %3457 = vmatprep.subr.mxu0 0.0
    %3458 = vmatpush1.msra.mxu0 %v3355
    %3459 = vmatprep.subr.mxu0 0.0
    %3460 = vmatpush1.msra.mxu0 %v3356
    %3461 = vmatprep.subr.mxu0 0.0
    %3462 = vmatpush1.msra.mxu0 %v3357
    %3463 = vmatprep.subr.mxu0 0.0
    %3464 = vmatpush1.msra.mxu0 %v3358
    %3465 = vmatprep.subr.mxu0 0.0
    %3466 = vmatpush1.msra.mxu0 0.0
    %3467 = vmatprep.subr.mxu0 0.0
    %3468 = vmatpush1.msra.mxu0 0.0
    %3469 = vmatprep.subr.mxu0 0.0
    %3470 = vmatpush1.msra.mxu0 0.0
    %3471 = vmatprep.subr.mxu0 0.0
    %3472 = vmatpush1.msra.mxu0 0.0
    %3473 = vmatprep.subr.mxu0 0.0
    %3474 = vmatpush1.msra.mxu0 0.0
    %3475 = vmatprep.subr.mxu0 0.0
    %3476 = vmatpush1.msra.mxu0 0.0
    %3477 = vmatprep.subr.mxu0 0.0
    %3478 = vmatpush1.msra.mxu0 0.0
    %3479 = vmatprep.subr.mxu0 0.0
    %3480 = vmatpush1.msra.mxu0 0.0
    %3481 = vmatprep.subr.mxu0 0.0
    %3482 = vmatpush1.msra.mxu0 0.0
    %3483 = vmatprep.subr.mxu0 0.0
    %3484 = vmatpush1.msra.mxu0 0.0
    %3485 = vmatprep.subr.mxu0 0.0
    %3486 = vmatpush1.msra.mxu0 0.0
    %3487 = vmatprep.subr.mxu0 0.0
    %3488 = vmatpush1.msra.mxu0 0.0
    %3489 = vmatprep.subr.mxu0 0.0
    %3490 = vmatpush1.msra.mxu0 0.0
    %3491 = vmatprep.subr.mxu0 0.0
    %3492 = vmatpush1.msra.mxu0 0.0
    %3493 = vmatprep.subr.mxu0 0.0
    %3494 = vmatpush1.msra.mxu0 0.0
    %3495 = vmatprep.subr.mxu0 0.0
    %3496 = vmatpush1.msra.mxu0 0.0
    %3497 = vmatprep.subr.mxu0 0.0
    %3498 = vmatpush1.msra.mxu0 0.0
    %3499 = vmatprep.subr.mxu0 0.0
    %3500 = vmatpush1.msra.mxu0 0.0
    %3501 = vmatprep.subr.mxu0 0.0
    %3502 = vmatpush1.msra.mxu0 0.0
    %3503 = vmatprep.subr.mxu0 0.0
    %3504 = vmatpush1.msra.mxu0 0.0
    %3505 = vmatprep.subr.mxu0 0.0
    %3506 = vmatpush1.msra.mxu0 0.0
    %3507 = vmatprep.subr.mxu0 0.0
    %3508 = vmatpush1.msra.mxu0 0.0
    %3509 = vmatprep.subr.mxu0 0.0
    %3510 = vmatpush1.msra.mxu0 0.0
    %3511 = vmatprep.mubr.f32.mxu0 0.0
    %3512 = vmatmul.mubr.f32.gmra.mrb[0].mxu0 %v3445
    %v3513 = vpop.f32.mrb[0].mxu0
    %v3514 = vadd.f32 %v3442, %v3513
    %v3515 = vpop.f32.mrb[0].mxu0
    %3516 = vdwg.mxu0
    %v3517 = vld [vmem:[%s1281] sm:$0xff]
    %v3518 = vld [vmem:[%s1281 + $0x8] sm:$0xff]
    %v3519 = vld [vmem:[%s1281 + $0x10] sm:$0xff]
    %v3520 = vld [vmem:[%s1281 + $0x18] sm:$0xff]
    %v3521 = vld [vmem:[%s1281 + $0x20] sm:$0xff]
    %v3522 = vld [vmem:[%s1281 + $0x28] sm:$0xff]
    %v3523 = vld [vmem:[%s1281 + $0x30] sm:$0xff]
    %v3524 = vld [vmem:[%s1281 + $0x38] sm:$0xff]
    %v3525 = vld [vmem:[%s1281 + $0x40] sm:$0xff]
    %v3526 = vrot.slane %v3348, 2
    %v3527 = vrot.slane %v3349, 2
    %v3528 = vsel %vm372, %v3526, %v3527
    %v3529 = vsel %vm1136, %v3528, 0
    %3531 = vmatprep.subr.mxu0 0.0
    %3532 = vmatpush1.msra.mxu0 %v3517
    %3533 = vmatprep.subr.mxu0 0.0
    %3534 = vmatpush1.msra.mxu0 %v3518
    %3535 = vmatprep.subr.mxu0 0.0
    %3536 = vmatpush1.msra.mxu0 %v3519
    %3537 = vmatprep.subr.mxu0 0.0
    %3538 = vmatpush1.msra.mxu0 %v3520
    %3539 = vmatprep.subr.mxu0 0.0
    %3540 = vmatpush1.msra.mxu0 %v3521
    %3541 = vmatprep.subr.mxu0 0.0
    %3542 = vmatpush1.msra.mxu0 %v3522
    %3543 = vmatprep.subr.mxu0 0.0
    %3544 = vmatpush1.msra.mxu0 %v3523
    %3545 = vmatprep.subr.mxu0 0.0
    %3546 = vmatpush1.msra.mxu0 %v3524
    %3547 = vmatprep.subr.mxu0 0.0
    %3548 = vmatpush1.msra.mxu0 %v3525
    %3549 = vmatprep.subr.mxu0 0.0
    %3550 = vmatpush1.msra.mxu0 0.0
    %3551 = vmatprep.subr.mxu0 0.0
    %3552 = vmatpush1.msra.mxu0 0.0
    %3553 = vmatprep.subr.mxu0 0.0
    %3554 = vmatpush1.msra.mxu0 0.0
    %3555 = vmatprep.subr.mxu0 0.0
    %3556 = vmatpush1.msra.mxu0 0.0
    %3557 = vmatprep.subr.mxu0 0.0
    %3558 = vmatpush1.msra.mxu0 0.0
    %3559 = vmatprep.subr.mxu0 0.0
    %3560 = vmatpush1.msra.mxu0 0.0
    %3561 = vmatprep.subr.mxu0 0.0
    %3562 = vmatpush1.msra.mxu0 0.0
    %3563 = vmatprep.subr.mxu0 0.0
    %3564 = vmatpush1.msra.mxu0 0.0
    %3565 = vmatprep.subr.mxu0 0.0
    %3566 = vmatpush1.msra.mxu0 0.0
    %3567 = vmatprep.subr.mxu0 0.0
    %3568 = vmatpush1.msra.mxu0 0.0
    %3569 = vmatprep.subr.mxu0 0.0
    %3570 = vmatpush1.msra.mxu0 0.0
    %3571 = vmatprep.subr.mxu0 0.0
    %3572 = vmatpush1.msra.mxu0 0.0
    %3573 = vmatprep.subr.mxu0 0.0
    %3574 = vmatpush1.msra.mxu0 0.0
    %3575 = vmatprep.subr.mxu0 0.0
    %3576 = vmatpush1.msra.mxu0 0.0
    %3577 = vmatprep.subr.mxu0 0.0
    %3578 = vmatpush1.msra.mxu0 0.0
    %3579 = vmatprep.subr.mxu0 0.0
    %3580 = vmatpush1.msra.mxu0 0.0
    %3581 = vmatprep.subr.mxu0 0.0
    %3582 = vmatpush1.msra.mxu0 0.0
    %3583 = vmatprep.subr.mxu0 0.0
    %3584 = vmatpush1.msra.mxu0 0.0
    %3585 = vmatprep.subr.mxu0 0.0
    %3586 = vmatpush1.msra.mxu0 0.0
    %3587 = vmatprep.subr.mxu0 0.0
    %3588 = vmatpush1.msra.mxu0 0.0
    %3589 = vmatprep.subr.mxu0 0.0
    %3590 = vmatpush1.msra.mxu0 0.0
    %3591 = vmatprep.subr.mxu0 0.0
    %3592 = vmatpush1.msra.mxu0 0.0
    %3593 = vmatprep.subr.mxu0 0.0
    %3594 = vmatpush1.msra.mxu0 0.0
    %3595 = vmatprep.mubr.f32.mxu0 0.0
    %3596 = vmatmul.mubr.f32.gmra.mrb[0].mxu0 %v3529
    %v3597 = vpop.f32.mrb[0].mxu0
    %v3598 = vadd.f32 0.0, %v3597
    %v3599 = vpop.f32.mrb[0].mxu0
    %3600 = vdwg.mxu0
    %v3601 = vadd.f32 %v3514, %v3598
    %v3602 = vld [vmem:[%s1367] sm:$0xff]
    %v3603 = vld [vmem:[%s1367 + $0x8] sm:$0xff]
    %v3604 = vld [vmem:[%s1367 + $0x10] sm:$0xff]
    %v3605 = vld [vmem:[%s1367 + $0x18] sm:$0xff]
    %v3606 = vld [vmem:[%s1367 + $0x20] sm:$0xff]
    %v3607 = vld [vmem:[%s1367 + $0x28] sm:$0xff]
    %v3608 = vld [vmem:[%s1367 + $0x30] sm:$0xff]
    %v3609 = vld [vmem:[%s1367 + $0x38] sm:$0xff]
    %v3610 = vld [vmem:[%s1367 + $0x40] sm:$0xff]
    %v3611 = vrot.slane %v3348, 3
    %v3612 = vrot.slane %v3349, 3
    %v3613 = vsel %vm490, %v3611, %v3612
    %v3614 = vsel %vm1136, %v3613, 0
    %3616 = vmatprep.subr.mxu0 0.0
    %3617 = vmatpush1.msra.mxu0 %v3602
    %3618 = vmatprep.subr.mxu0 0.0
    %3619 = vmatpush1.msra.mxu0 %v3603
    %3620 = vmatprep.subr.mxu0 0.0
    %3621 = vmatpush1.msra.mxu0 %v3604
    %3622 = vmatprep.subr.mxu0 0.0
    %3623 = vmatpush1.msra.mxu0 %v3605
    %3624 = vmatprep.subr.mxu0 0.0
    %3625 = vmatpush1.msra.mxu0 %v3606
    %3626 = vmatprep.subr.mxu0 0.0
    %3627 = vmatpush1.msra.mxu0 %v3607
    %3628 = vmatprep.subr.mxu0 0.0
    %3629 = vmatpush1.msra.mxu0 %v3608
    %3630 = vmatprep.subr.mxu0 0.0
    %3631 = vmatpush1.msra.mxu0 %v3609
    %3632 = vmatprep.subr.mxu0 0.0
    %3633 = vmatpush1.msra.mxu0 %v3610
    %3634 = vmatprep.subr.mxu0 0.0
    %3635 = vmatpush1.msra.mxu0 0.0
    %3636 = vmatprep.subr.mxu0 0.0
    %3637 = vmatpush1.msra.mxu0 0.0
    %3638 = vmatprep.subr.mxu0 0.0
    %3639 = vmatpush1.msra.mxu0 0.0
    %3640 = vmatprep.subr.mxu0 0.0
    %3641 = vmatpush1.msra.mxu0 0.0
    %3642 = vmatprep.subr.mxu0 0.0
    %3643 = vmatpush1.msra.mxu0 0.0
    %3644 = vmatprep.subr.mxu0 0.0
    %3645 = vmatpush1.msra.mxu0 0.0
    %3646 = vmatprep.subr.mxu0 0.0
    %3647 = vmatpush1.msra.mxu0 0.0
    %3648 = vmatprep.subr.mxu0 0.0
    %3649 = vmatpush1.msra.mxu0 0.0
    %3650 = vmatprep.subr.mxu0 0.0
    %3651 = vmatpush1.msra.mxu0 0.0
    %3652 = vmatprep.subr.mxu0 0.0
    %3653 = vmatpush1.msra.mxu0 0.0
    %3654 = vmatprep.subr.mxu0 0.0
    %3655 = vmatpush1.msra.mxu0 0.0
    %3656 = vmatprep.subr.mxu0 0.0
    %3657 = vmatpush1.msra.mxu0 0.0
    %3658 = vmatprep.subr.mxu0 0.0
    %3659 = vmatpush1.msra.mxu0 0.0
    %3660 = vmatprep.subr.mxu0 0.0
    %3661 = vmatpush1.msra.mxu0 0.0
    %3662 = vmatprep.subr.mxu0 0.0
    %3663 = vmatpush1.msra.mxu0 0.0
    %3664 = vmatprep.subr.mxu0 0.0
    %3665 = vmatpush1.msra.mxu0 0.0
    %3666 = vmatprep.subr.mxu0 0.0
    %3667 = vmatpush1.msra.mxu0 0.0
    %3668 = vmatprep.subr.mxu0 0.0
    %3669 = vmatpush1.msra.mxu0 0.0
    %3670 = vmatprep.subr.mxu0 0.0
    %3671 = vmatpush1.msra.mxu0 0.0
    %3672 = vmatprep.subr.mxu0 0.0
    %3673 = vmatpush1.msra.mxu0 0.0
    %3674 = vmatprep.subr.mxu0 0.0
    %3675 = vmatpush1.msra.mxu0 0.0
    %3676 = vmatprep.subr.mxu0 0.0
    %3677 = vmatpush1.msra.mxu0 0.0
    %3678 = vmatprep.subr.mxu0 0.0
    %3679 = vmatpush1.msra.mxu0 0.0
    %3680 = vmatprep.mubr.f32.mxu0 0.0
    %3681 = vmatmul.mubr.f32.gmra.mrb[0].mxu0 %v3614
    %v3682 = vpop.f32.mrb[0].mxu0
    %v3683 = vadd.f32 0.0, %v3682
    %v3684 = vpop.f32.mrb[0].mxu0
    %3685 = vdwg.mxu0
    %v3686 = vadd.f32 %v3601, %v3683
    %v3687 = vld [vmem:[%s1453] sm:$0xff]
    %v3688 = vld [vmem:[%s1453 + $0x8] sm:$0xff]
    %v3689 = vld [vmem:[%s1453 + $0x10] sm:$0xff]
    %v3690 = vld [vmem:[%s1453 + $0x18] sm:$0xff]
    %v3691 = vld [vmem:[%s1453 + $0x20] sm:$0xff]
    %v3692 = vld [vmem:[%s1453 + $0x28] sm:$0xff]
    %v3693 = vld [vmem:[%s1453 + $0x30] sm:$0xff]
    %v3694 = vld [vmem:[%s1453 + $0x38] sm:$0xff]
    %v3695 = vld [vmem:[%s1453 + $0x40] sm:$0xff]
    %v3696 = vrot.slane %v3348, 4
    %v3697 = vrot.slane %v3349, 4
    %v3698 = vsel %vm178, %v3696, %v3697
    %v3699 = vsel %vm1136, %v3698, 0
    %3701 = vmatprep.subr.mxu0 0.0
    %3702 = vmatpush1.msra.mxu0 %v3687
    %3703 = vmatprep.subr.mxu0 0.0
    %3704 = vmatpush1.msra.mxu0 %v3688
    %3705 = vmatprep.subr.mxu0 0.0
    %3706 = vmatpush1.msra.mxu0 %v3689
    %3707 = vmatprep.subr.mxu0 0.0
    %3708 = vmatpush1.msra.mxu0 %v3690
    %3709 = vmatprep.subr.mxu0 0.0
    %3710 = vmatpush1.msra.mxu0 %v3691
    %3711 = vmatprep.subr.mxu0 0.0
    %3712 = vmatpush1.msra.mxu0 %v3692
    %3713 = vmatprep.subr.mxu0 0.0
    %3714 = vmatpush1.msra.mxu0 %v3693
    %3715 = vmatprep.subr.mxu0 0.0
    %3716 = vmatpush1.msra.mxu0 %v3694
    %3717 = vmatprep.subr.mxu0 0.0
    %3718 = vmatpush1.msra.mxu0 %v3695
    %3719 = vmatprep.subr.mxu0 0.0
    %3720 = vmatpush1.msra.mxu0 0.0
    %3721 = vmatprep.subr.mxu0 0.0
    %3722 = vmatpush1.msra.mxu0 0.0
    %3723 = vmatprep.subr.mxu0 0.0
    %3724 = vmatpush1.msra.mxu0 0.0
    %3725 = vmatprep.subr.mxu0 0.0
    %3726 = vmatpush1.msra.mxu0 0.0
    %3727 = vmatprep.subr.mxu0 0.0
    %3728 = vmatpush1.msra.mxu0 0.0
    %3729 = vmatprep.subr.mxu0 0.0
    %3730 = vmatpush1.msra.mxu0 0.0
    %3731 = vmatprep.subr.mxu0 0.0
    %3732 = vmatpush1.msra.mxu0 0.0
    %3733 = vmatprep.subr.mxu0 0.0
    %3734 = vmatpush1.msra.mxu0 0.0
    %3735 = vmatprep.subr.mxu0 0.0
    %3736 = vmatpush1.msra.mxu0 0.0
    %3737 = vmatprep.subr.mxu0 0.0
    %3738 = vmatpush1.msra.mxu0 0.0
    %3739 = vmatprep.subr.mxu0 0.0
    %3740 = vmatpush1.msra.mxu0 0.0
    %3741 = vmatprep.subr.mxu0 0.0
    %3742 = vmatpush1.msra.mxu0 0.0
    %3743 = vmatprep.subr.mxu0 0.0
    %3744 = vmatpush1.msra.mxu0 0.0
    %3745 = vmatprep.subr.mxu0 0.0
    %3746 = vmatpush1.msra.mxu0 0.0
    %3747 = vmatprep.subr.mxu0 0.0
    %3748 = vmatpush1.msra.mxu0 0.0
    %3749 = vmatprep.subr.mxu0 0.0
    %3750 = vmatpush1.msra.mxu0 0.0
    %3751 = vmatprep.subr.mxu0 0.0
    %3752 = vmatpush1.msra.mxu0 0.0
    %3753 = vmatprep.subr.mxu0 0.0
    %3754 = vmatpush1.msra.mxu0 0.0
    %3755 = vmatprep.subr.mxu0 0.0
    %3756 = vmatpush1.msra.mxu0 0.0
    %3757 = vmatprep.subr.mxu0 0.0
    %3758 = vmatpush1.msra.mxu0 0.0
    %3759 = vmatprep.subr.mxu0 0.0
    %3760 = vmatpush1.msra.mxu0 0.0
    %3761 = vmatprep.subr.mxu0 0.0
    %3762 = vmatpush1.msra.mxu0 0.0
    %3763 = vmatprep.subr.mxu0 0.0
    %3764 = vmatpush1.msra.mxu0 0.0
    %3765 = vmatprep.mubr.f32.mxu0 0.0
    %3766 = vmatmul.mubr.f32.gmra.mrb[0].mxu0 %v3699
    %v3767 = vpop.f32.mrb[0].mxu0
    %v3768 = vadd.f32 0.0, %v3767
    %v3769 = vpop.f32.mrb[0].mxu0
    %3770 = vdwg.mxu0
    %v3771 = vadd.f32 %v3686, %v3768
    %v3772 = vld [vmem:[%s6] sm:$0x1]
    %v3774 = vlaneseq
    %v3775 = vshrl.u32 %v3774, 7
    %v3776 = vsub.s32 0, %v3775
    %v3777 = vrot.slane %v3772, %v3776
    %v3779 = vadd.f32 %v3771, %v3777
    %v3780 = vmax.f32 %v3779, 0.0
    %v3781 = vld [vmem:[#allocation7] sm:$0xf]
    %v3783 = vsel %vm1549, %v3781, 0
    %3785 = vmatprep.subr.mxu0 0.0
    %3786 = vmatpush1.msra.mxu0 %v3780
    %3787 = vmatprep.subr.mxu0 0.0
    %3788 = vmatpush1.msra.mxu0 0.0
    %3789 = vmatprep.subr.mxu0 0.0
    %3790 = vmatpush1.msra.mxu0 0.0
    %3791 = vmatprep.subr.mxu0 0.0
    %3792 = vmatpush1.msra.mxu0 0.0
    %3793 = vmatprep.subr.mxu0 0.0
    %3794 = vmatpush1.msra.mxu0 0.0
    %3795 = vmatprep.subr.mxu0 0.0
    %3796 = vmatpush1.msra.mxu0 0.0
    %3797 = vmatprep.subr.mxu0 0.0
    %3798 = vmatpush1.msra.mxu0 0.0
    %3799 = vmatprep.subr.mxu0 0.0
    %3800 = vmatpush1.msra.mxu0 0.0
    %3801 = vmatprep.subr.mxu0 0.0
    %3802 = vmatpush1.msra.mxu0 0.0
    %3803 = vmatprep.subr.mxu0 0.0
    %3804 = vmatpush1.msra.mxu0 0.0
    %3805 = vmatprep.subr.mxu0 0.0
    %3806 = vmatpush1.msra.mxu0 0.0
    %3807 = vmatprep.subr.mxu0 0.0
    %3808 = vmatpush1.msra.mxu0 0.0
    %3809 = vmatprep.subr.mxu0 0.0
    %3810 = vmatpush1.msra.mxu0 0.0
    %3811 = vmatprep.subr.mxu0 0.0
    %3812 = vmatpush1.msra.mxu0 0.0
    %3813 = vmatprep.subr.mxu0 0.0
    %3814 = vmatpush1.msra.mxu0 0.0
    %3815 = vmatprep.subr.mxu0 0.0
    %3816 = vmatpush1.msra.mxu0 0.0
    %3817 = vmatprep.subr.mxu0 0.0
    %3818 = vmatpush1.msra.mxu0 0.0
    %3819 = vmatprep.subr.mxu0 0.0
    %3820 = vmatpush1.msra.mxu0 0.0
    %3821 = vmatprep.subr.mxu0 0.0
    %3822 = vmatpush1.msra.mxu0 0.0
    %3823 = vmatprep.subr.mxu0 0.0
    %3824 = vmatpush1.msra.mxu0 0.0
    %3825 = vmatprep.subr.mxu0 0.0
    %3826 = vmatpush1.msra.mxu0 0.0
    %3827 = vmatprep.subr.mxu0 0.0
    %3828 = vmatpush1.msra.mxu0 0.0
    %3829 = vmatprep.subr.mxu0 0.0
    %3830 = vmatpush1.msra.mxu0 0.0
    %3831 = vmatprep.subr.mxu0 0.0
    %3832 = vmatpush1.msra.mxu0 0.0
    %3833 = vmatprep.subr.mxu0 0.0
    %3834 = vmatpush1.msra.mxu0 0.0
    %3835 = vmatprep.subr.mxu0 0.0
    %3836 = vmatpush1.msra.mxu0 0.0
    %3837 = vmatprep.subr.mxu0 0.0
    %3838 = vmatpush1.msra.mxu0 0.0
    %3839 = vmatprep.subr.mxu0 0.0
    %3840 = vmatpush1.msra.mxu0 0.0
    %3841 = vmatprep.subr.mxu0 0.0
    %3842 = vmatpush1.msra.mxu0 0.0
    %3843 = vmatprep.subr.mxu0 0.0
    %3844 = vmatpush1.msra.mxu0 0.0
    %3845 = vmatprep.subr.mxu0 0.0
    %3846 = vmatpush1.msra.mxu0 0.0
    %3847 = vmatprep.subr.mxu0 0.0
    %3848 = vmatpush1.msra.mxu0 0.0
    %3849 = vmatprep.mubr.f32.mxu0 0.0
    %3850 = vmatmul.mubr.f32.gmra.mrb[0].mxu0 %v3783
    %v3851 = vpop.f32.mrb[0].mxu0
    %v3852 = vadd.f32 0.0, %v3851
    %v3853 = vpop.f32.mrb[0].mxu0
    %3854 = vdwg.mxu0
    %v3855 = vld [vmem:[%s1623] sm:$0xf]
    %v3857 = vsel %vm1549, %v3855, 0
    %3859 = vmatprep.subr.mxu0 0.0
    %3860 = vmatpush1.msra.mxu0 %v3780
    %3861 = vmatprep.subr.mxu0 0.0
    %3862 = vmatpush1.msra.mxu0 0.0
    %3863 = vmatprep.subr.mxu0 0.0
    %3864 = vmatpush1.msra.mxu0 0.0
    %3865 = vmatprep.subr.mxu0 0.0
    %3866 = vmatpush1.msra.mxu0 0.0
    %3867 = vmatprep.subr.mxu0 0.0
    %3868 = vmatpush1.msra.mxu0 0.0
    %3869 = vmatprep.subr.mxu0 0.0
    %3870 = vmatpush1.msra.mxu0 0.0
    %3871 = vmatprep.subr.mxu0 0.0
    %3872 = vmatpush1.msra.mxu0 0.0
    %3873 = vmatprep.subr.mxu0 0.0
    %3874 = vmatpush1.msra.mxu0 0.0
    %3875 = vmatprep.subr.mxu0 0.0
    %3876 = vmatpush1.msra.mxu0 0.0
    %3877 = vmatprep.subr.mxu0 0.0
    %3878 = vmatpush1.msra.mxu0 0.0
    %3879 = vmatprep.subr.mxu0 0.0
    %3880 = vmatpush1.msra.mxu0 0.0
    %3881 = vmatprep.subr.mxu0 0.0
    %3882 = vmatpush1.msra.mxu0 0.0
    %3883 = vmatprep.subr.mxu0 0.0
    %3884 = vmatpush1.msra.mxu0 0.0
    %3885 = vmatprep.subr.mxu0 0.0
    %3886 = vmatpush1.msra.mxu0 0.0
    %3887 = vmatprep.subr.mxu0 0.0
    %3888 = vmatpush1.msra.mxu0 0.0
    %3889 = vmatprep.subr.mxu0 0.0
    %3890 = vmatpush1.msra.mxu0 0.0
    %3891 = vmatprep.subr.mxu0 0.0
    %3892 = vmatpush1.msra.mxu0 0.0
    %3893 = vmatprep.subr.mxu0 0.0
    %3894 = vmatpush1.msra.mxu0 0.0
    %3895 = vmatprep.subr.mxu0 0.0
    %3896 = vmatpush1.msra.mxu0 0.0
    %3897 = vmatprep.subr.mxu0 0.0
    %3898 = vmatpush1.msra.mxu0 0.0
    %3899 = vmatprep.subr.mxu0 0.0
    %3900 = vmatpush1.msra.mxu0 0.0
    %3901 = vmatprep.subr.mxu0 0.0
    %3902 = vmatpush1.msra.mxu0 0.0
    %3903 = vmatprep.subr.mxu0 0.0
    %3904 = vmatpush1.msra.mxu0 0.0
    %3905 = vmatprep.subr.mxu0 0.0
    %3906 = vmatpush1.msra.mxu0 0.0
    %3907 = vmatprep.subr.mxu0 0.0
    %3908 = vmatpush1.msra.mxu0 0.0
    %3909 = vmatprep.subr.mxu0 0.0
    %3910 = vmatpush1.msra.mxu0 0.0
    %3911 = vmatprep.subr.mxu0 0.0
    %3912 = vmatpush1.msra.mxu0 0.0
    %3913 = vmatprep.subr.mxu0 0.0
    %3914 = vmatpush1.msra.mxu0 0.0
    %3915 = vmatprep.subr.mxu0 0.0
    %3916 = vmatpush1.msra.mxu0 0.0
    %3917 = vmatprep.subr.mxu0 0.0
    %3918 = vmatpush1.msra.mxu0 0.0
    %3919 = vmatprep.subr.mxu0 0.0
    %3920 = vmatpush1.msra.mxu0 0.0
    %3921 = vmatprep.subr.mxu0 0.0
    %3922 = vmatpush1.msra.mxu0 0.0
    %3923 = vmatprep.mubr.f32.mxu0 0.0
    %3924 = vmatmul.mubr.f32.gmra.mrb[0].mxu0 %v3857
    %v3925 = vpop.f32.mrb[0].mxu0
    %v3926 = vadd.f32 0.0, %v3925
    %v3927 = vpop.f32.mrb[0].mxu0
    %3928 = vdwg.mxu0
    %v3929 = vmax.f32 %v3852, %v3926
    %v3930 = vld [vmem:[%s8] sm:$0xff]
    %v3931 = vld [vmem:[%s8 + $0x8] sm:$0xff]
    %v3932 = vld [vmem:[%s8 + $0x10] sm:$0xff]
    %v3933 = vld [vmem:[%s8 + $0x18] sm:$0xff]
    %v3934 = vld [vmem:[%s8 + $0x20] sm:$0xff]
    %v3935 = vld [vmem:[%s8 + $0x28] sm:$0xff]
    %v3936 = vld [vmem:[%s8 + $0x30] sm:$0xff]
    %v3937 = vld [vmem:[%s8 + $0x38] sm:$0xff]
    %v3938 = vld [vmem:[%s8 + $0x40] sm:$0xff]
    %v3939 = vld [vmem:[%s8 + $0x48] sm:$0xff]
    %v3940 = vld [vmem:[%s8 + $0x50] sm:$0xff]
    %v3941 = vld [vmem:[%s8 + $0x58] sm:$0xff]
    %v3942 = vld [vmem:[%s8 + $0x60] sm:$0xff]
    %v3943 = vld [vmem:[%s8 + $0x68] sm:$0xff]
    %v3944 = vld [vmem:[%s8 + $0x70] sm:$0xff]
    %v3945 = vld [vmem:[%s8 + $0x78] sm:$0xff]
    %3946 = vmatprep.subr.mxu0 0.0
    %3947 = vmatpush1.msra.mxu0 %v3930
    %3948 = vmatprep.subr.mxu0 0.0
    %3949 = vmatpush1.msra.mxu0 %v3931
    %3950 = vmatprep.subr.mxu0 0.0
    %3951 = vmatpush1.msra.mxu0 %v3932
    %3952 = vmatprep.subr.mxu0 0.0
    %3953 = vmatpush1.msra.mxu0 %v3933
    %3954 = vmatprep.subr.mxu0 0.0
    %3955 = vmatpush1.msra.mxu0 %v3934
    %3956 = vmatprep.subr.mxu0 0.0
    %3957 = vmatpush1.msra.mxu0 %v3935
    %3958 = vmatprep.subr.mxu0 0.0
    %3959 = vmatpush1.msra.mxu0 %v3936
    %3960 = vmatprep.subr.mxu0 0.0
    %3961 = vmatpush1.msra.mxu0 %v3937
    %3962 = vmatprep.subr.mxu0 0.0
    %3963 = vmatpush1.msra.mxu0 %v3938
    %3964 = vmatprep.subr.mxu0 0.0
    %3965 = vmatpush1.msra.mxu0 %v3939
    %3966 = vmatprep.subr.mxu0 0.0
    %3967 = vmatpush1.msra.mxu0 %v3940
    %3968 = vmatprep.subr.mxu0 0.0
    %3969 = vmatpush1.msra.mxu0 %v3941
    %3970 = vmatprep.subr.mxu0 0.0
    %3971 = vmatpush1.msra.mxu0 %v3942
    %3972 = vmatprep.subr.mxu0 0.0
    %3973 = vmatpush1.msra.mxu0 %v3943
    %3974 = vmatprep.subr.mxu0 0.0
    %3975 = vmatpush1.msra.mxu0 %v3944
    %3976 = vmatprep.subr.mxu0 0.0
    %3977 = vmatpush1.msra.mxu0 %v3945
    %3978 = vmatprep.subr.mxu0 0.0
    %3979 = vmatpush1.msra.mxu0 0.0
    %3980 = vmatprep.subr.mxu0 0.0
    %3981 = vmatpush1.msra.mxu0 0.0
    %3982 = vmatprep.subr.mxu0 0.0
    %3983 = vmatpush1.msra.mxu0 0.0
    %3984 = vmatprep.subr.mxu0 0.0
    %3985 = vmatpush1.msra.mxu0 0.0
    %3986 = vmatprep.subr.mxu0 0.0
    %3987 = vmatpush1.msra.mxu0 0.0
    %3988 = vmatprep.subr.mxu0 0.0
    %3989 = vmatpush1.msra.mxu0 0.0
    %3990 = vmatprep.subr.mxu0 0.0
    %3991 = vmatpush1.msra.mxu0 0.0
    %3992 = vmatprep.subr.mxu0 0.0
    %3993 = vmatpush1.msra.mxu0 0.0
    %3994 = vmatprep.subr.mxu0 0.0
    %3995 = vmatpush1.msra.mxu0 0.0
    %3996 = vmatprep.subr.mxu0 0.0
    %3997 = vmatpush1.msra.mxu0 0.0
    %3998 = vmatprep.subr.mxu0 0.0
    %3999 = vmatpush1.msra.mxu0 0.0
    %4000 = vmatprep.subr.mxu0 0.0
    %4001 = vmatpush1.msra.mxu0 0.0
    %4002 = vmatprep.subr.mxu0 0.0
    %4003 = vmatpush1.msra.mxu0 0.0
    %4004 = vmatprep.subr.mxu0 0.0
    %4005 = vmatpush1.msra.mxu0 0.0
    %4006 = vmatprep.subr.mxu0 0.0
    %4007 = vmatpush1.msra.mxu0 0.0
    %4008 = vmatprep.subr.mxu0 0.0
    %4009 = vmatpush1.msra.mxu0 0.0
    %4010 = vmatprep.mubr.f32.mxu0 0.0
    %4011 = vmatmul.mubr.f32.gmra.mrb[0].mxu0 %v3929
    %v4012 = vpop.f32.mrb[0].mxu0
    %v4013 = vadd.f32 0.0, %v4012
    %v4014 = vpop.f32.mrb[0].mxu0
    %4015 = vdwg.mxu0
    %v4016 = vld [vmem:[%s1785] sm:$0xff]
    %v4017 = vld [vmem:[%s1785 + $0x8] sm:$0xff]
    %v4018 = vld [vmem:[%s1785 + $0x10] sm:$0xff]
    %v4019 = vld [vmem:[%s1785 + $0x18] sm:$0xff]
    %v4020 = vld [vmem:[%s1785 + $0x20] sm:$0xff]
    %v4021 = vld [vmem:[%s1785 + $0x28] sm:$0xff]
    %v4022 = vld [vmem:[%s1785 + $0x30] sm:$0xff]
    %v4023 = vld [vmem:[%s1785 + $0x38] sm:$0xff]
    %v4024 = vld [vmem:[%s1785 + $0x40] sm:$0xff]
    %v4025 = vld [vmem:[%s1785 + $0x48] sm:$0xff]
    %v4026 = vld [vmem:[%s1785 + $0x50] sm:$0xff]
    %v4027 = vld [vmem:[%s1785 + $0x58] sm:$0xff]
    %v4028 = vld [vmem:[%s1785 + $0x60] sm:$0xff]
    %v4029 = vld [vmem:[%s1785 + $0x68] sm:$0xff]
    %v4030 = vld [vmem:[%s1785 + $0x70] sm:$0xff]
    %v4031 = vld [vmem:[%s1785 + $0x78] sm:$0xff]
    %4032 = vmatprep.subr.mxu0 0.0
    %4033 = vmatpush1.msra.mxu0 %v4016
    %4034 = vmatprep.subr.mxu0 0.0
    %4035 = vmatpush1.msra.mxu0 %v4017
    %4036 = vmatprep.subr.mxu0 0.0
    %4037 = vmatpush1.msra.mxu0 %v4018
    %4038 = vmatprep.subr.mxu0 0.0
    %4039 = vmatpush1.msra.mxu0 %v4019
    %4040 = vmatprep.subr.mxu0 0.0
    %4041 = vmatpush1.msra.mxu0 %v4020
    %4042 = vmatprep.subr.mxu0 0.0
    %4043 = vmatpush1.msra.mxu0 %v4021
    %4044 = vmatprep.subr.mxu0 0.0
    %4045 = vmatpush1.msra.mxu0 %v4022
    %4046 = vmatprep.subr.mxu0 0.0
    %4047 = vmatpush1.msra.mxu0 %v4023
    %4048 = vmatprep.subr.mxu0 0.0
    %4049 = vmatpush1.msra.mxu0 %v4024
    %4050 = vmatprep.subr.mxu0 0.0
    %4051 = vmatpush1.msra.mxu0 %v4025
    %4052 = vmatprep.subr.mxu0 0.0
    %4053 = vmatpush1.msra.mxu0 %v4026
    %4054 = vmatprep.subr.mxu0 0.0
    %4055 = vmatpush1.msra.mxu0 %v4027
    %4056 = vmatprep.subr.mxu0 0.0
    %4057 = vmatpush1.msra.mxu0 %v4028
    %4058 = vmatprep.subr.mxu0 0.0
    %4059 = vmatpush1.msra.mxu0 %v4029
    %4060 = vmatprep.subr.mxu0 0.0
    %4061 = vmatpush1.msra.mxu0 %v4030
    %4062 = vmatprep.subr.mxu0 0.0
    %4063 = vmatpush1.msra.mxu0 %v4031
    %4064 = vmatprep.subr.mxu0 0.0
    %4065 = vmatpush1.msra.mxu0 0.0
    %4066 = vmatprep.subr.mxu0 0.0
    %4067 = vmatpush1.msra.mxu0 0.0
    %4068 = vmatprep.subr.mxu0 0.0
    %4069 = vmatpush1.msra.mxu0 0.0
    %4070 = vmatprep.subr.mxu0 0.0
    %4071 = vmatpush1.msra.mxu0 0.0
    %4072 = vmatprep.subr.mxu0 0.0
    %4073 = vmatpush1.msra.mxu0 0.0
    %4074 = vmatprep.subr.mxu0 0.0
    %4075 = vmatpush1.msra.mxu0 0.0
    %4076 = vmatprep.subr.mxu0 0.0
    %4077 = vmatpush1.msra.mxu0 0.0
    %4078 = vmatprep.subr.mxu0 0.0
    %4079 = vmatpush1.msra.mxu0 0.0
    %4080 = vmatprep.subr.mxu0 0.0
    %4081 = vmatpush1.msra.mxu0 0.0
    %4082 = vmatprep.subr.mxu0 0.0
    %4083 = vmatpush1.msra.mxu0 0.0
    %4084 = vmatprep.subr.mxu0 0.0
    %4085 = vmatpush1.msra.mxu0 0.0
    %4086 = vmatprep.subr.mxu0 0.0
    %4087 = vmatpush1.msra.mxu0 0.0
    %4088 = vmatprep.subr.mxu0 0.0
    %4089 = vmatpush1.msra.mxu0 0.0
    %4090 = vmatprep.subr.mxu0 0.0
    %4091 = vmatpush1.msra.mxu0 0.0
    %4092 = vmatprep.subr.mxu0 0.0
    %4093 = vmatpush1.msra.mxu0 0.0
    %4094 = vmatprep.subr.mxu0 0.0
    %4095 = vmatpush1.msra.mxu0 0.0
    %4096 = vmatprep.mubr.f32.mxu0 0.0
    %4097 = vmatmul.mubr.f32.gmra.mrb[0].mxu0 %v3929
    %v4098 = vpop.f32.mrb[0].mxu0
    %v4099 = vadd.f32 0.0, %v4098
    %v4100 = vpop.f32.mrb[0].mxu0
    %4101 = vdwg.mxu0
    %v4102 = vmax.f32 %v4013, %v4099
    %v4103 = vld [vmem:[#allocation8] sm:$0xff]
    %v4104 = vld [vmem:[#allocation8 + $0x8] sm:$0xff]
    %v4105 = vld [vmem:[#allocation8 + $0x10] sm:$0xff]
    %v4106 = vld [vmem:[#allocation8 + $0x18] sm:$0xff]
    %v4107 = vld [vmem:[#allocation8 + $0x20] sm:$0xff]
    %v4108 = vld [vmem:[#allocation8 + $0x28] sm:$0xff]
    %v4109 = vld [vmem:[#allocation8 + $0x30] sm:$0xff]
    %v4110 = vld [vmem:[#allocation8 + $0x38] sm:$0xff]
    %v4111 = vld [vmem:[%s1881] sm:$0xff]
    %v4112 = vld [vmem:[%s1881 + $0x8] sm:$0xff]
    %v4113 = vld [vmem:[%s1881 + $0x10] sm:$0xff]
    %v4114 = vld [vmem:[%s1881 + $0x18] sm:$0xff]
    %v4115 = vld [vmem:[%s1881 + $0x20] sm:$0xff]
    %v4116 = vld [vmem:[%s1881 + $0x28] sm:$0xff]
    %v4117 = vld [vmem:[%s1881 + $0x30] sm:$0xff]
    %v4118 = vld [vmem:[%s1881 + $0x38] sm:$0xff]
    %v4120 = vrot.slane %v4102, 1
    %v4121 = vsel %vm1892, %v4120, 0
    %4123 = vmatprep.subr.mxu0 0.0
    %4124 = vmatpush1.msra.mxu0 %v4111
    %4125 = vmatprep.subr.mxu0 0.0
    %4126 = vmatpush1.msra.mxu0 %v4112
    %4127 = vmatprep.subr.mxu0 0.0
    %4128 = vmatpush1.msra.mxu0 %v4113
    %4129 = vmatprep.subr.mxu0 0.0
    %4130 = vmatpush1.msra.mxu0 %v4114
    %4131 = vmatprep.subr.mxu0 0.0
    %4132 = vmatpush1.msra.mxu0 %v4115
    %4133 = vmatprep.subr.mxu0 0.0
    %4134 = vmatpush1.msra.mxu0 %v4116
    %4135 = vmatprep.subr.mxu0 0.0
    %4136 = vmatpush1.msra.mxu0 %v4117
    %4137 = vmatprep.subr.mxu0 0.0
    %4138 = vmatpush1.msra.mxu0 %v4118
    %4139 = vmatprep.subr.mxu0 0.0
    %4140 = vmatpush1.msra.mxu0 0.0
    %4141 = vmatprep.subr.mxu0 0.0
    %4142 = vmatpush1.msra.mxu0 0.0
    %4143 = vmatprep.subr.mxu0 0.0
    %4144 = vmatpush1.msra.mxu0 0.0
    %4145 = vmatprep.subr.mxu0 0.0
    %4146 = vmatpush1.msra.mxu0 0.0
    %4147 = vmatprep.subr.mxu0 0.0
    %4148 = vmatpush1.msra.mxu0 0.0
    %4149 = vmatprep.subr.mxu0 0.0
    %4150 = vmatpush1.msra.mxu0 0.0
    %4151 = vmatprep.subr.mxu0 0.0
    %4152 = vmatpush1.msra.mxu0 0.0
    %4153 = vmatprep.subr.mxu0 0.0
    %4154 = vmatpush1.msra.mxu0 0.0
    %4155 = vmatprep.subr.mxu0 0.0
    %4156 = vmatpush1.msra.mxu0 0.0
    %4157 = vmatprep.subr.mxu0 0.0
    %4158 = vmatpush1.msra.mxu0 0.0
    %4159 = vmatprep.subr.mxu0 0.0
    %4160 = vmatpush1.msra.mxu0 0.0
    %4161 = vmatprep.subr.mxu0 0.0
    %4162 = vmatpush1.msra.mxu0 0.0
    %4163 = vmatprep.subr.mxu0 0.0
    %4164 = vmatpush1.msra.mxu0 0.0
    %4165 = vmatprep.subr.mxu0 0.0
    %4166 = vmatpush1.msra.mxu0 0.0
    %4167 = vmatprep.subr.mxu0 0.0
    %4168 = vmatpush1.msra.mxu0 0.0
    %4169 = vmatprep.subr.mxu0 0.0
    %4170 = vmatpush1.msra.mxu0 0.0
    %4171 = vmatprep.subr.mxu0 0.0
    %4172 = vmatpush1.msra.mxu0 0.0
    %4173 = vmatprep.subr.mxu0 0.0
    %4174 = vmatpush1.msra.mxu0 0.0
    %4175 = vmatprep.subr.mxu0 0.0
    %4176 = vmatpush1.msra.mxu0 0.0
    %4177 = vmatprep.subr.mxu0 0.0
    %4178 = vmatpush1.msra.mxu0 0.0
    %4179 = vmatprep.subr.mxu0 0.0
    %4180 = vmatpush1.msra.mxu0 0.0
    %4181 = vmatprep.subr.mxu0 0.0
    %4182 = vmatpush1.msra.mxu0 0.0
    %4183 = vmatprep.subr.mxu0 0.0
    %4184 = vmatpush1.msra.mxu0 0.0
    %4185 = vmatprep.subr.mxu0 0.0
    %4186 = vmatpush1.msra.mxu0 0.0
    %4187 = vmatprep.mubr.f32.mxu0 0.0
    %4188 = vmatmul.mubr.f32.gmra.mrb[0].mxu0 %v4121
    %v4189 = vpop.f32.mrb[0].mxu0
    %v4190 = vadd.f32 0.0, %v4189
    %v4191 = vpop.f32.mrb[0].mxu0
    %4192 = vdwg.mxu0
    %v4193 = vsel %vm1892, %v4102, 0
    %4195 = vmatprep.subr.mxu0 0.0
    %4196 = vmatpush1.msra.mxu0 %v4103
    %4197 = vmatprep.subr.mxu0 0.0
    %4198 = vmatpush1.msra.mxu0 %v4104
    %4199 = vmatprep.subr.mxu0 0.0
    %4200 = vmatpush1.msra.mxu0 %v4105
    %4201 = vmatprep.subr.mxu0 0.0
    %4202 = vmatpush1.msra.mxu0 %v4106
    %4203 = vmatprep.subr.mxu0 0.0
    %4204 = vmatpush1.msra.mxu0 %v4107
    %4205 = vmatprep.subr.mxu0 0.0
    %4206 = vmatpush1.msra.mxu0 %v4108
    %4207 = vmatprep.subr.mxu0 0.0
    %4208 = vmatpush1.msra.mxu0 %v4109
    %4209 = vmatprep.subr.mxu0 0.0
    %4210 = vmatpush1.msra.mxu0 %v4110
    %4211 = vmatprep.subr.mxu0 0.0
    %4212 = vmatpush1.msra.mxu0 0.0
    %4213 = vmatprep.subr.mxu0 0.0
    %4214 = vmatpush1.msra.mxu0 0.0
    %4215 = vmatprep.subr.mxu0 0.0
    %4216 = vmatpush1.msra.mxu0 0.0
    %4217 = vmatprep.subr.mxu0 0.0
    %4218 = vmatpush1.msra.mxu0 0.0
    %4219 = vmatprep.subr.mxu0 0.0
    %4220 = vmatpush1.msra.mxu0 0.0
    %4221 = vmatprep.subr.mxu0 0.0
    %4222 = vmatpush1.msra.mxu0 0.0
    %4223 = vmatprep.subr.mxu0 0.0
    %4224 = vmatpush1.msra.mxu0 0.0
    %4225 = vmatprep.subr.mxu0 0.0
    %4226 = vmatpush1.msra.mxu0 0.0
    %4227 = vmatprep.subr.mxu0 0.0
    %4228 = vmatpush1.msra.mxu0 0.0
    %4229 = vmatprep.subr.mxu0 0.0
    %4230 = vmatpush1.msra.mxu0 0.0
    %4231 = vmatprep.subr.mxu0 0.0
    %4232 = vmatpush1.msra.mxu0 0.0
    %4233 = vmatprep.subr.mxu0 0.0
    %4234 = vmatpush1.msra.mxu0 0.0
    %4235 = vmatprep.subr.mxu0 0.0
    %4236 = vmatpush1.msra.mxu0 0.0
    %4237 = vmatprep.subr.mxu0 0.0
    %4238 = vmatpush1.msra.mxu0 0.0
    %4239 = vmatprep.subr.mxu0 0.0
    %4240 = vmatpush1.msra.mxu0 0.0
    %4241 = vmatprep.subr.mxu0 0.0
    %4242 = vmatpush1.msra.mxu0 0.0
    %4243 = vmatprep.subr.mxu0 0.0
    %4244 = vmatpush1.msra.mxu0 0.0
    %4245 = vmatprep.subr.mxu0 0.0
    %4246 = vmatpush1.msra.mxu0 0.0
    %4247 = vmatprep.subr.mxu0 0.0
    %4248 = vmatpush1.msra.mxu0 0.0
    %4249 = vmatprep.subr.mxu0 0.0
    %4250 = vmatpush1.msra.mxu0 0.0
    %4251 = vmatprep.subr.mxu0 0.0
    %4252 = vmatpush1.msra.mxu0 0.0
    %4253 = vmatprep.subr.mxu0 0.0
    %4254 = vmatpush1.msra.mxu0 0.0
    %4255 = vmatprep.subr.mxu0 0.0
    %4256 = vmatpush1.msra.mxu0 0.0
    %4257 = vmatprep.subr.mxu0 0.0
    %4258 = vmatpush1.msra.mxu0 0.0
    %4259 = vmatprep.mubr.f32.mxu0 0.0
    %4260 = vmatmul.mubr.f32.gmra.mrb[0].mxu0 %v4193
    %v4261 = vpop.f32.mrb[0].mxu0
    %v4262 = vadd.f32 %v4190, %v4261
    %v4263 = vpop.f32.mrb[0].mxu0
    %4264 = vdwg.mxu0
    %v4265 = vld [vmem:[%s2037] sm:$0xff]
    %v4266 = vld [vmem:[%s2037 + $0x8] sm:$0xff]
    %v4267 = vld [vmem:[%s2037 + $0x10] sm:$0xff]
    %v4268 = vld [vmem:[%s2037 + $0x18] sm:$0xff]
    %v4269 = vld [vmem:[%s2037 + $0x20] sm:$0xff]
    %v4270 = vld [vmem:[%s2037 + $0x28] sm:$0xff]
    %v4271 = vld [vmem:[%s2037 + $0x30] sm:$0xff]
    %v4272 = vld [vmem:[%s2037 + $0x38] sm:$0xff]
    %v4273 = vrot.slane %v4102, 2
    %v4274 = vsel %vm1892, %v4273, 0
    %4276 = vmatprep.subr.mxu0 0.0
    %4277 = vmatpush1.msra.mxu0 %v4265
    %4278 = vmatprep.subr.mxu0 0.0
    %4279 = vmatpush1.msra.mxu0 %v4266
    %4280 = vmatprep.subr.mxu0 0.0
    %4281 = vmatpush1.msra.mxu0 %v4267
    %4282 = vmatprep.subr.mxu0 0.0
    %4283 = vmatpush1.msra.mxu0 %v4268
    %4284 = vmatprep.subr.mxu0 0.0
    %4285 = vmatpush1.msra.mxu0 %v4269
    %4286 = vmatprep.subr.mxu0 0.0
    %4287 = vmatpush1.msra.mxu0 %v4270
    %4288 = vmatprep.subr.mxu0 0.0
    %4289 = vmatpush1.msra.mxu0 %v4271
    %4290 = vmatprep.subr.mxu0 0.0
    %4291 = vmatpush1.msra.mxu0 %v4272
    %4292 = vmatprep.subr.mxu0 0.0
    %4293 = vmatpush1.msra.mxu0 0.0
    %4294 = vmatprep.subr.mxu0 0.0
    %4295 = vmatpush1.msra.mxu0 0.0
    %4296 = vmatprep.subr.mxu0 0.0
    %4297 = vmatpush1.msra.mxu0 0.0
    %4298 = vmatprep.subr.mxu0 0.0
    %4299 = vmatpush1.msra.mxu0 0.0
    %4300 = vmatprep.subr.mxu0 0.0
    %4301 = vmatpush1.msra.mxu0 0.0
    %4302 = vmatprep.subr.mxu0 0.0
    %4303 = vmatpush1.msra.mxu0 0.0
    %4304 = vmatprep.subr.mxu0 0.0
    %4305 = vmatpush1.msra.mxu0 0.0
    %4306 = vmatprep.subr.mxu0 0.0
    %4307 = vmatpush1.msra.mxu0 0.0
    %4308 = vmatprep.subr.mxu0 0.0
    %4309 = vmatpush1.msra.mxu0 0.0
    %4310 = vmatprep.subr.mxu0 0.0
    %4311 = vmatpush1.msra.mxu0 0.0
    %4312 = vmatprep.subr.mxu0 0.0
    %4313 = vmatpush1.msra.mxu0 0.0
    %4314 = vmatprep.subr.mxu0 0.0
    %4315 = vmatpush1.msra.mxu0 0.0
    %4316 = vmatprep.subr.mxu0 0.0
    %4317 = vmatpush1.msra.mxu0 0.0
    %4318 = vmatprep.subr.mxu0 0.0
    %4319 = vmatpush1.msra.mxu0 0.0
    %4320 = vmatprep.subr.mxu0 0.0
    %4321 = vmatpush1.msra.mxu0 0.0
    %4322 = vmatprep.subr.mxu0 0.0
    %4323 = vmatpush1.msra.mxu0 0.0
    %4324 = vmatprep.subr.mxu0 0.0
    %4325 = vmatpush1.msra.mxu0 0.0
    %4326 = vmatprep.subr.mxu0 0.0
    %4327 = vmatpush1.msra.mxu0 0.0
    %4328 = vmatprep.subr.mxu0 0.0
    %4329 = vmatpush1.msra.mxu0 0.0
    %4330 = vmatprep.subr.mxu0 0.0
    %4331 = vmatpush1.msra.mxu0 0.0
    %4332 = vmatprep.subr.mxu0 0.0
    %4333 = vmatpush1.msra.mxu0 0.0
    %4334 = vmatprep.subr.mxu0 0.0
    %4335 = vmatpush1.msra.mxu0 0.0
    %4336 = vmatprep.subr.mxu0 0.0
    %4337 = vmatpush1.msra.mxu0 0.0
    %4338 = vmatprep.subr.mxu0 0.0
    %4339 = vmatpush1.msra.mxu0 0.0
    %4340 = vmatprep.mubr.f32.mxu0 0.0
    %4341 = vmatmul.mubr.f32.gmra.mrb[0].mxu0 %v4274
    %v4342 = vpop.f32.mrb[0].mxu0
    %v4343 = vadd.f32 0.0, %v4342
    %v4344 = vpop.f32.mrb[0].mxu0
    %4345 = vdwg.mxu0
    %v4346 = vadd.f32 %v4262, %v4343
    %v4347 = vld [vmem:[%s2120] sm:$0xff]
    %v4348 = vld [vmem:[%s2120 + $0x8] sm:$0xff]
    %v4349 = vld [vmem:[%s2120 + $0x10] sm:$0xff]
    %v4350 = vld [vmem:[%s2120 + $0x18] sm:$0xff]
    %v4351 = vld [vmem:[%s2120 + $0x20] sm:$0xff]
    %v4352 = vld [vmem:[%s2120 + $0x28] sm:$0xff]
    %v4353 = vld [vmem:[%s2120 + $0x30] sm:$0xff]
    %v4354 = vld [vmem:[%s2120 + $0x38] sm:$0xff]
    %v4355 = vrot.slane %v4102, 3
    %v4356 = vsel %vm1892, %v4355, 0
    %4358 = vmatprep.subr.mxu0 0.0
    %4359 = vmatpush1.msra.mxu0 %v4347
    %4360 = vmatprep.subr.mxu0 0.0
    %4361 = vmatpush1.msra.mxu0 %v4348
    %4362 = vmatprep.subr.mxu0 0.0
    %4363 = vmatpush1.msra.mxu0 %v4349
    %4364 = vmatprep.subr.mxu0 0.0
    %4365 = vmatpush1.msra.mxu0 %v4350
    %4366 = vmatprep.subr.mxu0 0.0
    %4367 = vmatpush1.msra.mxu0 %v4351
    %4368 = vmatprep.subr.mxu0 0.0
    %4369 = vmatpush1.msra.mxu0 %v4352
    %4370 = vmatprep.subr.mxu0 0.0
    %4371 = vmatpush1.msra.mxu0 %v4353
    %4372 = vmatprep.subr.mxu0 0.0
    %4373 = vmatpush1.msra.mxu0 %v4354
    %4374 = vmatprep.subr.mxu0 0.0
    %4375 = vmatpush1.msra.mxu0 0.0
    %4376 = vmatprep.subr.mxu0 0.0
    %4377 = vmatpush1.msra.mxu0 0.0
    %4378 = vmatprep.subr.mxu0 0.0
    %4379 = vmatpush1.msra.mxu0 0.0
    %4380 = vmatprep.subr.mxu0 0.0
    %4381 = vmatpush1.msra.mxu0 0.0
    %4382 = vmatprep.subr.mxu0 0.0
    %4383 = vmatpush1.msra.mxu0 0.0
    %4384 = vmatprep.subr.mxu0 0.0
    %4385 = vmatpush1.msra.mxu0 0.0
    %4386 = vmatprep.subr.mxu0 0.0
    %4387 = vmatpush1.msra.mxu0 0.0
    %4388 = vmatprep.subr.mxu0 0.0
    %4389 = vmatpush1.msra.mxu0 0.0
    %4390 = vmatprep.subr.mxu0 0.0
    %4391 = vmatpush1.msra.mxu0 0.0
    %4392 = vmatprep.subr.mxu0 0.0
    %4393 = vmatpush1.msra.mxu0 0.0
    %4394 = vmatprep.subr.mxu0 0.0
    %4395 = vmatpush1.msra.mxu0 0.0
    %4396 = vmatprep.subr.mxu0 0.0
    %4397 = vmatpush1.msra.mxu0 0.0
    %4398 = vmatprep.subr.mxu0 0.0
    %4399 = vmatpush1.msra.mxu0 0.0
    %4400 = vmatprep.subr.mxu0 0.0
    %4401 = vmatpush1.msra.mxu0 0.0
    %4402 = vmatprep.subr.mxu0 0.0
    %4403 = vmatpush1.msra.mxu0 0.0
    %4404 = vmatprep.subr.mxu0 0.0
    %4405 = vmatpush1.msra.mxu0 0.0
    %4406 = vmatprep.subr.mxu0 0.0
    %4407 = vmatpush1.msra.mxu0 0.0
    %4408 = vmatprep.subr.mxu0 0.0
    %4409 = vmatpush1.msra.mxu0 0.0
    %4410 = vmatprep.subr.mxu0 0.0
    %4411 = vmatpush1.msra.mxu0 0.0
    %4412 = vmatprep.subr.mxu0 0.0
    %4413 = vmatpush1.msra.mxu0 0.0
    %4414 = vmatprep.subr.mxu0 0.0
    %4415 = vmatpush1.msra.mxu0 0.0
    %4416 = vmatprep.subr.mxu0 0.0
    %4417 = vmatpush1.msra.mxu0 0.0
    %4418 = vmatprep.subr.mxu0 0.0
    %4419 = vmatpush1.msra.mxu0 0.0
    %4420 = vmatprep.subr.mxu0 0.0
    %4421 = vmatpush1.msra.mxu0 0.0
    %4422 = vmatprep.mubr.f32.mxu0 0.0
    %4423 = vmatmul.mubr.f32.gmra.mrb[0].mxu0 %v4356
    %v4424 = vpop.f32.mrb[0].mxu0
    %v4425 = vadd.f32 0.0, %v4424
    %v4426 = vpop.f32.mrb[0].mxu0
    %4427 = vdwg.mxu0
    %v4428 = vadd.f32 %v4346, %v4425
    %v4429 = vld [vmem:[#allocation10] sm:$0x1]
    %v4430 = vadd.f32 %v4428, %v4429
    %v4431 = vmax.f32 %v4430, 0.0
    %v4432 = vld [vmem:[%s11] sm:$0xff]
    %v4433 = vld [vmem:[%s11 + $0x8] sm:$0xff]
    %v4434 = vld [vmem:[%s11 + $0x10] sm:$0xff]
    %v4435 = vld [vmem:[%s11 + $0x18] sm:$0xff]
    %v4436 = vld [vmem:[%s11 + $0x20] sm:$0xff]
    %v4437 = vld [vmem:[%s11 + $0x28] sm:$0xff]
    %v4438 = vld [vmem:[%s11 + $0x30] sm:$0xff]
    %v4439 = vld [vmem:[%s11 + $0x38] sm:$0xff]
    %v4440 = vld [vmem:[%s11 + $0x40] sm:$0xff]
    %v4441 = vld [vmem:[%s11 + $0x48] sm:$0xff]
    %v4442 = vld [vmem:[%s11 + $0x50] sm:$0xff]
    %v4443 = vld [vmem:[%s11 + $0x58] sm:$0xff]
    %v4444 = vld [vmem:[%s11 + $0x60] sm:$0xff]
    %v4445 = vld [vmem:[%s11 + $0x68] sm:$0xff]
    %v4446 = vld [vmem:[%s11 + $0x70] sm:$0xff]
    %v4447 = vld [vmem:[#allocation11] sm:$0x1]
    %v4449 = vsel %vm2222, %v4431, 0
    %4451 = vmatprep.subr.mxu0 0.0
    %4452 = vmatpush1.msra.mxu0 %v4432
    %4453 = vmatprep.subr.mxu0 0.0
    %4454 = vmatpush1.msra.mxu0 %v4433
    %4455 = vmatprep.subr.mxu0 0.0
    %4456 = vmatpush1.msra.mxu0 %v4434
    %4457 = vmatprep.subr.mxu0 0.0
    %4458 = vmatpush1.msra.mxu0 %v4435
    %4459 = vmatprep.subr.mxu0 0.0
    %4460 = vmatpush1.msra.mxu0 %v4436
    %4461 = vmatprep.subr.mxu0 0.0
    %4462 = vmatpush1.msra.mxu0 %v4437
    %4463 = vmatprep.subr.mxu0 0.0
    %4464 = vmatpush1.msra.mxu0 %v4438
    %4465 = vmatprep.subr.mxu0 0.0
    %4466 = vmatpush1.msra.mxu0 %v4439
    %4467 = vmatprep.subr.mxu0 0.0
    %4468 = vmatpush1.msra.mxu0 %v4440
    %4469 = vmatprep.subr.mxu0 0.0
    %4470 = vmatpush1.msra.mxu0 %v4441
    %4471 = vmatprep.subr.mxu0 0.0
    %4472 = vmatpush1.msra.mxu0 %v4442
    %4473 = vmatprep.subr.mxu0 0.0
    %4474 = vmatpush1.msra.mxu0 %v4443
    %4475 = vmatprep.subr.mxu0 0.0
    %4476 = vmatpush1.msra.mxu0 %v4444
    %4477 = vmatprep.subr.mxu0 0.0
    %4478 = vmatpush1.msra.mxu0 %v4445
    %4479 = vmatprep.subr.mxu0 0.0
    %4480 = vmatpush1.msra.mxu0 %v4446
    %4481 = vmatprep.subr.mxu0 0.0
    %4482 = vmatpush1.msra.mxu0 0.0
    %4483 = vmatprep.subr.mxu0 0.0
    %4484 = vmatpush1.msra.mxu0 0.0
    %4485 = vmatprep.subr.mxu0 0.0
    %4486 = vmatpush1.msra.mxu0 0.0
    %4487 = vmatprep.subr.mxu0 0.0
    %4488 = vmatpush1.msra.mxu0 0.0
    %4489 = vmatprep.subr.mxu0 0.0
    %4490 = vmatpush1.msra.mxu0 0.0
    %4491 = vmatprep.subr.mxu0 0.0
    %4492 = vmatpush1.msra.mxu0 0.0
    %4493 = vmatprep.subr.mxu0 0.0
    %4494 = vmatpush1.msra.mxu0 0.0
    %4495 = vmatprep.subr.mxu0 0.0
    %4496 = vmatpush1.msra.mxu0 0.0
    %4497 = vmatprep.subr.mxu0 0.0
    %4498 = vmatpush1.msra.mxu0 0.0
    %4499 = vmatprep.subr.mxu0 0.0
    %4500 = vmatpush1.msra.mxu0 0.0
    %4501 = vmatprep.subr.mxu0 0.0
    %4502 = vmatpush1.msra.mxu0 0.0
    %4503 = vmatprep.subr.mxu0 0.0
    %4504 = vmatpush1.msra.mxu0 0.0
    %4505 = vmatprep.subr.mxu0 0.0
    %4506 = vmatpush1.msra.mxu0 0.0
    %4507 = vmatprep.subr.mxu0 0.0
    %4508 = vmatpush1.msra.mxu0 0.0
    %4509 = vmatprep.subr.mxu0 0.0
    %4510 = vmatpush1.msra.mxu0 0.0
    %4511 = vmatprep.subr.mxu0 0.0
    %4512 = vmatpush1.msra.mxu0 0.0
    %4513 = vmatprep.subr.mxu0 0.0
    %4514 = vmatpush1.msra.mxu0 0.0
    %4515 = vmatprep.mubr.f32.mxu0 0.0
    %4516 = vmatmul.mubr.f32.gmra.mrb[0].mxu0 %v4449
    %v4517 = vpop.f32.mrb[0].mxu0
    %v4518 = vadd.f32 %v4447, %v4517
    %v4519 = vpop.f32.mrb[0].mxu0
    %4520 = vdwg.mxu0
    %v4521 = vmax.f32 %v4518, 0.0
    %v4522 = vld [vmem:[%s13] sm:$0xff]
    %v4523 = vld [vmem:[%s13 + $0x8] sm:$0xff]
    %v4524 = vld [vmem:[%s13 + $0x10] sm:$0xff]
    %v4525 = vld [vmem:[%s13 + $0x18] sm:$0xff]
    %v4526 = vld [vmem:[%s13 + $0x20] sm:$0xff]
    %v4527 = vld [vmem:[%s13 + $0x28] sm:$0xff]
    %v4528 = vld [vmem:[%s13 + $0x30] sm:$0xff]
    %v4529 = vld [vmem:[%s13 + $0x38] sm:$0xff]
    %v4530 = vld [vmem:[%s13 + $0x40] sm:$0xff]
    %v4531 = vld [vmem:[%s13 + $0x48] sm:$0xff]
    %v4532 = vld [vmem:[%s13 + $0x50] sm:$0xf]
    %v4533 = vld [vmem:[#allocation13] sm:$0x1]
    %v4535 = vsel %vm2309, %v4521, 0
    %v4538 = vsel %vm178, %v4532, 0
    %4540 = vmatprep.subr.mxu0 0.0
    %4541 = vmatpush1.msra.mxu0 %v4522
    %4542 = vmatprep.subr.mxu0 0.0
    %4543 = vmatpush1.msra.mxu0 %v4523
    %4544 = vmatprep.subr.mxu0 0.0
    %4545 = vmatpush1.msra.mxu0 %v4524
    %4546 = vmatprep.subr.mxu0 0.0
    %4547 = vmatpush1.msra.mxu0 %v4525
    %4548 = vmatprep.subr.mxu0 0.0
    %4549 = vmatpush1.msra.mxu0 %v4526
    %4550 = vmatprep.subr.mxu0 0.0
    %4551 = vmatpush1.msra.mxu0 %v4527
    %4552 = vmatprep.subr.mxu0 0.0
    %4553 = vmatpush1.msra.mxu0 %v4528
    %4554 = vmatprep.subr.mxu0 0.0
    %4555 = vmatpush1.msra.mxu0 %v4529
    %4556 = vmatprep.subr.mxu0 0.0
    %4557 = vmatpush1.msra.mxu0 %v4530
    %4558 = vmatprep.subr.mxu0 0.0
    %4559 = vmatpush1.msra.mxu0 %v4531
    %4560 = vmatprep.subr.mxu0 0.0
    %4561 = vmatpush1.msra.mxu0 %v4538
    %4562 = vmatprep.subr.mxu0 0.0
    %4563 = vmatpush1.msra.mxu0 0.0
    %4564 = vmatprep.subr.mxu0 0.0
    %4565 = vmatpush1.msra.mxu0 0.0
    %4566 = vmatprep.subr.mxu0 0.0
    %4567 = vmatpush1.msra.mxu0 0.0
    %4568 = vmatprep.subr.mxu0 0.0
    %4569 = vmatpush1.msra.mxu0 0.0
    %4570 = vmatprep.subr.mxu0 0.0
    %4571 = vmatpush1.msra.mxu0 0.0
    %4572 = vmatprep.subr.mxu0 0.0
    %4573 = vmatpush1.msra.mxu0 0.0
    %4574 = vmatprep.subr.mxu0 0.0
    %4575 = vmatpush1.msra.mxu0 0.0
    %4576 = vmatprep.subr.mxu0 0.0
    %4577 = vmatpush1.msra.mxu0 0.0
    %4578 = vmatprep.subr.mxu0 0.0
    %4579 = vmatpush1.msra.mxu0 0.0
    %4580 = vmatprep.subr.mxu0 0.0
    %4581 = vmatpush1.msra.mxu0 0.0
    %4582 = vmatprep.subr.mxu0 0.0
    %4583 = vmatpush1.msra.mxu0 0.0
    %4584 = vmatprep.subr.mxu0 0.0
    %4585 = vmatpush1.msra.mxu0 0.0
    %4586 = vmatprep.subr.mxu0 0.0
    %4587 = vmatpush1.msra.mxu0 0.0
    %4588 = vmatprep.subr.mxu0 0.0
    %4589 = vmatpush1.msra.mxu0 0.0
    %4590 = vmatprep.subr.mxu0 0.0
    %4591 = vmatpush1.msra.mxu0 0.0
    %4592 = vmatprep.subr.mxu0 0.0
    %4593 = vmatpush1.msra.mxu0 0.0
    %4594 = vmatprep.subr.mxu0 0.0
    %4595 = vmatpush1.msra.mxu0 0.0
    %4596 = vmatprep.subr.mxu0 0.0
    %4597 = vmatpush1.msra.mxu0 0.0
    %4598 = vmatprep.subr.mxu0 0.0
    %4599 = vmatpush1.msra.mxu0 0.0
    %4600 = vmatprep.subr.mxu0 0.0
    %4601 = vmatpush1.msra.mxu0 0.0
    %4602 = vmatprep.subr.mxu0 0.0
    %4603 = vmatpush1.msra.mxu0 0.0
    %4604 = vmatprep.mubr.f32.mxu0 0.0
    %4605 = vmatmul.mubr.f32.gmra.mrb[0].mxu0 %v4535
    %v4606 = vpop.f32.mrb[0].mxu0
    %v4607 = vadd.f32 %v4533, %v4606
    %v4608 = vpop.f32.mrb[0].mxu0
    %4609 = vdwg.mxu0
    %4610 = vst.msk [vmem:[#allocation14 + $0x1] sm:$0x1] %vm2386, %v4607
    // Predicated region
    $region90: #{lenet_forward.1} parent=1 // pred_check
      _
    $region91: #{lenet_forward.1} parent=1 // pred_check_branch
      %4612 = sbr.rel (0) target = $region93
    $region92: #{lenet_forward.1} parent=1 // pred_region
      %s4614 = ssub.s32 32, 32
      %4615 = vsyncadd [#allocation4], %s4614
      %s4617 = sshll.u32 [#allocation14], 4
      %s4618 = int_to_ptr.vmem [resolvable:$true] %s4617
      %4620 = dma.vmem_to_hbm [thread:$0]  %s4618, 32, %s15, [#allocation4]
    $region93: #{lenet_forward.1} parent=1 // pred_fallthru
      _
    // Predicated region
    $region94: #{lenet_forward.1} parent=1 // pred_check
      _
    $region95: #{lenet_forward.1} parent=1 // pred_check_branch
      %4622 = sbr.rel (0) target = $region97
    $region96: #{lenet_forward.1} parent=1 // pred_region
      %4623 = dma.done [#allocation4], 32
    $region97: #{lenet_forward.1} parent=1 // pred_fallthru
      _
    %4624 = vsyncpa [#allocation3], 1
    %4625 = vsyncpa [#allocation6], 1
    %4626 = vsyncpa [#allocation9], 1
    %4627 = vsyncpa [#allocation12], 1
    %4628 = vsyncpa [#allocation4], 1

</llo_original>
